<compile_context>
chip_gen: v6e
topology: v6e:2x2x1
jax: 0.10.0
libtpu: 0.0.40
codegen_flags: <defaults>
</compile_context>

<pallas_src>
import functools

import numpy as np
import jax
import jax.numpy as jnp
from jax.experimental import pallas as pl
from jax.experimental.pallas import tpu as pltpu

BN_EPS = 1e-5
LANE = 128
VMEM_LIMIT = 32 * 1024 * 1024          # conservative: also fits v7x's 64 MiB VMEM


def _round_up(x, m):
    return ((x + m - 1) // m) * m


def _pick_tile(dim, max_t, align):
    """Largest tile (multiple of `align`, <= max_t) dividing the padded dim."""
    padded = _round_up(dim, align)
    t = min(max_t, padded)
    t = (t // align) * align
    while padded % t != 0:
        t -= align
    return t, padded


# ==================== kernel 1: tiled fused matmul (1x1 projection) ====================
def _make_mm_kernel(relu):
    def kernel(x_ref, w_ref, sc_ref, sh_ref, o_ref, acc_ref):
        @pl.when(pl.program_id(2) == 0)
        def _init():
            acc_ref[...] = jnp.zeros_like(acc_ref)

        acc_ref[...] += jnp.dot(x_ref[...], w_ref[...],
                                preferred_element_type=jnp.float32)

        @pl.when(pl.program_id(2) == pl.num_programs(2) - 1)
        def _fin():
            y = acc_ref[...] * sc_ref[...] + sh_ref[...]
            if relu:
                y = jnp.maximum(y, 0.0)
            o_ref[...] = y.astype(o_ref.dtype)
    return kernel


def fused_matmul(x, w, scale, shift, relu=False, out_dtype=jnp.bfloat16):
    """(M,K)@(K,N) bf16, f32 accumulation, fused per-column scale/shift (+ReLU)."""
    M, K = x.shape
    N = w.shape[1]
    tm, Mp = _pick_tile(M, 256, 16)
    tk, Kp = _pick_tile(K, 512, 128)
    tn, Np = _pick_tile(N, 256, 128)

    xb = x.astype(jnp.bfloat16)
    wb = w.astype(jnp.bfloat16)
    if (Mp, Kp) != (M, K):                       # skip pad round-trip when aligned
        xb = jnp.pad(xb, ((0, Mp - M), (0, Kp - K)))
    if (Kp, Np) != (K, N):
        wb = jnp.pad(wb, ((0, Kp - K), (0, Np - N)))
    sc = scale.astype(jnp.float32).reshape(1, N)
    sh = shift.astype(jnp.float32).reshape(1, N)
    if Np != N:
        sc = jnp.pad(sc, ((0, 0), (0, Np - N)))
        sh = jnp.pad(sh, ((0, 0), (0, Np - N)))

    grid = (Mp // tm, Np // tn, Kp // tk)
    out = pl.pallas_call(
        _make_mm_kernel(relu),
        out_shape=jax.ShapeDtypeStruct((Mp, Np), out_dtype),
        grid=grid,
        in_specs=[pl.BlockSpec((tm, tk), lambda i, j, k: (i, k)),
                  pl.BlockSpec((tk, tn), lambda i, j, k: (k, j)),
                  pl.BlockSpec((1, tn), lambda i, j, k: (0, j)),
                  pl.BlockSpec((1, tn), lambda i, j, k: (0, j))],
        out_specs=pl.BlockSpec((tm, tn), lambda i, j, k: (i, j)),
        scratch_shapes=[pltpu.VMEM((tm, tn), jnp.float32)],
        compiler_params=pltpu.CompilerParams(
            dimension_semantics=("parallel", "parallel", "arbitrary"),
            vmem_limit_bytes=VMEM_LIMIT),
        cost_estimate=pl.CostEstimate(
            flops=2 * Mp * Np * Kp, transcendentals=0,
            bytes_accessed=int((Mp * Kp + Kp * Np) * 2
                               + Mp * Np * jnp.dtype(out_dtype).itemsize)),
    )(xb, wb, sc, sh)
    if (Mp, Np) != (M, N):
        out = out[:M, :N]
    return out


# ==================== kernel 2: direct fused 3x3 conv ====================
# Grid = (batch, Cout tiles).  One step loads the whole padded image as a single
# block, builds the (Ho*Wo, 9*Cin) im2col operand in VMEM and performs one MXU
# dot against the (9*Cin, tn) weight slab; BN scale/shift, optional residual add
# and ReLU are fused into the epilogue.  Output tiles are lane-dense (channels
# padded to multiples of 128 by the caller).
def _make_conv_kernel(n_x, taps, ho, wo, has_res, relu):
    def kernel(*refs):
        x_refs = refs[:n_x]
        w_ref, sc_ref, sh_ref = refs[n_x], refs[n_x + 1], refs[n_x + 2]
        if has_res:
            r_ref, o_ref = refs[n_x + 3], refs[n_x + 4]
        else:
            o_ref = refs[n_x + 3]

        xs = [xr[0] for xr in x_refs]                 # (Hin, Win, Cin) values
        cin = xs[0].shape[-1]
        cols = []
        for (xi, ro, co) in taps:                     # in-kernel im2col
            patch = xs[xi][ro:ro + ho, co:co + wo, :]
            cols.append(patch.reshape(ho * wo, cin))
        p = cols[0] if len(cols) == 1 else jnp.concatenate(cols, axis=-1)

        acc = jnp.dot(p, w_ref[...], preferred_element_type=jnp.float32)
        y = acc * sc_ref[...] + sh_ref[...]
        if has_res:
            y = y + r_ref[0].reshape(ho * wo, -1).astype(jnp.float32)
        if relu:
            y = jnp.maximum(y, 0.0)
        o_ref[0] = y.reshape(ho, wo, -1).astype(o_ref.dtype)
    return kernel


def conv3x3_bn(x, w, scale, shift, stride=1, relu=False, residual=None,
               out_dtype=jnp.bfloat16):
    """3x3 conv (pad=1, stride 1 or 2) + folded BN (+ residual add) (+ ReLU).

    x: (Nb, H, W, Cin) bf16 NHWC, Cin multiple of 128.
    w: (3, 3, Cin, Cout), Cout multiple of 128.
    residual: optional (Nb, Ho, Wo, Cout) tensor added before the ReLU.
    """
    Nb, H, W, Cin = x.shape
    Cout = w.shape[-1]
    Ho = (H + 2 - 3) // stride + 1
    Wo = (W + 2 - 3) // stride + 1

    xp = jnp.pad(x, ((0, 0), (1, 1), (1, 1), (0, 0)))
    if stride == 1:
        x_inputs = [xp]
        taps = [(0, ki, kj) for ki in range(3) for kj in range(3)]
    elif stride == 2:
        # even/odd row/col phase decomposition: ~1x input bytes total, and every
        # in-kernel tap slice stays unit-stride.
        x_inputs = [xp[:, 0::2, 0::2, :], xp[:, 0::2, 1::2, :],
                    xp[:, 1::2, 0::2, :], xp[:, 1::2, 1::2, :]]
        taps = [(2 * (ki % 2) + (kj % 2), ki // 2, kj // 2)
                for ki in range(3) for kj in range(3)]
    else:
        raise NotImplementedError("stride must be 1 or 2")
    n_x = len(x_inputs)

    w9 = w.reshape(9 * Cin, Cout).astype(jnp.bfloat16)
    sc = scale.astype(jnp.float32).reshape(1, Cout)
    sh = shift.astype(jnp.float32).reshape(1, Cout)

    tn, _ = _pick_tile(Cout, 256, LANE)
    grid = (Nb, Cout // tn)

    in_specs = [pl.BlockSpec((1,) + tuple(xi.shape[1:]), lambda b, j: (b, 0, 0, 0))
                for xi in x_inputs]
    in_specs += [pl.BlockSpec((9 * Cin, tn), lambda b, j: (0, j)),
                 pl.BlockSpec((1, tn), lambda b, j: (0, j)),
                 pl.BlockSpec((1, tn), lambda b, j: (0, j))]
    inputs = list(x_inputs) + [w9, sc, sh]
    if residual is not None:
        in_specs.append(pl.BlockSpec((1, Ho, Wo, tn), lambda b, j: (b, 0, 0, j)))
        inputs.append(residual.astype(jnp.bfloat16))

    act_bytes = int(sum(int(np.prod(xi.shape)) for xi in x_inputs)) * 2
    out_bytes = int(Nb * Ho * Wo * Cout * jnp.dtype(out_dtype).itemsize)
    res_bytes = Nb * Ho * Wo * Cout * 2 if residual is not None else 0

    return pl.pallas_call(
        _make_conv_kernel(n_x, taps, Ho, Wo, residual is not None, relu),
        out_shape=jax.ShapeDtypeStruct((Nb, Ho, Wo, Cout), out_dtype),
        grid=grid,
        in_specs=in_specs,
        out_specs=pl.BlockSpec((1, Ho, Wo, tn), lambda b, j: (b, 0, 0, j)),
        compiler_params=pltpu.CompilerParams(
            dimension_semantics=("parallel", "parallel"),
            vmem_limit_bytes=VMEM_LIMIT),
        cost_estimate=pl.CostEstimate(
            flops=2 * Nb * Ho * Wo * 9 * Cin * Cout, transcendentals=0,
            bytes_accessed=act_bytes + 9 * Cin * Cout * 2 + out_bytes + res_bytes),
    )(*inputs)


def conv1x1_bn(x, w, scale, shift, stride=1, relu=False):
    """1x1 conv (stride 1 or 2, no padding) + folded BN via the fused matmul."""
    Nb, H, W, Cin = x.shape
    Cout = w.shape[-1]
    if stride != 1:
        x = x[:, ::stride, ::stride, :]
    Nb, Ho, Wo, _ = x.shape
    y = fused_matmul(x.reshape(Nb * Ho * Wo, Cin), w.reshape(Cin, Cout),
                     scale, shift, relu=relu, out_dtype=jnp.bfloat16)
    return y.reshape(Nb, Ho, Wo, Cout)


# -------------------- BasicBlock forward (matches the reference module) --------------------
def basic_block(x, kp, stride, in_ch, out_ch):
    """x: (Nb,H,W,Cin_padded) bf16 NHWC -> (Nb,Ho,Wo,Cout_padded) f32."""
    if stride != 1 or in_ch != out_ch:
        shortcut = conv1x1_bn(x, kp['down_w'], kp['down_scale'], kp['down_shift'],
                              stride=stride)
    else:
        shortcut = x
    out = conv3x3_bn(x, kp['w1'], kp['scale1'], kp['shift1'],
                     stride=stride, relu=True)                      # relu(bn1(conv1(x)))
    out = conv3x3_bn(out, kp['w2'], kp['scale2'], kp['shift2'],     # relu(bn2(conv2(.)) + sc)
                     stride=1, relu=True, residual=shortcut, out_dtype=jnp.float32)
    return out


def basic_block_forward(x_nchw, kp, *, stride, in_ch, out_ch):
    cin_p = _round_up(in_ch, LANE)
    x = jnp.transpose(x_nchw, (0, 2, 3, 1)).astype(jnp.bfloat16)    # NCHW -> NHWC bf16
    x = jnp.pad(x, ((0, 0), (0, 0), (0, 0), (0, cin_p - in_ch)))    # lane-dense channels
    out = basic_block(x, kp, stride, in_ch, out_ch)
    return jnp.transpose(out[..., :out_ch], (0, 3, 1, 2)).astype(jnp.float32)


# -------------------- parameters: raw (PyTorch-like) + kernel-ready --------------------
def init_block_params(key, in_ch, out_ch, stride):
    ks = jax.random.split(key, 12)

    def conv_w(k, kh, kw, ci, co):
        return jax.random.normal(k, (kh, kw, ci, co), jnp.float32) / np.sqrt(kh * kw * ci)

    def bn_params(k, c):
        k1, k2, k3, k4 = jax.random.split(k, 4)
        return dict(gamma=1.0 + 0.1 * jax.random.normal(k1, (c,), jnp.float32),
                    beta=0.1 * jax.random.normal(k2, (c,), jnp.float32),
                    mean=0.1 * jax.random.normal(k3, (c,), jnp.float32),
                    var=jax.random.uniform(k4, (c,), jnp.float32, minval=0.5, maxval=1.5))

    p = dict(
        w1=conv_w(ks[0], 3, 3, in_ch, out_ch),
        b1=0.05 * jax.random.normal(ks[1], (out_ch,), jnp.float32),   # Conv2d default bias=True
        bn1=bn_params(ks[2], out_ch),
        w2=conv_w(ks[3], 3, 3, out_ch, out_ch),
        b2=0.05 * jax.random.normal(ks[4], (out_ch,), jnp.float32),
        bn2=bn_params(ks[5], out_ch),
    )
    if stride != 1 or in_ch != out_ch:
        p['wd'] = conv_w(ks[6], 1, 1, in_ch, out_ch)
        p['bd'] = 0.05 * jax.random.normal(ks[7], (out_ch,), jnp.float32)
        p['bnd'] = bn_params(ks[8], out_ch)
    return p


def _fold_bn(bn, conv_bias):
    scale = bn['gamma'] / jnp.sqrt(bn['var'] + BN_EPS)
    shift = (conv_bias - bn['mean']) * scale + bn['beta']
    return scale, shift


def prepare_kernel_params(p, in_ch, out_ch):
    """Fold inference-mode BN (+conv bias) into scale/shift; pad channel dims to
    multiples of 128 so every Pallas tile is lane-dense (padded lanes stay 0)."""
    cin_p, cout_p = _round_up(in_ch, LANE), _round_up(out_ch, LANE)

    def pad_w(w, cip, cop):
        ci, co = w.shape[-2:]
        return jnp.pad(w, ((0, 0), (0, 0), (0, cip - ci), (0, cop - co))).astype(jnp.bfloat16)

    def pad_c(v):
        return jnp.pad(v, (0, cout_p - v.shape[0]))

    kp = {}
    s1, h1 = _fold_bn(p['bn1'], p['b1'])
    kp['w1'], kp['scale1'], kp['shift1'] = pad_w(p['w1'], cin_p, cout_p), pad_c(s1), pad_c(h1)
    s2, h2 = _fold_bn(p['bn2'], p['b2'])
    kp['w2'], kp['scale2'], kp['shift2'] = pad_w(p['w2'], cout_p, cout_p), pad_c(s2), pad_c(h2)
    if 'wd' in p:
        sd, hd = _fold_bn(p['bnd'], p['bd'])
        kp['down_w'] = pad_w(p['wd'], cin_p, cout_p)
        kp['down_scale'], kp['down_shift'] = pad_c(sd), pad_c(hd)
    return kp


# -------------------- pure-JAX f32 reference (inference-mode BN) --------------------
def reference_block(x_nchw, p, stride, in_ch, out_ch):
    def bf(v):  # mirror the bf16 rounding points of the kernel path
        return v.astype(jnp.bfloat16).astype(jnp.float32)

    def conv(x, w, b, s, pad):
        y = jax.lax.conv_general_dilated(
            x, w, window_strides=(s, s), padding=[(pad, pad), (pad, pad)],
            dimension_numbers=('NCHW', 'HWIO', 'NCHW'))
        return y + b.reshape(1, -1, 1, 1)

    def bnorm(y, bn):
        s = bn['gamma'] / jnp.sqrt(bn['var'] + BN_EPS)
        return (y - bn['mean'].reshape(1, -1, 1, 1)) * s.reshape(1, -1, 1, 1) \
               + bn['beta'].reshape(1, -1, 1, 1)

    x = bf(x_nchw)
    out = jax.nn.relu(bnorm(conv(x, bf(p['w1']), p['b1'], stride, 1), p['bn1']))
    out = bf(out)
    out = bnorm(conv(out, bf(p['w2']), p['b2'], 1, 1), p['bn2'])
    if 'wd' in p:
        shortcut = bf(bnorm(conv(x, bf(p['wd']), p['bd'], stride, 0), p['bnd']))
    else:
        shortcut = x
    return jax.nn.relu(out + shortcut)


# -------------------- main --------------------
if __name__ == "__main__":
    key = jax.random.PRNGKey(0)
    kx, kp1, kp2, kp3 = jax.random.split(key, 4)
    x = jax.random.normal(kx, (2, 4, 16, 16), jnp.float32)   # NCHW, matches the module

    configs = [
        ("identity shortcut",            4, 4, 1, kp1),
        ("1x1 projection, stride 1",     4, 8, 1, kp2),
        ("1x1 projection, stride 2",     4, 8, 2, kp3),
    ]
    for name, ci, co, st, pk in configs:
        raw = init_block_params(pk, ci, co, st)
        kparams = prepare_kernel_params(raw, ci, co)
        fwd = jax.jit(functools.partial(basic_block_forward,
                                        stride=st, in_ch=ci, out_ch=co))
        out = jax.block_until_ready(fwd(x, kparams))
        ref = np.asarray(reference_block(x, raw, st, ci, co), np.float32)
        assert out.shape == ref.shape, (name, out.shape, ref.shape)
        np.testing.assert_allclose(np.asarray(out, np.float32), ref,
                                   rtol=5e-2, atol=5e-2, err_msg=name)
    print("KERNEL_OK")
</pallas_src>

<mosaic_0001>
module attributes {stable_mosaic.version = 11 : i64} {
  func.func @kernel(%arg0: i32, %arg1: i32, %arg2: memref<1x18x18x128xbf16, #tpu.memory_space<vmem>>, %arg3: memref<1152x128xbf16, #tpu.memory_space<vmem>>, %arg4: memref<1x128xf32, #tpu.memory_space<vmem>>, %arg5: memref<1x128xf32, #tpu.memory_space<vmem>>, %arg6: memref<1x16x16x128xbf16, #tpu.memory_space<vmem>>) attributes {dimension_semantics = [#tpu.dimension_semantics<parallel>, #tpu.dimension_semantics<parallel>], iteration_bounds = array<i64: 2, 1>, scalar_prefetch = 0 : i64, scratch_operands = 0 : i64, tpu.core_type = #tpu.core_type<tc>, window_params = [{transform_indices = @transform_0, window_bounds = array<i64: 1, 18, 18, 128>}, {transform_indices = @transform_1, window_bounds = array<i64: 1152, 128>}, {transform_indices = @transform_2, window_bounds = array<i64: 1, 128>}, {transform_indices = @transform_3, window_bounds = array<i64: 1, 128>}, {transform_indices = @transform_4, window_bounds = array<i64: 1, 16, 16, 128>}]} {
    %c0 = arith.constant 0 : index
    %c0_0 = arith.constant 0 : index
    %c0_1 = arith.constant 0 : index
    %c0_2 = arith.constant 0 : index
    %0 = vector.load %arg2[%c0, %c0_0, %c0_1, %c0_2] : memref<1x18x18x128xbf16, #tpu.memory_space<vmem>>, vector<1x18x18x128xbf16>
    %1 = vector.shape_cast %0 : vector<1x18x18x128xbf16> to vector<18x18x128xbf16>
    %2 = vector.extract_strided_slice %1 {offsets = [0, 0, 0], sizes = [16, 16, 128], strides = [1, 1, 1]} : vector<18x18x128xbf16> to vector<16x16x128xbf16>
    %3 = vector.shape_cast %2 : vector<16x16x128xbf16> to vector<256x128xbf16>
    %4 = vector.extract_strided_slice %1 {offsets = [0, 1, 0], sizes = [16, 16, 128], strides = [1, 1, 1]} : vector<18x18x128xbf16> to vector<16x16x128xbf16>
    %5 = vector.shape_cast %4 : vector<16x16x128xbf16> to vector<256x128xbf16>
    %6 = vector.extract_strided_slice %1 {offsets = [0, 2, 0], sizes = [16, 16, 128], strides = [1, 1, 1]} : vector<18x18x128xbf16> to vector<16x16x128xbf16>
    %7 = vector.shape_cast %6 : vector<16x16x128xbf16> to vector<256x128xbf16>
    %8 = vector.extract_strided_slice %1 {offsets = [1, 0, 0], sizes = [16, 16, 128], strides = [1, 1, 1]} : vector<18x18x128xbf16> to vector<16x16x128xbf16>
    %9 = vector.shape_cast %8 : vector<16x16x128xbf16> to vector<256x128xbf16>
    %10 = vector.extract_strided_slice %1 {offsets = [1, 1, 0], sizes = [16, 16, 128], strides = [1, 1, 1]} : vector<18x18x128xbf16> to vector<16x16x128xbf16>
    %11 = vector.shape_cast %10 : vector<16x16x128xbf16> to vector<256x128xbf16>
    %12 = vector.extract_strided_slice %1 {offsets = [1, 2, 0], sizes = [16, 16, 128], strides = [1, 1, 1]} : vector<18x18x128xbf16> to vector<16x16x128xbf16>
    %13 = vector.shape_cast %12 : vector<16x16x128xbf16> to vector<256x128xbf16>
    %14 = vector.extract_strided_slice %1 {offsets = [2, 0, 0], sizes = [16, 16, 128], strides = [1, 1, 1]} : vector<18x18x128xbf16> to vector<16x16x128xbf16>
    %15 = vector.shape_cast %14 : vector<16x16x128xbf16> to vector<256x128xbf16>
    %16 = vector.extract_strided_slice %1 {offsets = [2, 1, 0], sizes = [16, 16, 128], strides = [1, 1, 1]} : vector<18x18x128xbf16> to vector<16x16x128xbf16>
    %17 = vector.shape_cast %16 : vector<16x16x128xbf16> to vector<256x128xbf16>
    %18 = vector.extract_strided_slice %1 {offsets = [2, 2, 0], sizes = [16, 16, 128], strides = [1, 1, 1]} : vector<18x18x128xbf16> to vector<16x16x128xbf16>
    %19 = vector.shape_cast %18 : vector<16x16x128xbf16> to vector<256x128xbf16>
    %20 = tpu.concatenate %3, %5, %7, %9, %11, %13, %15, %17, %19 in 1 : vector<256x128xbf16>, vector<256x128xbf16>, vector<256x128xbf16>, vector<256x128xbf16>, vector<256x128xbf16>, vector<256x128xbf16>, vector<256x128xbf16>, vector<256x128xbf16>, vector<256x128xbf16> -> vector<256x1152xbf16>
    %c0_3 = arith.constant 0 : index
    %c0_4 = arith.constant 0 : index
    %21 = vector.load %arg3[%c0_3, %c0_4] : memref<1152x128xbf16, #tpu.memory_space<vmem>>, vector<1152x128xbf16>
    %cst = arith.constant dense<0.000000e+00> : vector<256x128xf32>
    %22 = tpu.matmul %20, %21, %cst {dimension_numbers = #tpu.dot_dimension_numbers<[1], [0], [0], [1], [0, 0, 1, 1], [], []>} : vector<256x1152xbf16>, vector<1152x128xbf16>, vector<256x128xf32> -> vector<256x128xf32>
    %c0_5 = arith.constant 0 : index
    %c0_6 = arith.constant 0 : index
    %23 = vector.load %arg4[%c0_5, %c0_6] : memref<1x128xf32, #tpu.memory_space<vmem>>, vector<1x128xf32>
    %24 = vector.broadcast %23 : vector<1x128xf32> to vector<256x128xf32>
    %25 = arith.mulf %22, %24 : vector<256x128xf32>
    %c0_7 = arith.constant 0 : index
    %c0_8 = arith.constant 0 : index
    %26 = vector.load %arg5[%c0_7, %c0_8] : memref<1x128xf32, #tpu.memory_space<vmem>>, vector<1x128xf32>
    %27 = vector.broadcast %26 : vector<1x128xf32> to vector<256x128xf32>
    %28 = arith.addf %25, %27 : vector<256x128xf32>
    %cst_9 = arith.constant 0.000000e+00 : f32
    %29 = vector.broadcast %cst_9 : f32 to vector<256x128xf32>
    %30 = arith.maximumf %28, %29 : vector<256x128xf32>
    %31 = vector.shape_cast %30 : vector<256x128xf32> to vector<16x16x128xf32>
    %32 = arith.truncf %31 : vector<16x16x128xf32> to vector<16x16x128xbf16>
    %c0_10 = arith.constant 0 : index
    %c0_11 = arith.constant 0 : index
    %c0_12 = arith.constant 0 : index
    %c0_13 = arith.constant 0 : index
    %33 = vector.load %arg6[%c0_10, %c0_11, %c0_12, %c0_13] : memref<1x16x16x128xbf16, #tpu.memory_space<vmem>>, vector<1x16x16x128xbf16>
    %34 = vector.shape_cast %33 : vector<1x16x16x128xbf16> to vector<16x16x128xbf16>
    %35 = vector.shape_cast %32 : vector<16x16x128xbf16> to vector<1x16x16x128xbf16>
    tpu.vector_store %arg6[%c0_10, %c0_11, %c0_12, %c0_13], %35 {strides = array<i32>} : memref<1x16x16x128xbf16, #tpu.memory_space<vmem>>, vector<1x16x16x128xbf16>,
    return
  }
  func.func @transform_0(%arg0: i32, %arg1: i32) -> (i32, i32, i32, i32) {
    %c0_i32 = arith.constant 0 : i32
    %c0_i32_0 = arith.constant 0 : i32
    %c0_i32_1 = arith.constant 0 : i32
    %c0_i32_2 = arith.constant 0 : i32
    return %arg0, %c0_i32, %c0_i32_0, %c0_i32_1 : i32, i32, i32, i32
  }
  func.func @transform_1(%arg0: i32, %arg1: i32) -> (i32, i32) {
    %c0_i32 = arith.constant 0 : i32
    %c0_i32_0 = arith.constant 0 : i32
    return %c0_i32, %arg1 : i32, i32
  }
  func.func @transform_2(%arg0: i32, %arg1: i32) -> (i32, i32) {
    %c0_i32 = arith.constant 0 : i32
    %c0_i32_0 = arith.constant 0 : i32
    return %c0_i32, %arg1 : i32, i32
  }
  func.func @transform_3(%arg0: i32, %arg1: i32) -> (i32, i32) {
    %c0_i32 = arith.constant 0 : i32
    %c0_i32_0 = arith.constant 0 : i32
    return %c0_i32, %arg1 : i32, i32
  }
  func.func @transform_4(%arg0: i32, %arg1: i32) -> (i32, i32, i32, i32) {
    %c0_i32 = arith.constant 0 : i32
    %c0_i32_0 = arith.constant 0 : i32
    %c0_i32_1 = arith.constant 0 : i32
    return %arg0, %c0_i32, %c0_i32_0, %arg1 : i32, i32, i32, i32
  }
}

module attributes {stable_mosaic.version = 11 : i64} {
  func.func @kernel(%arg0: i32, %arg1: i32, %arg2: memref<1x18x18x128xbf16, #tpu.memory_space<vmem>>, %arg3: memref<1152x128xbf16, #tpu.memory_space<vmem>>, %arg4: memref<1x128xf32, #tpu.memory_space<vmem>>, %arg5: memref<1x128xf32, #tpu.memory_space<vmem>>, %arg6: memref<1x16x16x128xbf16, #tpu.memory_space<vmem>>, %arg7: memref<1x16x16x128xf32, #tpu.memory_space<vmem>>) attributes {dimension_semantics = [#tpu.dimension_semantics<parallel>, #tpu.dimension_semantics<parallel>], iteration_bounds = array<i64: 2, 1>, scalar_prefetch = 0 : i64, scratch_operands = 0 : i64, tpu.core_type = #tpu.core_type<tc>, window_params = [{transform_indices = @transform_0, window_bounds = array<i64: 1, 18, 18, 128>}, {transform_indices = @transform_1, window_bounds = array<i64: 1152, 128>}, {transform_indices = @transform_2, window_bounds = array<i64: 1, 128>}, {transform_indices = @transform_3, window_bounds = array<i64: 1, 128>}, {transform_indices = @transform_4, window_bounds = array<i64: 1, 16, 16, 128>}, {transform_indices = @transform_5, window_bounds = array<i64: 1, 16, 16, 128>}]} {
    %c0 = arith.constant 0 : index
    %c0_0 = arith.constant 0 : index
    %c0_1 = arith.constant 0 : index
    %c0_2 = arith.constant 0 : index
    %0 = vector.load %arg2[%c0, %c0_0, %c0_1, %c0_2] : memref<1x18x18x128xbf16, #tpu.memory_space<vmem>>, vector<1x18x18x128xbf16>
    %1 = vector.shape_cast %0 : vector<1x18x18x128xbf16> to vector<18x18x128xbf16>
    %2 = vector.extract_strided_slice %1 {offsets = [0, 0, 0], sizes = [16, 16, 128], strides = [1, 1, 1]} : vector<18x18x128xbf16> to vector<16x16x128xbf16>
    %3 = vector.shape_cast %2 : vector<16x16x128xbf16> to vector<256x128xbf16>
    %4 = vector.extract_strided_slice %1 {offsets = [0, 1, 0], sizes = [16, 16, 128], strides = [1, 1, 1]} : vector<18x18x128xbf16> to vector<16x16x128xbf16>
    %5 = vector.shape_cast %4 : vector<16x16x128xbf16> to vector<256x128xbf16>
    %6 = vector.extract_strided_slice %1 {offsets = [0, 2, 0], sizes = [16, 16, 128], strides = [1, 1, 1]} : vector<18x18x128xbf16> to vector<16x16x128xbf16>
    %7 = vector.shape_cast %6 : vector<16x16x128xbf16> to vector<256x128xbf16>
    %8 = vector.extract_strided_slice %1 {offsets = [1, 0, 0], sizes = [16, 16, 128], strides = [1, 1, 1]} : vector<18x18x128xbf16> to vector<16x16x128xbf16>
    %9 = vector.shape_cast %8 : vector<16x16x128xbf16> to vector<256x128xbf16>
    %10 = vector.extract_strided_slice %1 {offsets = [1, 1, 0], sizes = [16, 16, 128], strides = [1, 1, 1]} : vector<18x18x128xbf16> to vector<16x16x128xbf16>
    %11 = vector.shape_cast %10 : vector<16x16x128xbf16> to vector<256x128xbf16>
    %12 = vector.extract_strided_slice %1 {offsets = [1, 2, 0], sizes = [16, 16, 128], strides = [1, 1, 1]} : vector<18x18x128xbf16> to vector<16x16x128xbf16>
    %13 = vector.shape_cast %12 : vector<16x16x128xbf16> to vector<256x128xbf16>
    %14 = vector.extract_strided_slice %1 {offsets = [2, 0, 0], sizes = [16, 16, 128], strides = [1, 1, 1]} : vector<18x18x128xbf16> to vector<16x16x128xbf16>
    %15 = vector.shape_cast %14 : vector<16x16x128xbf16> to vector<256x128xbf16>
    %16 = vector.extract_strided_slice %1 {offsets = [2, 1, 0], sizes = [16, 16, 128], strides = [1, 1, 1]} : vector<18x18x128xbf16> to vector<16x16x128xbf16>
    %17 = vector.shape_cast %16 : vector<16x16x128xbf16> to vector<256x128xbf16>
    %18 = vector.extract_strided_slice %1 {offsets = [2, 2, 0], sizes = [16, 16, 128], strides = [1, 1, 1]} : vector<18x18x128xbf16> to vector<16x16x128xbf16>
    %19 = vector.shape_cast %18 : vector<16x16x128xbf16> to vector<256x128xbf16>
    %20 = tpu.concatenate %3, %5, %7, %9, %11, %13, %15, %17, %19 in 1 : vector<256x128xbf16>, vector<256x128xbf16>, vector<256x128xbf16>, vector<256x128xbf16>, vector<256x128xbf16>, vector<256x128xbf16>, vector<256x128xbf16>, vector<256x128xbf16>, vector<256x128xbf16> -> vector<256x1152xbf16>
    %c0_3 = arith.constant 0 : index
    %c0_4 = arith.constant 0 : index
    %21 = vector.load %arg3[%c0_3, %c0_4] : memref<1152x128xbf16, #tpu.memory_space<vmem>>, vector<1152x128xbf16>
    %cst = arith.constant dense<0.000000e+00> : vector<256x128xf32>
    %22 = tpu.matmul %20, %21, %cst {dimension_numbers = #tpu.dot_dimension_numbers<[1], [0], [0], [1], [0, 0, 1, 1], [], []>} : vector<256x1152xbf16>, vector<1152x128xbf16>, vector<256x128xf32> -> vector<256x128xf32>
    %c0_5 = arith.constant 0 : index
    %c0_6 = arith.constant 0 : index
    %23 = vector.load %arg4[%c0_5, %c0_6] : memref<1x128xf32, #tpu.memory_space<vmem>>, vector<1x128xf32>
    %24 = vector.broadcast %23 : vector<1x128xf32> to vector<256x128xf32>
    %25 = arith.mulf %22, %24 : vector<256x128xf32>
    %c0_7 = arith.constant 0 : index
    %c0_8 = arith.constant 0 : index
    %26 = vector.load %arg5[%c0_7, %c0_8] : memref<1x128xf32, #tpu.memory_space<vmem>>, vector<1x128xf32>
    %27 = vector.broadcast %26 : vector<1x128xf32> to vector<256x128xf32>
    %28 = arith.addf %25, %27 : vector<256x128xf32>
    %c0_9 = arith.constant 0 : index
    %c0_10 = arith.constant 0 : index
    %c0_11 = arith.constant 0 : index
    %c0_12 = arith.constant 0 : index
    %29 = vector.load %arg6[%c0_9, %c0_10, %c0_11, %c0_12] : memref<1x16x16x128xbf16, #tpu.memory_space<vmem>>, vector<1x16x16x128xbf16>
    %30 = vector.shape_cast %29 : vector<1x16x16x128xbf16> to vector<16x16x128xbf16>
    %31 = vector.shape_cast %30 : vector<16x16x128xbf16> to vector<256x128xbf16>
    %32 = arith.extf %31 : vector<256x128xbf16> to vector<256x128xf32>
    %33 = arith.addf %28, %32 : vector<256x128xf32>
    %cst_13 = arith.constant 0.000000e+00 : f32
    %34 = vector.broadcast %cst_13 : f32 to vector<256x128xf32>
    %35 = arith.maximumf %33, %34 : vector<256x128xf32>
    %36 = vector.shape_cast %35 : vector<256x128xf32> to vector<16x16x128xf32>
    %c0_14 = arith.constant 0 : index
    %c0_15 = arith.constant 0 : index
    %c0_16 = arith.constant 0 : index
    %c0_17 = arith.constant 0 : index
    %37 = vector.load %arg7[%c0_14, %c0_15, %c0_16, %c0_17] : memref<1x16x16x128xf32, #tpu.memory_space<vmem>>, vector<1x16x16x128xf32>
    %38 = vector.shape_cast %37 : vector<1x16x16x128xf32> to vector<16x16x128xf32>
    %39 = vector.shape_cast %36 : vector<16x16x128xf32> to vector<1x16x16x128xf32>
    tpu.vector_store %arg7[%c0_14, %c0_15, %c0_16, %c0_17], %39 {strides = array<i32>} : memref<1x16x16x128xf32, #tpu.memory_space<vmem>>, vector<1x16x16x128xf32>,
    return
  }
  func.func @transform_0(%arg0: i32, %arg1: i32) -> (i32, i32, i32, i32) {
    %c0_i32 = arith.constant 0 : i32
    %c0_i32_0 = arith.constant 0 : i32
    %c0_i32_1 = arith.constant 0 : i32
    %c0_i32_2 = arith.constant 0 : i32
    return %arg0, %c0_i32, %c0_i32_0, %c0_i32_1 : i32, i32, i32, i32
  }
  func.func @transform_1(%arg0: i32, %arg1: i32) -> (i32, i32) {
    %c0_i32 = arith.constant 0 : i32
    %c0_i32_0 = arith.constant 0 : i32
    return %c0_i32, %arg1 : i32, i32
  }
  func.func @transform_2(%arg0: i32, %arg1: i32) -> (i32, i32) {
    %c0_i32 = arith.constant 0 : i32
    %c0_i32_0 = arith.constant 0 : i32
    return %c0_i32, %arg1 : i32, i32
  }
  func.func @transform_3(%arg0: i32, %arg1: i32) -> (i32, i32) {
    %c0_i32 = arith.constant 0 : i32
    %c0_i32_0 = arith.constant 0 : i32
    return %c0_i32, %arg1 : i32, i32
  }
  func.func @transform_4(%arg0: i32, %arg1: i32) -> (i32, i32, i32, i32) {
    %c0_i32 = arith.constant 0 : i32
    %c0_i32_0 = arith.constant 0 : i32
    %c0_i32_1 = arith.constant 0 : i32
    return %arg0, %c0_i32, %c0_i32_0, %arg1 : i32, i32, i32, i32
  }
  func.func @transform_5(%arg0: i32, %arg1: i32) -> (i32, i32, i32, i32) {
    %c0_i32 = arith.constant 0 : i32
    %c0_i32_0 = arith.constant 0 : i32
    %c0_i32_1 = arith.constant 0 : i32
    return %arg0, %c0_i32, %c0_i32_0, %arg1 : i32, i32, i32, i32
  }
}

</mosaic_0001>

<llo_original>
// kernel: basic_block_forward.3
$region0: #{basic_block_forward.3}
  #allocation0 [shape = 'u32[]', space=smem, size = 0x4, offset = 0x4, fixed_abs, tag = 'smem constant byte address 0x4 - core index']
  #allocation1 [shape = 'u32[144,128]{1,0:T(1,128)}', space=vmem, size = 0x12000, scoped, tag = 'internal scratch']
  %s0 = inlined_call_operand.vmem [shape: bf16[2,18,18,128], index: 0, kind: input, shape index: {}]
  %s1 = inlined_call_operand.vmem [shape: bf16[1152,128], index: 1, kind: input, shape index: {}]
  %s2 = inlined_call_operand.vmem [shape: f32[1,128], index: 2, kind: input, shape index: {}]
  %s3 = inlined_call_operand.vmem [shape: f32[1,128], index: 3, kind: input, shape index: {}]
  %s4 = inlined_call_operand.vmem [shape: bf16[2,16,16,128], index: 4, kind: input, shape index: {}]
  %s5 = inlined_call_operand.vmem [shape: f32[2,16,16,128], index: 5, kind: output, shape index: {}]
  %s6 = sld [smem:[#allocation0]]
  $region53: #{basic_block_forward.3} parent=0
    _
  %s8 = ssub.s32 1, %s6
  %s9 = scalar_select 0, %s8, %s6
  loop: start=0, step=1, limit=4
  $region2: #{basic_block_forward.3} parent=0 // loop_pre_header
    _
  $region3: #{basic_block_forward.3} parent=0 // loop_header
    %s11 = sphi 0, %s15
    %p12 = scmp.ge.s32.totalorder %s11, 4
    %s18 = sphi 0, %s30
    %s19 = sphi 0, %s26
    %s20 = sphi 0, %s18
    %s21 = sphi 0, %s19
    %s22 = sphi 0, %s20
    %s23 = sphi 0, %s21
    %s33 = sphi 0, %s35
    %s36 = sphi 0, %s33
    %s37 = sphi 0, %s36
    %s53 = sphi 0, %s37
    %s59 = sphi 0, %s61
    %s62 = sphi 0, %s59
    %s63 = sphi 0, %s62
    %s79 = sphi 0, %s63
    %s85 = sphi 0, %s87
    %s88 = sphi 0, %s85
    %s89 = sphi 0, %s88
    %s105 = sphi 0, %s89
    %s111 = sphi 0, %s113
    %s114 = sphi 0, %s111
    %s115 = sphi 0, %s114
    %s131 = sphi 0, %s115
    %s139 = sphi 0, %s141
    %s142 = sphi 0, %s139
    %s143 = sphi 0, %s142
    %s159 = sphi 0, %s143
    %s167 = sphi 0, %s169
    %s170 = sphi 0, %s167
    %s171 = sphi 0, %s170
    %s187 = sphi 0, %s171
  $region4: #{basic_block_forward.3} parent=0 // loop_header_branch
    %14 = sbr.rel (%p12) target = $region8
  $region5: #{basic_block_forward.3} parent=0 // loop_body
    %s16 = ssub.s32 %s11, 1
    %s17 = ssub.s32 %s11, 2
    %s24 = sadd.s32 1, %s19
    %p25 = scmp.ge.s32.totalorder %s24, 1
    %s26 = scalar_select %p25, 0, %s24
    %s27 = sadd.s32 1, %s18
    %s28 = scalar_select %p25, %s27, %s18
    %p29 = scmp.ge.s32.totalorder %s28, 2
    %s30 = scalar_select %p29, 0, %s28
    %s31 = ssub.s32 %s18, %s30
    %p32 = scmp.eq.s32.totalorder %s31, 0
    %s34 = sadd.s32 %s33, 1
    %s35 = scalar_select %p32, %s33, %s34
    %p38 = pneg %p32
    %p39 = scmp.eq.s32.totalorder %s11, 1
    %p40 = por %p38, %p39
    %p41 = scmp.ne.s32.totalorder %s33, %s36
    %p42 = scmp.eq.s32.totalorder %s11, 0
    %p43 = por %p41, %p42
    %p44 = scmp.ne.s32.totalorder %s33, %s36
    %p45 = scmp.eq.s32.totalorder %s16, 1
    %p46 = por %p44, %p45
    %p47 = scmp.ne.s32.totalorder %s36, %s37
    %p48 = scmp.eq.s32.totalorder %s16, 0
    %p49 = por %p47, %p48
    %p50 = scmp.ne.s32.totalorder %s36, %s37
    %p51 = scmp.eq.s32.totalorder %s17, 1
    %p52 = por %p50, %p51
    %p54 = scmp.ne.s32.totalorder %s37, %s53
    %p55 = scmp.eq.s32.totalorder %s17, 0
    %p56 = por %p54, %p55
    %s57 = ssub.s32 %s19, %s26
    %p58 = scmp.eq.s32.totalorder %s57, 0
    %s60 = sadd.s32 %s59, 1
    %s61 = scalar_select %p58, %s59, %s60
    %p64 = pneg %p58
    %p65 = scmp.eq.s32.totalorder %s11, 1
    %p66 = por %p64, %p65
    %p67 = scmp.ne.s32.totalorder %s59, %s62
    %p68 = scmp.eq.s32.totalorder %s11, 0
    %p69 = por %p67, %p68
    %p70 = scmp.ne.s32.totalorder %s59, %s62
    %p71 = scmp.eq.s32.totalorder %s16, 1
    %p72 = por %p70, %p71
    %p73 = scmp.ne.s32.totalorder %s62, %s63
    %p74 = scmp.eq.s32.totalorder %s16, 0
    %p75 = por %p73, %p74
    %p76 = scmp.ne.s32.totalorder %s62, %s63
    %p77 = scmp.eq.s32.totalorder %s17, 1
    %p78 = por %p76, %p77
    %p80 = scmp.ne.s32.totalorder %s63, %s79
    %p81 = scmp.eq.s32.totalorder %s17, 0
    %p82 = por %p80, %p81
    %s83 = ssub.s32 %s19, %s26
    %p84 = scmp.eq.s32.totalorder %s83, 0
    %s86 = sadd.s32 %s85, 1
    %s87 = scalar_select %p84, %s85, %s86
    %p90 = pneg %p84
    %p91 = scmp.eq.s32.totalorder %s11, 1
    %p92 = por %p90, %p91
    %p93 = scmp.ne.s32.totalorder %s85, %s88
    %p94 = scmp.eq.s32.totalorder %s11, 0
    %p95 = por %p93, %p94
    %p96 = scmp.ne.s32.totalorder %s85, %s88
    %p97 = scmp.eq.s32.totalorder %s16, 1
    %p98 = por %p96, %p97
    %p99 = scmp.ne.s32.totalorder %s88, %s89
    %p100 = scmp.eq.s32.totalorder %s16, 0
    %p101 = por %p99, %p100
    %p102 = scmp.ne.s32.totalorder %s88, %s89
    %p103 = scmp.eq.s32.totalorder %s17, 1
    %p104 = por %p102, %p103
    %p106 = scmp.ne.s32.totalorder %s89, %s105
    %p107 = scmp.eq.s32.totalorder %s17, 0
    %p108 = por %p106, %p107
    %s109 = ssub.s32 %s19, %s26
    %p110 = scmp.eq.s32.totalorder %s109, 0
    %s112 = sadd.s32 %s111, 1
    %s113 = scalar_select %p110, %s111, %s112
    %p116 = pneg %p110
    %p117 = scmp.eq.s32.totalorder %s11, 1
    %p118 = por %p116, %p117
    %p119 = scmp.ne.s32.totalorder %s111, %s114
    %p120 = scmp.eq.s32.totalorder %s11, 0
    %p121 = por %p119, %p120
    %p122 = scmp.ne.s32.totalorder %s111, %s114
    %p123 = scmp.eq.s32.totalorder %s16, 1
    %p124 = por %p122, %p123
    %p125 = scmp.ne.s32.totalorder %s114, %s115
    %p126 = scmp.eq.s32.totalorder %s16, 0
    %p127 = por %p125, %p126
    %p128 = scmp.ne.s32.totalorder %s114, %s115
    %p129 = scmp.eq.s32.totalorder %s17, 1
    %p130 = por %p128, %p129
    %p132 = scmp.ne.s32.totalorder %s115, %s131
    %p133 = scmp.eq.s32.totalorder %s17, 0
    %p134 = por %p132, %p133
    %s135 = ssub.s32 %s18, %s30
    %s136 = ssub.s32 %s19, %s26
    %s137 = sor.u32 %s135, %s136
    %p138 = scmp.eq.s32.totalorder %s137, 0
    %s140 = sadd.s32 %s139, 1
    %s141 = scalar_select %p138, %s139, %s140
    %p144 = pneg %p138
    %p145 = scmp.eq.s32.totalorder %s11, 1
    %p146 = por %p144, %p145
    %p147 = scmp.ne.s32.totalorder %s139, %s142
    %p148 = scmp.eq.s32.totalorder %s11, 0
    %p149 = por %p147, %p148
    %p150 = scmp.ne.s32.totalorder %s139, %s142
    %p151 = scmp.eq.s32.totalorder %s16, 1
    %p152 = por %p150, %p151
    %p153 = scmp.ne.s32.totalorder %s142, %s143
    %p154 = scmp.eq.s32.totalorder %s16, 0
    %p155 = por %p153, %p154
    %p156 = scmp.ne.s32.totalorder %s142, %s143
    %p157 = scmp.eq.s32.totalorder %s17, 1
    %p158 = por %p156, %p157
    %p160 = scmp.ne.s32.totalorder %s143, %s159
    %p161 = scmp.eq.s32.totalorder %s17, 0
    %p162 = por %p160, %p161
    %s163 = ssub.s32 %s18, %s30
    %s164 = ssub.s32 %s19, %s26
    %s165 = sor.u32 %s163, %s164
    %p166 = scmp.eq.s32.totalorder %s165, 0
    %s168 = sadd.s32 %s167, 1
    %s169 = scalar_select %p166, %s167, %s168
    %p172 = pneg %p166
    %p173 = scmp.eq.s32.totalorder %s11, 1
    %p174 = por %p172, %p173
    %p175 = scmp.ne.s32.totalorder %s167, %s170
    %p176 = scmp.eq.s32.totalorder %s11, 0
    %p177 = por %p175, %p176
    %p178 = scmp.ne.s32.totalorder %s167, %s170
    %p179 = scmp.eq.s32.totalorder %s16, 1
    %p180 = por %p178, %p179
    %p181 = scmp.ne.s32.totalorder %s170, %s171
    %p182 = scmp.eq.s32.totalorder %s16, 0
    %p183 = por %p181, %p182
    %p184 = scmp.ne.s32.totalorder %s170, %s171
    %p185 = scmp.eq.s32.totalorder %s17, 1
    %p186 = por %p184, %p185
    %p188 = scmp.ne.s32.totalorder %s171, %s187
    %p189 = scmp.eq.s32.totalorder %s17, 0
    %p190 = por %p188, %p189
    %p191 = scmp.le.s32.totalorder 1, %s11
    %p192 = scmp.lt.s32.totalorder %s11, 3
    %p193 = pnand %p191, %p192
    %p194 = pneg %p193
    // Predicated region
    $region9: #{basic_block_forward.3} parent=5 // pred_check
      _
    $region10: #{basic_block_forward.3} parent=5 // pred_check_branch
      %196 = sbr.rel (%p193) target = $region12
    $region11: #{basic_block_forward.3} parent=5 // pred_region
      %s197 = ssub.s32 %s11, 1
      // Predicated region
      $region13: #{basic_block_forward.3} parent=11 // pred_check
        %p198 = pneg %p75
      $region14: #{basic_block_forward.3} parent=11 // pred_check_branch
        %200 = sbr.rel (%p198) target = $region16
      $region15: #{basic_block_forward.3} parent=11 // pred_region
        %p201 = scmp.lt.s32.totalorder %s21, 0
        %s202 = scalar_select %p201, %s21, 0
        %s203 = smul.addr %s202, 4
        %s204 = scalar_lea.vmem %s1, %s203
      $region16: #{basic_block_forward.3} parent=11 // pred_fallthru
        _
      // Predicated region
      $region17: #{basic_block_forward.3} parent=11 // pred_check
        %p205 = pneg %p101
      $region18: #{basic_block_forward.3} parent=11 // pred_check_branch
        %207 = sbr.rel (%p205) target = $region20
      $region19: #{basic_block_forward.3} parent=11 // pred_region
        %p208 = scmp.lt.s32.totalorder %s21, 0
        %s209 = scalar_select %p208, %s21, 0
        %s210 = scalar_lea.vmem %s2, %s209
      $region20: #{basic_block_forward.3} parent=11 // pred_fallthru
        _
      // Predicated region
      $region21: #{basic_block_forward.3} parent=11 // pred_check
        %p211 = pneg %p127
      $region22: #{basic_block_forward.3} parent=11 // pred_check_branch
        %213 = sbr.rel (%p211) target = $region24
      $region23: #{basic_block_forward.3} parent=11 // pred_region
        %p214 = scmp.lt.s32.totalorder %s21, 0
        %s215 = scalar_select %p214, %s21, 0
        %s216 = scalar_lea.vmem %s3, %s215
      $region24: #{basic_block_forward.3} parent=11 // pred_fallthru
        _
    $region12: #{basic_block_forward.3} parent=5 // pred_fallthru
      _
    %p217 = scmp.lt.s32.totalorder %s11, 2
    // Predicated region
    $region25: #{basic_block_forward.3} parent=5 // pred_check
      %p218 = pneg %p217
    $region26: #{basic_block_forward.3} parent=5 // pred_check_branch
      %220 = sbr.rel (%p218) target = $region28
    $region27: #{basic_block_forward.3} parent=5 // pred_region
      // Predicated region
      $region29: #{basic_block_forward.3} parent=27 // pred_check
        %p221 = pneg %p43
      $region30: #{basic_block_forward.3} parent=27 // pred_check_branch
        %223 = sbr.rel (%p221) target = $region32
      $region31: #{basic_block_forward.3} parent=27 // pred_region
        %p224 = scmp.lt.s32.totalorder %s18, 1
        %s225 = scalar_select %p224, %s18, 1
        %s226 = smul.addr %s225, 54
        %s227 = smul.addr %s226, 4
        %s228 = scalar_lea.vmem %s0, %s227
      $region32: #{basic_block_forward.3} parent=27 // pred_fallthru
        _
      // Predicated region
      $region33: #{basic_block_forward.3} parent=27 // pred_check
        %p229 = pneg %p149
      $region34: #{basic_block_forward.3} parent=27 // pred_check_branch
        %231 = sbr.rel (%p229) target = $region36
      $region35: #{basic_block_forward.3} parent=27 // pred_region
        %p232 = scmp.lt.s32.totalorder %s18, 1
        %s233 = scalar_select %p232, %s18, 1
        %p234 = scmp.lt.s32.totalorder %s19, 0
        %s235 = scalar_select %p234, %s19, 0
        %s236 = smul.addr %s233, 32
        %s237 = sadd.s32 %s235, %s236
        %s238 = smul.addr %s237, 4
        %s239 = scalar_lea.vmem %s4, %s238
      $region36: #{basic_block_forward.3} parent=27 // pred_fallthru
        _
    $region28: #{basic_block_forward.3} parent=5 // pred_fallthru
      _
    %p240 = scmp.le.s32.totalorder 1, %s11
    %p241 = scmp.lt.s32.totalorder %s11, 3
    %p242 = pnand %p240, %p241
    %p243 = pneg %p242
    // Predicated region
    $region37: #{basic_block_forward.3} parent=5 // pred_check
      _
    $region38: #{basic_block_forward.3} parent=5 // pred_check_branch
      %245 = sbr.rel (%p242) target = $region40
    $region39: #{basic_block_forward.3} parent=5 // pred_region
      %s246 = ssub.s32 %s11, 1
      %p247 = scmp.lt.s32.totalorder %s20, 1
      %s248 = scalar_select %p247, %s20, 1
      %s249 = smul.addr %s248, 54
      %s250 = smul.addr %s249, 4
      %s251 = scalar_lea.vmem %s0, %s250
      %p252 = pneg %p49
      %p253 = pneg %p46
      %p254 = scmp.lt.s32.totalorder %s21, 0
      %s255 = scalar_select %p254, %s21, 0
      %s256 = smul.addr %s255, 4
      %s257 = scalar_lea.vmem %s1, %s256
      %p258 = pneg %p75
      %p259 = pneg %p72
      %p260 = scmp.lt.s32.totalorder %s21, 0
      %s261 = scalar_select %p260, %s21, 0
      %s262 = scalar_lea.vmem %s2, %s261
      %p263 = pneg %p101
      %p264 = pneg %p98
      %p265 = scmp.lt.s32.totalorder %s21, 0
      %s266 = scalar_select %p265, %s21, 0
      %s267 = scalar_lea.vmem %s3, %s266
      %p268 = pneg %p127
      %p269 = pneg %p124
      %p270 = scmp.lt.s32.totalorder %s20, 1
      %s271 = scalar_select %p270, %s20, 1
      %p272 = scmp.lt.s32.totalorder %s21, 0
      %s273 = scalar_select %p272, %s21, 0
      %s274 = smul.addr %s271, 32
      %s275 = sadd.s32 %s273, %s274
      %s276 = smul.addr %s275, 4
      %s277 = scalar_lea.vmem %s4, %s276
      %p278 = pneg %p155
      %p279 = pneg %p152
      %p280 = pneg %p183
      %p281 = pneg %p180
      %p282 = scmp.lt.s32.totalorder %s20, 1
      %s283 = scalar_select %p282, %s20, 1
      %p284 = scmp.lt.s32.totalorder %s21, 0
      %s285 = scalar_select %p284, %s21, 0
      %s286 = smul.addr %s283, 32
      %s287 = sadd.s32 %s285, %s286
      %s288 = smul.addr %s287, 8
      %s289 = scalar_lea.vmem %s5, %s288
      %p290 = scmp.lt.s32.totalorder %s20, 1
      %s291 = scalar_select %p290, %s20, 1
      %s292 = smul.addr %s291, 54
      %s293 = smul.addr %s292, 4
      %s294 = scalar_lea.vmem %s0, %s293
      %p295 = scmp.lt.s32.totalorder %s21, 0
      %s296 = scalar_select %p295, %s21, 0
      %s297 = smul.addr %s296, 4
      %s298 = scalar_lea.vmem %s1, %s297
      %p299 = scmp.lt.s32.totalorder %s21, 0
      %s300 = scalar_select %p299, %s21, 0
      %s301 = scalar_lea.vmem %s2, %s300
      %p302 = scmp.lt.s32.totalorder %s21, 0
      %s303 = scalar_select %p302, %s21, 0
      %s304 = scalar_lea.vmem %s3, %s303
      %p305 = scmp.lt.s32.totalorder %s20, 1
      %s306 = scalar_select %p305, %s20, 1
      %p307 = scmp.lt.s32.totalorder %s21, 0
      %s308 = scalar_select %p307, %s21, 0
      %s309 = smul.addr %s306, 32
      %s310 = sadd.s32 %s308, %s309
      %s311 = smul.addr %s310, 4
      %s312 = scalar_lea.vmem %s4, %s311
      %p313 = scmp.lt.s32.totalorder %s20, 1
      %s314 = scalar_select %p313, %s20, 1
      %p315 = scmp.lt.s32.totalorder %s21, 0
      %s316 = scalar_select %p315, %s21, 0
      %s317 = smul.addr %s314, 32
      %s318 = sadd.s32 %s316, %s317
      %s319 = smul.addr %s318, 8
      %s320 = scalar_lea.vmem %s5, %s319
      %v322 = vld [vmem:[%s294] sm:$0xf]
      %v323 = vld [vmem:[%s294 + $0x4] sm:$0xf]
      %v324 = vld [vmem:[%s294 + $0x8] sm:$0x1]
      %v325 = vld [vmem:[%s294 + $0xc] sm:$0xf]
      %v326 = vld [vmem:[%s294 + $0x10] sm:$0xf]
      %v327 = vld [vmem:[%s294 + $0x14] sm:$0x1]
      %v328 = vld [vmem:[%s294 + $0x18] sm:$0xf]
      %v329 = vld [vmem:[%s294 + $0x1c] sm:$0xf]
      %v330 = vld [vmem:[%s294 + $0x20] sm:$0x1]
      %v331 = vld [vmem:[%s294 + $0x24] sm:$0xf]
      %v332 = vld [vmem:[%s294 + $0x28] sm:$0xf]
      %v333 = vld [vmem:[%s294 + $0x2c] sm:$0x1]
      %v334 = vld [vmem:[%s294 + $0x30] sm:$0xf]
      %v335 = vld [vmem:[%s294 + $0x34] sm:$0xf]
      %v336 = vld [vmem:[%s294 + $0x38] sm:$0x1]
      %v337 = vld [vmem:[%s294 + $0x3c] sm:$0xf]
      %v338 = vld [vmem:[%s294 + $0x40] sm:$0xf]
      %v339 = vld [vmem:[%s294 + $0x44] sm:$0x1]
      %v340 = vld [vmem:[%s294 + $0x48] sm:$0xf]
      %v341 = vld [vmem:[%s294 + $0x4c] sm:$0xf]
      %v342 = vld [vmem:[%s294 + $0x50] sm:$0x1]
      %v343 = vld [vmem:[%s294 + $0x54] sm:$0xf]
      %v344 = vld [vmem:[%s294 + $0x58] sm:$0xf]
      %v345 = vld [vmem:[%s294 + $0x5c] sm:$0x1]
      %v346 = vld [vmem:[%s294 + $0x60] sm:$0xf]
      %v347 = vld [vmem:[%s294 + $0x64] sm:$0xf]
      %v348 = vld [vmem:[%s294 + $0x68] sm:$0x1]
      %v349 = vld [vmem:[%s294 + $0x6c] sm:$0xf]
      %v350 = vld [vmem:[%s294 + $0x70] sm:$0xf]
      %v351 = vld [vmem:[%s294 + $0x74] sm:$0x1]
      %v352 = vld [vmem:[%s294 + $0x78] sm:$0xf]
      %v353 = vld [vmem:[%s294 + $0x7c] sm:$0xf]
      %v354 = vld [vmem:[%s294 + $0x80] sm:$0x1]
      %v355 = vld [vmem:[%s294 + $0x84] sm:$0xf]
      %v356 = vld [vmem:[%s294 + $0x88] sm:$0xf]
      %v357 = vld [vmem:[%s294 + $0x8c] sm:$0x1]
      %v358 = vld [vmem:[%s294 + $0x90] sm:$0xf]
      %v359 = vld [vmem:[%s294 + $0x94] sm:$0xf]
      %v360 = vld [vmem:[%s294 + $0x98] sm:$0x1]
      %v361 = vld [vmem:[%s294 + $0x9c] sm:$0xf]
      %v362 = vld [vmem:[%s294 + $0xa0] sm:$0xf]
      %v363 = vld [vmem:[%s294 + $0xa4] sm:$0x1]
      %v364 = vld [vmem:[%s294 + $0xa8] sm:$0xf]
      %v365 = vld [vmem:[%s294 + $0xac] sm:$0xf]
      %v366 = vld [vmem:[%s294 + $0xb0] sm:$0x1]
      %v367 = vld [vmem:[%s294 + $0xb4] sm:$0xf]
      %v368 = vld [vmem:[%s294 + $0xb8] sm:$0xf]
      %v369 = vld [vmem:[%s294 + $0xbc] sm:$0x1]
      %v370 = vld [vmem:[%s294 + $0xc0] sm:$0xf]
      %v371 = vld [vmem:[%s294 + $0xc4] sm:$0xf]
      %v372 = vld [vmem:[%s294 + $0xc8] sm:$0x1]
      %v373 = vld [vmem:[%s294 + $0xcc] sm:$0xf]
      %v374 = vld [vmem:[%s294 + $0xd0] sm:$0xf]
      %v375 = vld [vmem:[%s294 + $0xd4] sm:$0x1]
      %vm376 = vsmask.f32 3328
      %vm377 = vsmask.f32 7440
      %vm378 = vmor %vm376, %vm377
      %v380 = vshrl.u32 %v322, 16
      %v382 = vrot.slane %v380, 4
      %v383 = vshll.u32 %v322, 16
      %v385 = vrot.slane %v383, 5
      %v386 = vor.u32 %v382, %v385
      %v387 = vrot.slane %v386, 4
      %v389 = vshll.u32 %v323, 16
      %v391 = vrot.slane %v389, 5
      %v392 = vsel %vm378, %v387, %v391
      %v393 = vshrl.u32 %v323, 16
      %v395 = vrot.slane %v393, 4
      %v396 = vor.u32 %v395, %v391
      %v397 = vrot.slane %v396, 4
      %v399 = vshll.u32 %v324, 16
      %v401 = vrot.slane %v399, 5
      %v402 = vsel %vm378, %v397, %v401
      %v404 = vshrl.u32 %v325, 16
      %v406 = vrot.slane %v404, 4
      %v407 = vshll.u32 %v325, 16
      %v409 = vrot.slane %v407, 5
      %v410 = vor.u32 %v406, %v409
      %v411 = vrot.slane %v410, 4
      %v413 = vshll.u32 %v326, 16
      %v415 = vrot.slane %v413, 5
      %v416 = vsel %vm378, %v411, %v415
      %v417 = vshrl.u32 %v326, 16
      %v419 = vrot.slane %v417, 4
      %v420 = vor.u32 %v419, %v415
      %v421 = vrot.slane %v420, 4
      %v423 = vshll.u32 %v327, 16
      %v425 = vrot.slane %v423, 5
      %v426 = vsel %vm378, %v421, %v425
      %v428 = vshrl.u32 %v328, 16
      %v430 = vrot.slane %v428, 4
      %v431 = vshll.u32 %v328, 16
      %v433 = vrot.slane %v431, 5
      %v434 = vor.u32 %v430, %v433
      %v435 = vrot.slane %v434, 4
      %v437 = vshll.u32 %v329, 16
      %v439 = vrot.slane %v437, 5
      %v440 = vsel %vm378, %v435, %v439
      %v441 = vshrl.u32 %v329, 16
      %v443 = vrot.slane %v441, 4
      %v444 = vor.u32 %v443, %v439
      %v445 = vrot.slane %v444, 4
      %v447 = vshll.u32 %v330, 16
      %v449 = vrot.slane %v447, 5
      %v450 = vsel %vm378, %v445, %v449
      %v452 = vshrl.u32 %v331, 16
      %v454 = vrot.slane %v452, 4
      %v455 = vshll.u32 %v331, 16
      %v457 = vrot.slane %v455, 5
      %v458 = vor.u32 %v454, %v457
      %v459 = vrot.slane %v458, 4
      %v461 = vshll.u32 %v332, 16
      %v463 = vrot.slane %v461, 5
      %v464 = vsel %vm378, %v459, %v463
      %v465 = vshrl.u32 %v332, 16
      %v467 = vrot.slane %v465, 4
      %v468 = vor.u32 %v467, %v463
      %v469 = vrot.slane %v468, 4
      %v471 = vshll.u32 %v333, 16
      %v473 = vrot.slane %v471, 5
      %v474 = vsel %vm378, %v469, %v473
      %v476 = vshrl.u32 %v334, 16
      %v478 = vrot.slane %v476, 4
      %v479 = vshll.u32 %v334, 16
      %v481 = vrot.slane %v479, 5
      %v482 = vor.u32 %v478, %v481
      %v483 = vrot.slane %v482, 4
      %v485 = vshll.u32 %v335, 16
      %v487 = vrot.slane %v485, 5
      %v488 = vsel %vm378, %v483, %v487
      %v489 = vshrl.u32 %v335, 16
      %v491 = vrot.slane %v489, 4
      %v492 = vor.u32 %v491, %v487
      %v493 = vrot.slane %v492, 4
      %v495 = vshll.u32 %v336, 16
      %v497 = vrot.slane %v495, 5
      %v498 = vsel %vm378, %v493, %v497
      %v500 = vshrl.u32 %v337, 16
      %v502 = vrot.slane %v500, 4
      %v503 = vshll.u32 %v337, 16
      %v505 = vrot.slane %v503, 5
      %v506 = vor.u32 %v502, %v505
      %v507 = vrot.slane %v506, 4
      %v509 = vshll.u32 %v338, 16
      %v511 = vrot.slane %v509, 5
      %v512 = vsel %vm378, %v507, %v511
      %v513 = vshrl.u32 %v338, 16
      %v515 = vrot.slane %v513, 4
      %v516 = vor.u32 %v515, %v511
      %v517 = vrot.slane %v516, 4
      %v519 = vshll.u32 %v339, 16
      %v521 = vrot.slane %v519, 5
      %v522 = vsel %vm378, %v517, %v521
      %v524 = vshrl.u32 %v340, 16
      %v526 = vrot.slane %v524, 4
      %v527 = vshll.u32 %v340, 16
      %v529 = vrot.slane %v527, 5
      %v530 = vor.u32 %v526, %v529
      %v531 = vrot.slane %v530, 4
      %v533 = vshll.u32 %v341, 16
      %v535 = vrot.slane %v533, 5
      %v536 = vsel %vm378, %v531, %v535
      %v537 = vshrl.u32 %v341, 16
      %v539 = vrot.slane %v537, 4
      %v540 = vor.u32 %v539, %v535
      %v541 = vrot.slane %v540, 4
      %v543 = vshll.u32 %v342, 16
      %v545 = vrot.slane %v543, 5
      %v546 = vsel %vm378, %v541, %v545
      %v548 = vshrl.u32 %v343, 16
      %v550 = vrot.slane %v548, 4
      %v551 = vshll.u32 %v343, 16
      %v553 = vrot.slane %v551, 5
      %v554 = vor.u32 %v550, %v553
      %v555 = vrot.slane %v554, 4
      %v557 = vshll.u32 %v344, 16
      %v559 = vrot.slane %v557, 5
      %v560 = vsel %vm378, %v555, %v559
      %v561 = vshrl.u32 %v344, 16
      %v563 = vrot.slane %v561, 4
      %v564 = vor.u32 %v563, %v559
      %v565 = vrot.slane %v564, 4
      %v567 = vshll.u32 %v345, 16
      %v569 = vrot.slane %v567, 5
      %v570 = vsel %vm378, %v565, %v569
      %v572 = vshrl.u32 %v346, 16
      %v574 = vrot.slane %v572, 4
      %v575 = vshll.u32 %v346, 16
      %v577 = vrot.slane %v575, 5
      %v578 = vor.u32 %v574, %v577
      %v579 = vrot.slane %v578, 4
      %v581 = vshll.u32 %v347, 16
      %v583 = vrot.slane %v581, 5
      %v584 = vsel %vm378, %v579, %v583
      %v585 = vshrl.u32 %v347, 16
      %v587 = vrot.slane %v585, 4
      %v588 = vor.u32 %v587, %v583
      %v589 = vrot.slane %v588, 4
      %v591 = vshll.u32 %v348, 16
      %v593 = vrot.slane %v591, 5
      %v594 = vsel %vm378, %v589, %v593
      %v596 = vshrl.u32 %v349, 16
      %v598 = vrot.slane %v596, 4
      %v599 = vshll.u32 %v349, 16
      %v601 = vrot.slane %v599, 5
      %v602 = vor.u32 %v598, %v601
      %v603 = vrot.slane %v602, 4
      %v605 = vshll.u32 %v350, 16
      %v607 = vrot.slane %v605, 5
      %v608 = vsel %vm378, %v603, %v607
      %v609 = vshrl.u32 %v350, 16
      %v611 = vrot.slane %v609, 4
      %v612 = vor.u32 %v611, %v607
      %v613 = vrot.slane %v612, 4
      %v615 = vshll.u32 %v351, 16
      %v617 = vrot.slane %v615, 5
      %v618 = vsel %vm378, %v613, %v617
      %v620 = vshrl.u32 %v352, 16
      %v622 = vrot.slane %v620, 4
      %v623 = vshll.u32 %v352, 16
      %v625 = vrot.slane %v623, 5
      %v626 = vor.u32 %v622, %v625
      %v627 = vrot.slane %v626, 4
      %v629 = vshll.u32 %v353, 16
      %v631 = vrot.slane %v629, 5
      %v632 = vsel %vm378, %v627, %v631
      %v633 = vshrl.u32 %v353, 16
      %v635 = vrot.slane %v633, 4
      %v636 = vor.u32 %v635, %v631
      %v637 = vrot.slane %v636, 4
      %v639 = vshll.u32 %v354, 16
      %v641 = vrot.slane %v639, 5
      %v642 = vsel %vm378, %v637, %v641
      %v644 = vshrl.u32 %v355, 16
      %v646 = vrot.slane %v644, 4
      %v647 = vshll.u32 %v355, 16
      %v649 = vrot.slane %v647, 5
      %v650 = vor.u32 %v646, %v649
      %v651 = vrot.slane %v650, 4
      %v653 = vshll.u32 %v356, 16
      %v655 = vrot.slane %v653, 5
      %v656 = vsel %vm378, %v651, %v655
      %v657 = vshrl.u32 %v356, 16
      %v659 = vrot.slane %v657, 4
      %v660 = vor.u32 %v659, %v655
      %v661 = vrot.slane %v660, 4
      %v663 = vshll.u32 %v357, 16
      %v665 = vrot.slane %v663, 5
      %v666 = vsel %vm378, %v661, %v665
      %v668 = vshrl.u32 %v358, 16
      %v670 = vrot.slane %v668, 4
      %v671 = vshll.u32 %v358, 16
      %v673 = vrot.slane %v671, 5
      %v674 = vor.u32 %v670, %v673
      %v675 = vrot.slane %v674, 4
      %v677 = vshll.u32 %v359, 16
      %v679 = vrot.slane %v677, 5
      %v680 = vsel %vm378, %v675, %v679
      %v681 = vshrl.u32 %v359, 16
      %v683 = vrot.slane %v681, 4
      %v684 = vor.u32 %v683, %v679
      %v685 = vrot.slane %v684, 4
      %v687 = vshll.u32 %v360, 16
      %v689 = vrot.slane %v687, 5
      %v690 = vsel %vm378, %v685, %v689
      %v692 = vshrl.u32 %v361, 16
      %v694 = vrot.slane %v692, 4
      %v695 = vshll.u32 %v361, 16
      %v697 = vrot.slane %v695, 5
      %v698 = vor.u32 %v694, %v697
      %v699 = vrot.slane %v698, 4
      %v701 = vshll.u32 %v362, 16
      %v703 = vrot.slane %v701, 5
      %v704 = vsel %vm378, %v699, %v703
      %v705 = vshrl.u32 %v362, 16
      %v707 = vrot.slane %v705, 4
      %v708 = vor.u32 %v707, %v703
      %v709 = vrot.slane %v708, 4
      %v711 = vshll.u32 %v363, 16
      %v713 = vrot.slane %v711, 5
      %v714 = vsel %vm378, %v709, %v713
      %v716 = vshrl.u32 %v364, 16
      %v718 = vrot.slane %v716, 4
      %v719 = vshll.u32 %v364, 16
      %v721 = vrot.slane %v719, 5
      %v722 = vor.u32 %v718, %v721
      %v723 = vrot.slane %v722, 4
      %v725 = vshll.u32 %v365, 16
      %v727 = vrot.slane %v725, 5
      %v728 = vsel %vm378, %v723, %v727
      %v729 = vshrl.u32 %v365, 16
      %v731 = vrot.slane %v729, 4
      %v732 = vor.u32 %v731, %v727
      %v733 = vrot.slane %v732, 4
      %v735 = vshll.u32 %v366, 16
      %v737 = vrot.slane %v735, 5
      %v738 = vsel %vm378, %v733, %v737
      %v740 = vshrl.u32 %v367, 16
      %v742 = vrot.slane %v740, 4
      %v743 = vshll.u32 %v367, 16
      %v745 = vrot.slane %v743, 5
      %v746 = vor.u32 %v742, %v745
      %v747 = vrot.slane %v746, 4
      %v749 = vshll.u32 %v368, 16
      %v751 = vrot.slane %v749, 5
      %v752 = vsel %vm378, %v747, %v751
      %v753 = vshrl.u32 %v368, 16
      %v755 = vrot.slane %v753, 4
      %v756 = vor.u32 %v755, %v751
      %v757 = vrot.slane %v756, 4
      %v759 = vshll.u32 %v369, 16
      %v761 = vrot.slane %v759, 5
      %v762 = vsel %vm378, %v757, %v761
      %vm811 = vcmask 1042432
      %vm812 = vcmask 1046532
      %vm813 = vmor %vm811, %vm812
      %v814 = vrot.slane %v322, 5
      %v815 = vrot.slane %v814, 4
      %v816 = vrot.slane %v323, 5
      %v817 = vsel %vm813, %v815, %v816
      %v818 = vrot.slane %v816, 4
      %v819 = vrot.slane %v324, 5
      %v820 = vsel %vm813, %v818, %v819
      %v821 = vrot.slane %v325, 5
      %v822 = vrot.slane %v821, 4
      %v823 = vrot.slane %v326, 5
      %v824 = vsel %vm813, %v822, %v823
      %v825 = vrot.slane %v823, 4
      %v826 = vrot.slane %v327, 5
      %v827 = vsel %vm813, %v825, %v826
      %v828 = vrot.slane %v328, 5
      %v829 = vrot.slane %v828, 4
      %v830 = vrot.slane %v329, 5
      %v831 = vsel %vm813, %v829, %v830
      %v832 = vrot.slane %v830, 4
      %v833 = vrot.slane %v330, 5
      %v834 = vsel %vm813, %v832, %v833
      %v835 = vrot.slane %v331, 5
      %v836 = vrot.slane %v835, 4
      %v837 = vrot.slane %v332, 5
      %v838 = vsel %vm813, %v836, %v837
      %v839 = vrot.slane %v837, 4
      %v840 = vrot.slane %v333, 5
      %v841 = vsel %vm813, %v839, %v840
      %v842 = vrot.slane %v334, 5
      %v843 = vrot.slane %v842, 4
      %v844 = vrot.slane %v335, 5
      %v845 = vsel %vm813, %v843, %v844
      %v846 = vrot.slane %v844, 4
      %v847 = vrot.slane %v336, 5
      %v848 = vsel %vm813, %v846, %v847
      %v849 = vrot.slane %v337, 5
      %v850 = vrot.slane %v849, 4
      %v851 = vrot.slane %v338, 5
      %v852 = vsel %vm813, %v850, %v851
      %v853 = vrot.slane %v851, 4
      %v854 = vrot.slane %v339, 5
      %v855 = vsel %vm813, %v853, %v854
      %v856 = vrot.slane %v340, 5
      %v857 = vrot.slane %v856, 4
      %v858 = vrot.slane %v341, 5
      %v859 = vsel %vm813, %v857, %v858
      %v860 = vrot.slane %v858, 4
      %v861 = vrot.slane %v342, 5
      %v862 = vsel %vm813, %v860, %v861
      %v863 = vrot.slane %v343, 5
      %v864 = vrot.slane %v863, 4
      %v865 = vrot.slane %v344, 5
      %v866 = vsel %vm813, %v864, %v865
      %v867 = vrot.slane %v865, 4
      %v868 = vrot.slane %v345, 5
      %v869 = vsel %vm813, %v867, %v868
      %v870 = vrot.slane %v346, 5
      %v871 = vrot.slane %v870, 4
      %v872 = vrot.slane %v347, 5
      %v873 = vsel %vm813, %v871, %v872
      %v874 = vrot.slane %v872, 4
      %v875 = vrot.slane %v348, 5
      %v876 = vsel %vm813, %v874, %v875
      %v877 = vrot.slane %v349, 5
      %v878 = vrot.slane %v877, 4
      %v879 = vrot.slane %v350, 5
      %v880 = vsel %vm813, %v878, %v879
      %v881 = vrot.slane %v879, 4
      %v882 = vrot.slane %v351, 5
      %v883 = vsel %vm813, %v881, %v882
      %v884 = vrot.slane %v352, 5
      %v885 = vrot.slane %v884, 4
      %v886 = vrot.slane %v353, 5
      %v887 = vsel %vm813, %v885, %v886
      %v888 = vrot.slane %v886, 4
      %v889 = vrot.slane %v354, 5
      %v890 = vsel %vm813, %v888, %v889
      %v891 = vrot.slane %v355, 5
      %v892 = vrot.slane %v891, 4
      %v893 = vrot.slane %v356, 5
      %v894 = vsel %vm813, %v892, %v893
      %v895 = vrot.slane %v893, 4
      %v896 = vrot.slane %v357, 5
      %v897 = vsel %vm813, %v895, %v896
      %v898 = vrot.slane %v358, 5
      %v899 = vrot.slane %v898, 4
      %v900 = vrot.slane %v359, 5
      %v901 = vsel %vm813, %v899, %v900
      %v902 = vrot.slane %v900, 4
      %v903 = vrot.slane %v360, 5
      %v904 = vsel %vm813, %v902, %v903
      %v905 = vrot.slane %v361, 5
      %v906 = vrot.slane %v905, 4
      %v907 = vrot.slane %v362, 5
      %v908 = vsel %vm813, %v906, %v907
      %v909 = vrot.slane %v907, 4
      %v910 = vrot.slane %v363, 5
      %v911 = vsel %vm813, %v909, %v910
      %v912 = vrot.slane %v364, 5
      %v913 = vrot.slane %v912, 4
      %v914 = vrot.slane %v365, 5
      %v915 = vsel %vm813, %v913, %v914
      %v916 = vrot.slane %v914, 4
      %v917 = vrot.slane %v366, 5
      %v918 = vsel %vm813, %v916, %v917
      %v919 = vrot.slane %v367, 5
      %v920 = vrot.slane %v919, 4
      %v921 = vrot.slane %v368, 5
      %v922 = vsel %vm813, %v920, %v921
      %v923 = vrot.slane %v921, 4
      %v924 = vrot.slane %v369, 5
      %v925 = vsel %vm813, %v923, %v924
      %v927 = vshrl.u32 %v370, 16
      %v929 = vrot.slane %v927, 4
      %v930 = vshll.u32 %v370, 16
      %v932 = vrot.slane %v930, 5
      %v933 = vor.u32 %v929, %v932
      %v934 = vrot.slane %v933, 4
      %v936 = vshll.u32 %v371, 16
      %v938 = vrot.slane %v936, 5
      %v939 = vsel %vm378, %v934, %v938
      %v940 = vshrl.u32 %v371, 16
      %v942 = vrot.slane %v940, 4
      %v943 = vor.u32 %v942, %v938
      %v944 = vrot.slane %v943, 4
      %v946 = vshll.u32 %v372, 16
      %v948 = vrot.slane %v946, 5
      %v949 = vsel %vm378, %v944, %v948
      %v953 = vrot.slane %v370, 5
      %v954 = vrot.slane %v953, 4
      %v955 = vrot.slane %v371, 5
      %v956 = vsel %vm813, %v954, %v955
      %v957 = vrot.slane %v955, 4
      %v958 = vrot.slane %v372, 5
      %v959 = vsel %vm813, %v957, %v958
      %v961 = vshrl.u32 %v373, 16
      %v963 = vrot.slane %v961, 4
      %v964 = vshll.u32 %v373, 16
      %v966 = vrot.slane %v964, 5
      %v967 = vor.u32 %v963, %v966
      %v968 = vrot.slane %v967, 4
      %v970 = vshll.u32 %v374, 16
      %v972 = vrot.slane %v970, 5
      %v973 = vsel %vm378, %v968, %v972
      %v974 = vshrl.u32 %v374, 16
      %v976 = vrot.slane %v974, 4
      %v977 = vor.u32 %v976, %v972
      %v978 = vrot.slane %v977, 4
      %v980 = vshll.u32 %v375, 16
      %v982 = vrot.slane %v980, 5
      %v983 = vsel %vm378, %v978, %v982
      %v987 = vrot.slane %v373, 5
      %v988 = vrot.slane %v987, 4
      %v989 = vrot.slane %v374, 5
      %v990 = vsel %vm813, %v988, %v989
      %v991 = vrot.slane %v989, 4
      %v992 = vrot.slane %v375, 5
      %v993 = vsel %vm813, %v991, %v992
      %v994 = vunpack.c.l.b16 %v322
      %v995 = vunpack.c.l.b16 %v323
      %v996 = vunpack.c.l.b16 %v325
      %v997 = vunpack.c.l.b16 %v326
      %v998 = vunpack.c.l.b16 %v328
      %v999 = vunpack.c.l.b16 %v329
      %v1000 = vunpack.c.l.b16 %v331
      %v1001 = vunpack.c.l.b16 %v332
      %v1002 = vunpack.c.l.b16 %v334
      %v1003 = vunpack.c.l.b16 %v335
      %v1004 = vunpack.c.l.b16 %v337
      %v1005 = vunpack.c.l.b16 %v338
      %v1006 = vunpack.c.l.b16 %v340
      %v1007 = vunpack.c.l.b16 %v341
      %v1008 = vunpack.c.l.b16 %v343
      %v1009 = vunpack.c.l.b16 %v344
      %v1010 = vunpack.c.l.b16 %v346
      %v1011 = vunpack.c.l.b16 %v347
      %v1012 = vunpack.c.l.b16 %v349
      %v1013 = vunpack.c.l.b16 %v350
      %v1014 = vunpack.c.l.b16 %v352
      %v1015 = vunpack.c.l.b16 %v353
      %v1016 = vunpack.c.l.b16 %v355
      %v1017 = vunpack.c.l.b16 %v356
      %v1018 = vunpack.c.l.b16 %v358
      %v1019 = vunpack.c.l.b16 %v359
      %v1020 = vunpack.c.l.b16 %v361
      %v1021 = vunpack.c.l.b16 %v362
      %v1022 = vunpack.c.l.b16 %v364
      %v1023 = vunpack.c.l.b16 %v365
      %v1024 = vunpack.c.l.b16 %v367
      %v1025 = vunpack.c.l.b16 %v368
      %v1026 = vpack.c.b16 %v995, %v994
      %v1027 = vpack.c.b16 %v997, %v996
      %v1028 = vpack.c.b16 %v999, %v998
      %v1029 = vpack.c.b16 %v1001, %v1000
      %v1030 = vpack.c.b16 %v1003, %v1002
      %v1031 = vpack.c.b16 %v1005, %v1004
      %v1032 = vpack.c.b16 %v1007, %v1006
      %v1033 = vpack.c.b16 %v1009, %v1008
      %v1034 = vpack.c.b16 %v1011, %v1010
      %v1035 = vpack.c.b16 %v1013, %v1012
      %v1036 = vpack.c.b16 %v1015, %v1014
      %v1037 = vpack.c.b16 %v1017, %v1016
      %v1038 = vpack.c.b16 %v1019, %v1018
      %v1039 = vpack.c.b16 %v1021, %v1020
      %v1040 = vpack.c.b16 %v1023, %v1022
      %v1041 = vpack.c.b16 %v1025, %v1024
      %v1058 = vunpack.c.l.b16 %v392
      %v1059 = vunpack.c.l.b16 %v402
      %v1060 = vunpack.c.l.b16 %v416
      %v1061 = vunpack.c.l.b16 %v426
      %v1062 = vunpack.c.l.b16 %v440
      %v1063 = vunpack.c.l.b16 %v450
      %v1064 = vunpack.c.l.b16 %v464
      %v1065 = vunpack.c.l.b16 %v474
      %v1066 = vunpack.c.l.b16 %v488
      %v1067 = vunpack.c.l.b16 %v498
      %v1068 = vunpack.c.l.b16 %v512
      %v1069 = vunpack.c.l.b16 %v522
      %v1070 = vunpack.c.l.b16 %v536
      %v1071 = vunpack.c.l.b16 %v546
      %v1072 = vunpack.c.l.b16 %v560
      %v1073 = vunpack.c.l.b16 %v570
      %v1074 = vunpack.c.l.b16 %v584
      %v1075 = vunpack.c.l.b16 %v594
      %v1076 = vunpack.c.l.b16 %v608
      %v1077 = vunpack.c.l.b16 %v618
      %v1078 = vunpack.c.l.b16 %v632
      %v1079 = vunpack.c.l.b16 %v642
      %v1080 = vunpack.c.l.b16 %v656
      %v1081 = vunpack.c.l.b16 %v666
      %v1082 = vunpack.c.l.b16 %v680
      %v1083 = vunpack.c.l.b16 %v690
      %v1084 = vunpack.c.l.b16 %v704
      %v1085 = vunpack.c.l.b16 %v714
      %v1086 = vunpack.c.l.b16 %v728
      %v1087 = vunpack.c.l.b16 %v738
      %v1088 = vunpack.c.l.b16 %v752
      %v1089 = vunpack.c.l.b16 %v762
      %v1090 = vpack.c.b16 %v1059, %v1058
      %v1091 = vpack.c.b16 %v1061, %v1060
      %v1092 = vpack.c.b16 %v1063, %v1062
      %v1093 = vpack.c.b16 %v1065, %v1064
      %v1094 = vpack.c.b16 %v1067, %v1066
      %v1095 = vpack.c.b16 %v1069, %v1068
      %v1096 = vpack.c.b16 %v1071, %v1070
      %v1097 = vpack.c.b16 %v1073, %v1072
      %v1098 = vpack.c.b16 %v1075, %v1074
      %v1099 = vpack.c.b16 %v1077, %v1076
      %v1100 = vpack.c.b16 %v1079, %v1078
      %v1101 = vpack.c.b16 %v1081, %v1080
      %v1102 = vpack.c.b16 %v1083, %v1082
      %v1103 = vpack.c.b16 %v1085, %v1084
      %v1104 = vpack.c.b16 %v1087, %v1086
      %v1105 = vpack.c.b16 %v1089, %v1088
      %v1122 = vunpack.c.l.b16 %v817
      %v1123 = vunpack.c.l.b16 %v820
      %v1124 = vunpack.c.l.b16 %v824
      %v1125 = vunpack.c.l.b16 %v827
      %v1126 = vunpack.c.l.b16 %v831
      %v1127 = vunpack.c.l.b16 %v834
      %v1128 = vunpack.c.l.b16 %v838
      %v1129 = vunpack.c.l.b16 %v841
      %v1130 = vunpack.c.l.b16 %v845
      %v1131 = vunpack.c.l.b16 %v848
      %v1132 = vunpack.c.l.b16 %v852
      %v1133 = vunpack.c.l.b16 %v855
      %v1134 = vunpack.c.l.b16 %v859
      %v1135 = vunpack.c.l.b16 %v862
      %v1136 = vunpack.c.l.b16 %v866
      %v1137 = vunpack.c.l.b16 %v869
      %v1138 = vunpack.c.l.b16 %v873
      %v1139 = vunpack.c.l.b16 %v876
      %v1140 = vunpack.c.l.b16 %v880
      %v1141 = vunpack.c.l.b16 %v883
      %v1142 = vunpack.c.l.b16 %v887
      %v1143 = vunpack.c.l.b16 %v890
      %v1144 = vunpack.c.l.b16 %v894
      %v1145 = vunpack.c.l.b16 %v897
      %v1146 = vunpack.c.l.b16 %v901
      %v1147 = vunpack.c.l.b16 %v904
      %v1148 = vunpack.c.l.b16 %v908
      %v1149 = vunpack.c.l.b16 %v911
      %v1150 = vunpack.c.l.b16 %v915
      %v1151 = vunpack.c.l.b16 %v918
      %v1152 = vunpack.c.l.b16 %v922
      %v1153 = vunpack.c.l.b16 %v925
      %v1154 = vpack.c.b16 %v1123, %v1122
      %v1155 = vpack.c.b16 %v1125, %v1124
      %v1156 = vpack.c.b16 %v1127, %v1126
      %v1157 = vpack.c.b16 %v1129, %v1128
      %v1158 = vpack.c.b16 %v1131, %v1130
      %v1159 = vpack.c.b16 %v1133, %v1132
      %v1160 = vpack.c.b16 %v1135, %v1134
      %v1161 = vpack.c.b16 %v1137, %v1136
      %v1162 = vpack.c.b16 %v1139, %v1138
      %v1163 = vpack.c.b16 %v1141, %v1140
      %v1164 = vpack.c.b16 %v1143, %v1142
      %v1165 = vpack.c.b16 %v1145, %v1144
      %v1166 = vpack.c.b16 %v1147, %v1146
      %v1167 = vpack.c.b16 %v1149, %v1148
      %v1168 = vpack.c.b16 %v1151, %v1150
      %v1169 = vpack.c.b16 %v1153, %v1152
      %v1186 = vunpack.c.l.b16 %v370
      %v1187 = vunpack.c.l.b16 %v371
      %v1188 = vpack.c.b16 %v1187, %v1186
      %v1190 = vunpack.c.l.b16 %v939
      %v1191 = vunpack.c.l.b16 %v949
      %v1192 = vpack.c.b16 %v1191, %v1190
      %v1194 = vunpack.c.l.b16 %v956
      %v1195 = vunpack.c.l.b16 %v959
      %v1196 = vpack.c.b16 %v1195, %v1194
      %v1198 = vunpack.c.l.b16 %v373
      %v1199 = vunpack.c.l.b16 %v374
      %v1200 = vpack.c.b16 %v1199, %v1198
      %v1202 = vunpack.c.l.b16 %v973
      %v1203 = vunpack.c.l.b16 %v983
      %v1204 = vpack.c.b16 %v1203, %v1202
      %v1206 = vunpack.c.l.b16 %v990
      %v1207 = vunpack.c.l.b16 %v993
      %v1208 = vpack.c.b16 %v1207, %v1206
      %v1210 = vld [vmem:[%s298] sm:$0xf]
      %v1211 = vld [vmem:[%s298 + $0x4] sm:$0xf]
      %v1212 = vld [vmem:[%s298 + $0x8] sm:$0xf]
      %v1213 = vld [vmem:[%s298 + $0xc] sm:$0xf]
      %v1214 = vld [vmem:[%s298 + $0x10] sm:$0xf]
      %v1215 = vld [vmem:[%s298 + $0x14] sm:$0xf]
      %v1216 = vld [vmem:[%s298 + $0x18] sm:$0xf]
      %v1217 = vld [vmem:[%s298 + $0x1c] sm:$0xf]
      %v1218 = vld [vmem:[%s298 + $0x20] sm:$0xf]
      %v1219 = vld [vmem:[%s298 + $0x24] sm:$0xf]
      %v1220 = vld [vmem:[%s298 + $0x28] sm:$0xf]
      %v1221 = vld [vmem:[%s298 + $0x2c] sm:$0xf]
      %v1222 = vld [vmem:[%s298 + $0x30] sm:$0xf]
      %v1223 = vld [vmem:[%s298 + $0x34] sm:$0xf]
      %v1224 = vld [vmem:[%s298 + $0x38] sm:$0xf]
      %v1225 = vld [vmem:[%s298 + $0x3c] sm:$0xf]
      %v1226 = vld [vmem:[%s298 + $0x40] sm:$0xf]
      %v1227 = vld [vmem:[%s298 + $0x44] sm:$0xf]
      %v1228 = vld [vmem:[%s298 + $0x48] sm:$0xf]
      %v1229 = vld [vmem:[%s298 + $0x4c] sm:$0xf]
      %v1230 = vld [vmem:[%s298 + $0x50] sm:$0xf]
      %v1231 = vld [vmem:[%s298 + $0x54] sm:$0xf]
      %v1232 = vld [vmem:[%s298 + $0x58] sm:$0xf]
      %v1233 = vld [vmem:[%s298 + $0x5c] sm:$0xf]
      %v1234 = vld [vmem:[%s298 + $0x60] sm:$0xf]
      %v1235 = vld [vmem:[%s298 + $0x64] sm:$0xf]
      %v1236 = vld [vmem:[%s298 + $0x68] sm:$0xf]
      %v1237 = vld [vmem:[%s298 + $0x6c] sm:$0xf]
      %v1238 = vld [vmem:[%s298 + $0x70] sm:$0xf]
      %v1239 = vld [vmem:[%s298 + $0x74] sm:$0xf]
      %v1240 = vld [vmem:[%s298 + $0x78] sm:$0xf]
      %v1241 = vld [vmem:[%s298 + $0x7c] sm:$0xf]
      %v1242 = vld [vmem:[%s298 + $0x80] sm:$0xf]
      %v1243 = vld [vmem:[%s298 + $0x84] sm:$0xf]
      %v1244 = vld [vmem:[%s298 + $0x88] sm:$0xf]
      %v1245 = vld [vmem:[%s298 + $0x8c] sm:$0xf]
      %v1246 = vld [vmem:[%s298 + $0x90] sm:$0xf]
      %v1247 = vld [vmem:[%s298 + $0x94] sm:$0xf]
      %v1248 = vld [vmem:[%s298 + $0x98] sm:$0xf]
      %v1249 = vld [vmem:[%s298 + $0x9c] sm:$0xf]
      %v1250 = vld [vmem:[%s298 + $0xa0] sm:$0xf]
      %v1251 = vld [vmem:[%s298 + $0xa4] sm:$0xf]
      %v1252 = vld [vmem:[%s298 + $0xa8] sm:$0xf]
      %v1253 = vld [vmem:[%s298 + $0xac] sm:$0xf]
      %v1254 = vld [vmem:[%s298 + $0xb0] sm:$0xf]
      %v1255 = vld [vmem:[%s298 + $0xb4] sm:$0xf]
      %v1256 = vld [vmem:[%s298 + $0xb8] sm:$0xf]
      %v1257 = vld [vmem:[%s298 + $0xbc] sm:$0xf]
      %v1258 = vld [vmem:[%s298 + $0xc0] sm:$0xf]
      %v1259 = vld [vmem:[%s298 + $0xc4] sm:$0xf]
      %v1260 = vld [vmem:[%s298 + $0xc8] sm:$0xf]
      %v1261 = vld [vmem:[%s298 + $0xcc] sm:$0xf]
      %v1262 = vld [vmem:[%s298 + $0xd0] sm:$0xf]
      %v1263 = vld [vmem:[%s298 + $0xd4] sm:$0xf]
      %v1264 = vld [vmem:[%s298 + $0xd8] sm:$0xf]
      %v1265 = vld [vmem:[%s298 + $0xdc] sm:$0xf]
      %v1266 = vld [vmem:[%s298 + $0xe0] sm:$0xf]
      %v1267 = vld [vmem:[%s298 + $0xe4] sm:$0xf]
      %v1268 = vld [vmem:[%s298 + $0xe8] sm:$0xf]
      %v1269 = vld [vmem:[%s298 + $0xec] sm:$0xf]
      %v1270 = vld [vmem:[%s298 + $0xf0] sm:$0xf]
      %v1271 = vld [vmem:[%s298 + $0xf4] sm:$0xf]
      %v1272 = vld [vmem:[%s298 + $0xf8] sm:$0xf]
      %v1273 = vld [vmem:[%s298 + $0xfc] sm:$0xf]
      %v1274 = vld [vmem:[%s298 + $0x100] sm:$0xf]
      %v1275 = vld [vmem:[%s298 + $0x104] sm:$0xf]
      %v1276 = vld [vmem:[%s298 + $0x108] sm:$0xf]
      %v1277 = vld [vmem:[%s298 + $0x10c] sm:$0xf]
      %v1278 = vld [vmem:[%s298 + $0x110] sm:$0xf]
      %v1279 = vld [vmem:[%s298 + $0x114] sm:$0xf]
      %v1280 = vld [vmem:[%s298 + $0x118] sm:$0xf]
      %v1281 = vld [vmem:[%s298 + $0x11c] sm:$0xf]
      %v1282 = vld [vmem:[%s298 + $0x120] sm:$0xf]
      %v1283 = vld [vmem:[%s298 + $0x124] sm:$0xf]
      %v1284 = vld [vmem:[%s298 + $0x128] sm:$0xf]
      %v1285 = vld [vmem:[%s298 + $0x12c] sm:$0xf]
      %v1286 = vld [vmem:[%s298 + $0x130] sm:$0xf]
      %v1287 = vld [vmem:[%s298 + $0x134] sm:$0xf]
      %v1288 = vld [vmem:[%s298 + $0x138] sm:$0xf]
      %v1289 = vld [vmem:[%s298 + $0x13c] sm:$0xf]
      %v1290 = vld [vmem:[%s298 + $0x140] sm:$0xf]
      %v1291 = vld [vmem:[%s298 + $0x144] sm:$0xf]
      %v1292 = vld [vmem:[%s298 + $0x148] sm:$0xf]
      %v1293 = vld [vmem:[%s298 + $0x14c] sm:$0xf]
      %v1294 = vld [vmem:[%s298 + $0x150] sm:$0xf]
      %v1295 = vld [vmem:[%s298 + $0x154] sm:$0xf]
      %v1296 = vld [vmem:[%s298 + $0x158] sm:$0xf]
      %v1297 = vld [vmem:[%s298 + $0x15c] sm:$0xf]
      %v1298 = vld [vmem:[%s298 + $0x160] sm:$0xf]
      %v1299 = vld [vmem:[%s298 + $0x164] sm:$0xf]
      %v1300 = vld [vmem:[%s298 + $0x168] sm:$0xf]
      %v1301 = vld [vmem:[%s298 + $0x16c] sm:$0xf]
      %v1302 = vld [vmem:[%s298 + $0x170] sm:$0xf]
      %v1303 = vld [vmem:[%s298 + $0x174] sm:$0xf]
      %v1304 = vld [vmem:[%s298 + $0x178] sm:$0xf]
      %v1305 = vld [vmem:[%s298 + $0x17c] sm:$0xf]
      %v1306 = vld [vmem:[%s298 + $0x180] sm:$0xf]
      %v1307 = vld [vmem:[%s298 + $0x184] sm:$0xf]
      %v1308 = vld [vmem:[%s298 + $0x188] sm:$0xf]
      %v1309 = vld [vmem:[%s298 + $0x18c] sm:$0xf]
      %v1310 = vld [vmem:[%s298 + $0x190] sm:$0xf]
      %v1311 = vld [vmem:[%s298 + $0x194] sm:$0xf]
      %v1312 = vld [vmem:[%s298 + $0x198] sm:$0xf]
      %v1313 = vld [vmem:[%s298 + $0x19c] sm:$0xf]
      %v1314 = vld [vmem:[%s298 + $0x1a0] sm:$0xf]
      %v1315 = vld [vmem:[%s298 + $0x1a4] sm:$0xf]
      %v1316 = vld [vmem:[%s298 + $0x1a8] sm:$0xf]
      %v1317 = vld [vmem:[%s298 + $0x1ac] sm:$0xf]
      %v1318 = vld [vmem:[%s298 + $0x1b0] sm:$0xf]
      %v1319 = vld [vmem:[%s298 + $0x1b4] sm:$0xf]
      %v1320 = vld [vmem:[%s298 + $0x1b8] sm:$0xf]
      %v1321 = vld [vmem:[%s298 + $0x1bc] sm:$0xf]
      %v1322 = vld [vmem:[%s298 + $0x1c0] sm:$0xf]
      %v1323 = vld [vmem:[%s298 + $0x1c4] sm:$0xf]
      %v1324 = vld [vmem:[%s298 + $0x1c8] sm:$0xf]
      %v1325 = vld [vmem:[%s298 + $0x1cc] sm:$0xf]
      %v1326 = vld [vmem:[%s298 + $0x1d0] sm:$0xf]
      %v1327 = vld [vmem:[%s298 + $0x1d4] sm:$0xf]
      %v1328 = vld [vmem:[%s298 + $0x1d8] sm:$0xf]
      %v1329 = vld [vmem:[%s298 + $0x1dc] sm:$0xf]
      %v1330 = vld [vmem:[%s298 + $0x1e0] sm:$0xf]
      %v1331 = vld [vmem:[%s298 + $0x1e4] sm:$0xf]
      %v1332 = vld [vmem:[%s298 + $0x1e8] sm:$0xf]
      %v1333 = vld [vmem:[%s298 + $0x1ec] sm:$0xf]
      %v1334 = vld [vmem:[%s298 + $0x1f0] sm:$0xf]
      %v1335 = vld [vmem:[%s298 + $0x1f4] sm:$0xf]
      %v1336 = vld [vmem:[%s298 + $0x1f8] sm:$0xf]
      %v1337 = vld [vmem:[%s298 + $0x1fc] sm:$0xf]
      %v1338 = vld [vmem:[%s298 + $0x200] sm:$0xf]
      %v1339 = vld [vmem:[%s298 + $0x204] sm:$0xf]
      %v1340 = vld [vmem:[%s298 + $0x208] sm:$0xf]
      %v1341 = vld [vmem:[%s298 + $0x20c] sm:$0xf]
      %v1342 = vld [vmem:[%s298 + $0x210] sm:$0xf]
      %v1343 = vld [vmem:[%s298 + $0x214] sm:$0xf]
      %v1344 = vld [vmem:[%s298 + $0x218] sm:$0xf]
      %v1345 = vld [vmem:[%s298 + $0x21c] sm:$0xf]
      %v1346 = vld [vmem:[%s298 + $0x220] sm:$0xf]
      %v1347 = vld [vmem:[%s298 + $0x224] sm:$0xf]
      %v1348 = vld [vmem:[%s298 + $0x228] sm:$0xf]
      %v1349 = vld [vmem:[%s298 + $0x22c] sm:$0xf]
      %v1350 = vld [vmem:[%s298 + $0x230] sm:$0xf]
      %v1351 = vld [vmem:[%s298 + $0x234] sm:$0xf]
      %v1352 = vld [vmem:[%s298 + $0x238] sm:$0xf]
      %v1353 = vld [vmem:[%s298 + $0x23c] sm:$0xf]
      %v1498 = vunpack.c.l.b16 %v1210
      %v1499 = vunpack.c.l.b16 %v1211
      %v1500 = vunpack.c.l.b16 %v1212
      %v1501 = vunpack.c.l.b16 %v1213
      %v1502 = vunpack.c.l.b16 %v1214
      %v1503 = vunpack.c.l.b16 %v1215
      %v1504 = vunpack.c.l.b16 %v1216
      %v1505 = vunpack.c.l.b16 %v1217
      %v1506 = vunpack.c.l.b16 %v1218
      %v1507 = vunpack.c.l.b16 %v1219
      %v1508 = vunpack.c.l.b16 %v1220
      %v1509 = vunpack.c.l.b16 %v1221
      %v1510 = vunpack.c.l.b16 %v1222
      %v1511 = vunpack.c.l.b16 %v1223
      %v1512 = vunpack.c.l.b16 %v1224
      %v1513 = vunpack.c.l.b16 %v1225
      %v1514 = vunpack.c.l.b16 %v1226
      %v1515 = vunpack.c.l.b16 %v1227
      %v1516 = vunpack.c.l.b16 %v1228
      %v1517 = vunpack.c.l.b16 %v1229
      %v1518 = vunpack.c.l.b16 %v1230
      %v1519 = vunpack.c.l.b16 %v1231
      %v1520 = vunpack.c.l.b16 %v1232
      %v1521 = vunpack.c.l.b16 %v1233
      %v1522 = vunpack.c.l.b16 %v1234
      %v1523 = vunpack.c.l.b16 %v1235
      %v1524 = vunpack.c.l.b16 %v1236
      %v1525 = vunpack.c.l.b16 %v1237
      %v1526 = vunpack.c.l.b16 %v1238
      %v1527 = vunpack.c.l.b16 %v1239
      %v1528 = vunpack.c.l.b16 %v1240
      %v1529 = vunpack.c.l.b16 %v1241
      %v1530 = vunpack.c.l.b16 %v1242
      %v1531 = vunpack.c.l.b16 %v1243
      %v1532 = vunpack.c.l.b16 %v1244
      %v1533 = vunpack.c.l.b16 %v1245
      %v1534 = vunpack.c.l.b16 %v1246
      %v1535 = vunpack.c.l.b16 %v1247
      %v1536 = vunpack.c.l.b16 %v1248
      %v1537 = vunpack.c.l.b16 %v1249
      %v1538 = vunpack.c.l.b16 %v1250
      %v1539 = vunpack.c.l.b16 %v1251
      %v1540 = vunpack.c.l.b16 %v1252
      %v1541 = vunpack.c.l.b16 %v1253
      %v1542 = vunpack.c.l.b16 %v1254
      %v1543 = vunpack.c.l.b16 %v1255
      %v1544 = vunpack.c.l.b16 %v1256
      %v1545 = vunpack.c.l.b16 %v1257
      %v1546 = vunpack.c.l.b16 %v1258
      %v1547 = vunpack.c.l.b16 %v1259
      %v1548 = vunpack.c.l.b16 %v1260
      %v1549 = vunpack.c.l.b16 %v1261
      %v1550 = vunpack.c.l.b16 %v1262
      %v1551 = vunpack.c.l.b16 %v1263
      %v1552 = vunpack.c.l.b16 %v1264
      %v1553 = vunpack.c.l.b16 %v1265
      %v1554 = vunpack.c.l.b16 %v1266
      %v1555 = vunpack.c.l.b16 %v1267
      %v1556 = vunpack.c.l.b16 %v1268
      %v1557 = vunpack.c.l.b16 %v1269
      %v1558 = vunpack.c.l.b16 %v1270
      %v1559 = vunpack.c.l.b16 %v1271
      %v1560 = vunpack.c.l.b16 %v1272
      %v1561 = vunpack.c.l.b16 %v1273
      %v1562 = vunpack.c.l.b16 %v1274
      %v1563 = vunpack.c.l.b16 %v1275
      %v1564 = vunpack.c.l.b16 %v1276
      %v1565 = vunpack.c.l.b16 %v1277
      %v1566 = vunpack.c.l.b16 %v1278
      %v1567 = vunpack.c.l.b16 %v1279
      %v1568 = vunpack.c.l.b16 %v1280
      %v1569 = vunpack.c.l.b16 %v1281
      %v1570 = vunpack.c.l.b16 %v1282
      %v1571 = vunpack.c.l.b16 %v1283
      %v1572 = vunpack.c.l.b16 %v1284
      %v1573 = vunpack.c.l.b16 %v1285
      %v1574 = vunpack.c.l.b16 %v1286
      %v1575 = vunpack.c.l.b16 %v1287
      %v1576 = vunpack.c.l.b16 %v1288
      %v1577 = vunpack.c.l.b16 %v1289
      %v1578 = vunpack.c.l.b16 %v1290
      %v1579 = vunpack.c.l.b16 %v1291
      %v1580 = vunpack.c.l.b16 %v1292
      %v1581 = vunpack.c.l.b16 %v1293
      %v1582 = vunpack.c.l.b16 %v1294
      %v1583 = vunpack.c.l.b16 %v1295
      %v1584 = vunpack.c.l.b16 %v1296
      %v1585 = vunpack.c.l.b16 %v1297
      %v1586 = vunpack.c.l.b16 %v1298
      %v1587 = vunpack.c.l.b16 %v1299
      %v1588 = vunpack.c.l.b16 %v1300
      %v1589 = vunpack.c.l.b16 %v1301
      %v1590 = vunpack.c.l.b16 %v1302
      %v1591 = vunpack.c.l.b16 %v1303
      %v1592 = vunpack.c.l.b16 %v1304
      %v1593 = vunpack.c.l.b16 %v1305
      %v1594 = vunpack.c.l.b16 %v1306
      %v1595 = vunpack.c.l.b16 %v1307
      %v1596 = vunpack.c.l.b16 %v1308
      %v1597 = vunpack.c.l.b16 %v1309
      %v1598 = vunpack.c.l.b16 %v1310
      %v1599 = vunpack.c.l.b16 %v1311
      %v1600 = vunpack.c.l.b16 %v1312
      %v1601 = vunpack.c.l.b16 %v1313
      %v1602 = vunpack.c.l.b16 %v1314
      %v1603 = vunpack.c.l.b16 %v1315
      %v1604 = vunpack.c.l.b16 %v1316
      %v1605 = vunpack.c.l.b16 %v1317
      %v1606 = vunpack.c.l.b16 %v1318
      %v1607 = vunpack.c.l.b16 %v1319
      %v1608 = vunpack.c.l.b16 %v1320
      %v1609 = vunpack.c.l.b16 %v1321
      %v1610 = vunpack.c.l.b16 %v1322
      %v1611 = vunpack.c.l.b16 %v1323
      %v1612 = vunpack.c.l.b16 %v1324
      %v1613 = vunpack.c.l.b16 %v1325
      %v1614 = vunpack.c.l.b16 %v1326
      %v1615 = vunpack.c.l.b16 %v1327
      %v1616 = vunpack.c.l.b16 %v1328
      %v1617 = vunpack.c.l.b16 %v1329
      %v1618 = vunpack.c.l.b16 %v1330
      %v1619 = vunpack.c.l.b16 %v1331
      %v1620 = vunpack.c.l.b16 %v1332
      %v1621 = vunpack.c.l.b16 %v1333
      %v1622 = vunpack.c.l.b16 %v1334
      %v1623 = vunpack.c.l.b16 %v1335
      %v1624 = vunpack.c.l.b16 %v1336
      %v1625 = vunpack.c.l.b16 %v1337
      %v1626 = vunpack.c.l.b16 %v1338
      %v1627 = vunpack.c.l.b16 %v1339
      %v1628 = vunpack.c.l.b16 %v1340
      %v1629 = vunpack.c.l.b16 %v1341
      %v1630 = vunpack.c.l.b16 %v1342
      %v1631 = vunpack.c.l.b16 %v1343
      %v1632 = vunpack.c.l.b16 %v1344
      %v1633 = vunpack.c.l.b16 %v1345
      %v1634 = vunpack.c.l.b16 %v1346
      %v1635 = vunpack.c.l.b16 %v1347
      %v1636 = vunpack.c.l.b16 %v1348
      %v1637 = vunpack.c.l.b16 %v1349
      %v1638 = vunpack.c.l.b16 %v1350
      %v1639 = vunpack.c.l.b16 %v1351
      %v1640 = vunpack.c.l.b16 %v1352
      %v1641 = vunpack.c.l.b16 %v1353
      %v1642 = vpack.c.b16 %v1499, %v1498
      %v1643 = vpack.c.b16 %v1501, %v1500
      %v1644 = vpack.c.b16 %v1503, %v1502
      %v1645 = vpack.c.b16 %v1505, %v1504
      %v1646 = vpack.c.b16 %v1507, %v1506
      %v1647 = vpack.c.b16 %v1509, %v1508
      %v1648 = vpack.c.b16 %v1511, %v1510
      %v1649 = vpack.c.b16 %v1513, %v1512
      %v1650 = vpack.c.b16 %v1515, %v1514
      %v1651 = vpack.c.b16 %v1517, %v1516
      %v1652 = vpack.c.b16 %v1519, %v1518
      %v1653 = vpack.c.b16 %v1521, %v1520
      %v1654 = vpack.c.b16 %v1523, %v1522
      %v1655 = vpack.c.b16 %v1525, %v1524
      %v1656 = vpack.c.b16 %v1527, %v1526
      %v1657 = vpack.c.b16 %v1529, %v1528
      %v1658 = vpack.c.b16 %v1531, %v1530
      %v1659 = vpack.c.b16 %v1533, %v1532
      %v1660 = vpack.c.b16 %v1535, %v1534
      %v1661 = vpack.c.b16 %v1537, %v1536
      %v1662 = vpack.c.b16 %v1539, %v1538
      %v1663 = vpack.c.b16 %v1541, %v1540
      %v1664 = vpack.c.b16 %v1543, %v1542
      %v1665 = vpack.c.b16 %v1545, %v1544
      %v1666 = vpack.c.b16 %v1547, %v1546
      %v1667 = vpack.c.b16 %v1549, %v1548
      %v1668 = vpack.c.b16 %v1551, %v1550
      %v1669 = vpack.c.b16 %v1553, %v1552
      %v1670 = vpack.c.b16 %v1555, %v1554
      %v1671 = vpack.c.b16 %v1557, %v1556
      %v1672 = vpack.c.b16 %v1559, %v1558
      %v1673 = vpack.c.b16 %v1561, %v1560
      %v1674 = vpack.c.b16 %v1563, %v1562
      %v1675 = vpack.c.b16 %v1565, %v1564
      %v1676 = vpack.c.b16 %v1567, %v1566
      %v1677 = vpack.c.b16 %v1569, %v1568
      %v1678 = vpack.c.b16 %v1571, %v1570
      %v1679 = vpack.c.b16 %v1573, %v1572
      %v1680 = vpack.c.b16 %v1575, %v1574
      %v1681 = vpack.c.b16 %v1577, %v1576
      %v1682 = vpack.c.b16 %v1579, %v1578
      %v1683 = vpack.c.b16 %v1581, %v1580
      %v1684 = vpack.c.b16 %v1583, %v1582
      %v1685 = vpack.c.b16 %v1585, %v1584
      %v1686 = vpack.c.b16 %v1587, %v1586
      %v1687 = vpack.c.b16 %v1589, %v1588
      %v1688 = vpack.c.b16 %v1591, %v1590
      %v1689 = vpack.c.b16 %v1593, %v1592
      %v1690 = vpack.c.b16 %v1595, %v1594
      %v1691 = vpack.c.b16 %v1597, %v1596
      %v1692 = vpack.c.b16 %v1599, %v1598
      %v1693 = vpack.c.b16 %v1601, %v1600
      %v1694 = vpack.c.b16 %v1603, %v1602
      %v1695 = vpack.c.b16 %v1605, %v1604
      %v1696 = vpack.c.b16 %v1607, %v1606
      %v1697 = vpack.c.b16 %v1609, %v1608
      %v1698 = vpack.c.b16 %v1611, %v1610
      %v1699 = vpack.c.b16 %v1613, %v1612
      %v1700 = vpack.c.b16 %v1615, %v1614
      %v1701 = vpack.c.b16 %v1617, %v1616
      %v1702 = vpack.c.b16 %v1619, %v1618
      %v1703 = vpack.c.b16 %v1621, %v1620
      %v1704 = vpack.c.b16 %v1623, %v1622
      %v1705 = vpack.c.b16 %v1625, %v1624
      %v1706 = vpack.c.b16 %v1627, %v1626
      %v1707 = vpack.c.b16 %v1629, %v1628
      %v1708 = vpack.c.b16 %v1631, %v1630
      %v1709 = vpack.c.b16 %v1633, %v1632
      %v1710 = vpack.c.b16 %v1635, %v1634
      %v1711 = vpack.c.b16 %v1637, %v1636
      %v1712 = vpack.c.b16 %v1639, %v1638
      %v1713 = vpack.c.b16 %v1641, %v1640
      %1786 = vmatprep.subr.bf16.mxu0 0
      %1787 = vmatpush1.bf16.msra.mxu0 %v1649
      %1788 = vmatprep.subr.bf16.mxu0 0
      %1789 = vmatpush1.bf16.msra.mxu0 %v1648
      %1790 = vmatprep.subr.bf16.mxu0 0
      %1791 = vmatpush1.bf16.msra.mxu0 %v1647
      %1792 = vmatprep.subr.bf16.mxu0 0
      %1793 = vmatpush1.bf16.msra.mxu0 %v1646
      %1794 = vmatprep.subr.bf16.mxu0 0
      %1795 = vmatpush1.bf16.msra.mxu0 %v1645
      %1796 = vmatprep.subr.bf16.mxu0 0
      %1797 = vmatpush1.bf16.msra.mxu0 %v1644
      %1798 = vmatprep.subr.bf16.mxu0 0
      %1799 = vmatpush1.bf16.msra.mxu0 %v1643
      %1800 = vmatprep.subr.bf16.mxu0 0
      %1801 = vmatpush1.bf16.msra.mxu0 %v1642
      %1802 = vmatprep.subr.bf16.mxu0 0
      %1803 = vmatpush2.bf16.msra.mxu0 %v1657
      %1804 = vmatprep.subr.bf16.mxu0 0
      %1805 = vmatpush2.bf16.msra.mxu0 %v1656
      %1806 = vmatprep.subr.bf16.mxu0 0
      %1807 = vmatpush2.bf16.msra.mxu0 %v1655
      %1808 = vmatprep.subr.bf16.mxu0 0
      %1809 = vmatpush2.bf16.msra.mxu0 %v1654
      %1810 = vmatprep.subr.bf16.mxu0 0
      %1811 = vmatpush2.bf16.msra.mxu0 %v1653
      %1812 = vmatprep.subr.bf16.mxu0 0
      %1813 = vmatpush2.bf16.msra.mxu0 %v1652
      %1814 = vmatprep.subr.bf16.mxu0 0
      %1815 = vmatpush2.bf16.msra.mxu0 %v1651
      %1816 = vmatprep.subr.bf16.mxu0 0
      %1817 = vmatpush2.bf16.msra.mxu0 %v1650
      %1818 = vmatprep.mubr.bf16.mxu0 %v1090
      %1819 = vmatmul.mubr.bf16.gmra.mxu0 %v1026
      %v1820 = vpop.f32.mrf.mxu0
      %v1821 = vadd.f32 0.0, %v1820
      %v1822 = vpop.f32.mrf.mxu0
      %v1823 = vpop.f32.mrf.mxu0
      %v1824 = vadd.f32 0.0, %v1823
      %v1825 = vpop.f32.mrf.mxu0
      %1826 = vmatprep.mubr.bf16.mxu0 %v1091
      %1827 = vmatmul.mubr.bf16.gmra.mxu0 %v1027
      %v1828 = vpop.f32.mrf.mxu0
      %v1829 = vadd.f32 0.0, %v1828
      %v1830 = vpop.f32.mrf.mxu0
      %v1831 = vpop.f32.mrf.mxu0
      %v1832 = vadd.f32 0.0, %v1831
      %v1833 = vpop.f32.mrf.mxu0
      %1834 = vmatprep.mubr.bf16.mxu0 %v1092
      %1835 = vmatmul.mubr.bf16.gmra.mxu0 %v1028
      %v1836 = vpop.f32.mrf.mxu0
      %v1837 = vadd.f32 0.0, %v1836
      %v1838 = vpop.f32.mrf.mxu0
      %v1839 = vpop.f32.mrf.mxu0
      %v1840 = vadd.f32 0.0, %v1839
      %v1841 = vpop.f32.mrf.mxu0
      %1842 = vmatprep.mubr.bf16.mxu0 %v1093
      %1843 = vmatmul.mubr.bf16.gmra.mxu0 %v1029
      %v1844 = vpop.f32.mrf.mxu0
      %v1845 = vadd.f32 0.0, %v1844
      %v1846 = vpop.f32.mrf.mxu0
      %v1847 = vpop.f32.mrf.mxu0
      %v1848 = vadd.f32 0.0, %v1847
      %v1849 = vpop.f32.mrf.mxu0
      %1850 = vmatprep.mubr.bf16.mxu0 %v1094
      %1851 = vmatmul.mubr.bf16.gmra.mxu0 %v1030
      %v1852 = vpop.f32.mrf.mxu0
      %v1853 = vadd.f32 0.0, %v1852
      %v1854 = vpop.f32.mrf.mxu0
      %v1855 = vpop.f32.mrf.mxu0
      %v1856 = vadd.f32 0.0, %v1855
      %v1857 = vpop.f32.mrf.mxu0
      %1858 = vmatprep.mubr.bf16.mxu0 %v1095
      %1859 = vmatmul.mubr.bf16.gmra.mxu0 %v1031
      %v1860 = vpop.f32.mrf.mxu0
      %v1861 = vadd.f32 0.0, %v1860
      %v1862 = vpop.f32.mrf.mxu0
      %v1863 = vpop.f32.mrf.mxu0
      %v1864 = vadd.f32 0.0, %v1863
      %v1865 = vpop.f32.mrf.mxu0
      %1866 = vmatprep.mubr.bf16.mxu0 %v1096
      %1867 = vmatmul.mubr.bf16.gmra.mxu0 %v1032
      %v1868 = vpop.f32.mrf.mxu0
      %v1869 = vadd.f32 0.0, %v1868
      %v1870 = vpop.f32.mrf.mxu0
      %v1871 = vpop.f32.mrf.mxu0
      %v1872 = vadd.f32 0.0, %v1871
      %v1873 = vpop.f32.mrf.mxu0
      %1874 = vmatprep.mubr.bf16.mxu0 %v1097
      %1875 = vmatmul.mubr.bf16.gmra.mxu0 %v1033
      %v1876 = vpop.f32.mrf.mxu0
      %v1877 = vadd.f32 0.0, %v1876
      %v1878 = vpop.f32.mrf.mxu0
      %v1879 = vpop.f32.mrf.mxu0
      %v1880 = vadd.f32 0.0, %v1879
      %v1881 = vpop.f32.mrf.mxu0
      %1882 = vmatprep.mubr.bf16.mxu0 %v1098
      %1883 = vmatmul.mubr.bf16.gmra.mxu0 %v1034
      %v1884 = vpop.f32.mrf.mxu0
      %v1885 = vadd.f32 0.0, %v1884
      %v1886 = vpop.f32.mrf.mxu0
      %v1887 = vpop.f32.mrf.mxu0
      %v1888 = vadd.f32 0.0, %v1887
      %v1889 = vpop.f32.mrf.mxu0
      %1890 = vmatprep.mubr.bf16.mxu0 %v1099
      %1891 = vmatmul.mubr.bf16.gmra.mxu0 %v1035
      %v1892 = vpop.f32.mrf.mxu0
      %v1893 = vadd.f32 0.0, %v1892
      %v1894 = vpop.f32.mrf.mxu0
      %v1895 = vpop.f32.mrf.mxu0
      %v1896 = vadd.f32 0.0, %v1895
      %v1897 = vpop.f32.mrf.mxu0
      %1898 = vmatprep.mubr.bf16.mxu0 %v1100
      %1899 = vmatmul.mubr.bf16.gmra.mxu0 %v1036
      %v1900 = vpop.f32.mrf.mxu0
      %v1901 = vadd.f32 0.0, %v1900
      %v1902 = vpop.f32.mrf.mxu0
      %v1903 = vpop.f32.mrf.mxu0
      %v1904 = vadd.f32 0.0, %v1903
      %v1905 = vpop.f32.mrf.mxu0
      %1906 = vmatprep.mubr.bf16.mxu0 %v1101
      %1907 = vmatmul.mubr.bf16.gmra.mxu0 %v1037
      %v1908 = vpop.f32.mrf.mxu0
      %v1909 = vadd.f32 0.0, %v1908
      %v1910 = vpop.f32.mrf.mxu0
      %v1911 = vpop.f32.mrf.mxu0
      %v1912 = vadd.f32 0.0, %v1911
      %v1913 = vpop.f32.mrf.mxu0
      %1914 = vmatprep.mubr.bf16.mxu0 %v1102
      %1915 = vmatmul.mubr.bf16.gmra.mxu0 %v1038
      %v1916 = vpop.f32.mrf.mxu0
      %v1917 = vadd.f32 0.0, %v1916
      %v1918 = vpop.f32.mrf.mxu0
      %v1919 = vpop.f32.mrf.mxu0
      %v1920 = vadd.f32 0.0, %v1919
      %v1921 = vpop.f32.mrf.mxu0
      %1922 = vmatprep.mubr.bf16.mxu0 %v1103
      %1923 = vmatmul.mubr.bf16.gmra.mxu0 %v1039
      %v1924 = vpop.f32.mrf.mxu0
      %v1925 = vadd.f32 0.0, %v1924
      %v1926 = vpop.f32.mrf.mxu0
      %v1927 = vpop.f32.mrf.mxu0
      %v1928 = vadd.f32 0.0, %v1927
      %v1929 = vpop.f32.mrf.mxu0
      %1930 = vmatprep.mubr.bf16.mxu0 %v1104
      %1931 = vmatmul.mubr.bf16.gmra.mxu0 %v1040
      %v1932 = vpop.f32.mrf.mxu0
      %v1933 = vadd.f32 0.0, %v1932
      %v1934 = vpop.f32.mrf.mxu0
      %v1935 = vpop.f32.mrf.mxu0
      %v1936 = vadd.f32 0.0, %v1935
      %v1937 = vpop.f32.mrf.mxu0
      %1938 = vmatprep.mubr.bf16.mxu0 %v1105
      %1939 = vmatmul.mubr.bf16.gmra.mxu0 %v1041
      %v1940 = vpop.f32.mrf.mxu0
      %v1941 = vadd.f32 0.0, %v1940
      %v1942 = vpop.f32.mrf.mxu0
      %v1943 = vpop.f32.mrf.mxu0
      %v1944 = vadd.f32 0.0, %v1943
      %v1945 = vpop.f32.mrf.mxu0
      %1946 = vdwg.mxu0
      %1947 = vmatprep.subr.bf16.mxu0 0
      %1948 = vmatpush1.bf16.msra.mxu0 %v1665
      %1949 = vmatprep.subr.bf16.mxu0 0
      %1950 = vmatpush1.bf16.msra.mxu0 %v1664
      %1951 = vmatprep.subr.bf16.mxu0 0
      %1952 = vmatpush1.bf16.msra.mxu0 %v1663
      %1953 = vmatprep.subr.bf16.mxu0 0
      %1954 = vmatpush1.bf16.msra.mxu0 %v1662
      %1955 = vmatprep.subr.bf16.mxu0 0
      %1956 = vmatpush1.bf16.msra.mxu0 %v1661
      %1957 = vmatprep.subr.bf16.mxu0 0
      %1958 = vmatpush1.bf16.msra.mxu0 %v1660
      %1959 = vmatprep.subr.bf16.mxu0 0
      %1960 = vmatpush1.bf16.msra.mxu0 %v1659
      %1961 = vmatprep.subr.bf16.mxu0 0
      %1962 = vmatpush1.bf16.msra.mxu0 %v1658
      %1963 = vmatprep.subr.bf16.mxu0 0
      %1964 = vmatpush2.bf16.msra.mxu0 %v1673
      %1965 = vmatprep.subr.bf16.mxu0 0
      %1966 = vmatpush2.bf16.msra.mxu0 %v1672
      %1967 = vmatprep.subr.bf16.mxu0 0
      %1968 = vmatpush2.bf16.msra.mxu0 %v1671
      %1969 = vmatprep.subr.bf16.mxu0 0
      %1970 = vmatpush2.bf16.msra.mxu0 %v1670
      %1971 = vmatprep.subr.bf16.mxu0 0
      %1972 = vmatpush2.bf16.msra.mxu0 %v1669
      %1973 = vmatprep.subr.bf16.mxu0 0
      %1974 = vmatpush2.bf16.msra.mxu0 %v1668
      %1975 = vmatprep.subr.bf16.mxu0 0
      %1976 = vmatpush2.bf16.msra.mxu0 %v1667
      %1977 = vmatprep.subr.bf16.mxu0 0
      %1978 = vmatpush2.bf16.msra.mxu0 %v1666
      %1979 = vmatprep.mubr.bf16.mxu0 %v1027
      %1980 = vmatmul.mubr.bf16.gmra.mxu0 %v1154
      %v1981 = vpop.f32.mrf.mxu0
      %v1982 = vadd.f32 %v1821, %v1981
      %v1983 = vpop.f32.mrf.mxu0
      %v1984 = vpop.f32.mrf.mxu0
      %v1985 = vadd.f32 %v1824, %v1984
      %v1986 = vpop.f32.mrf.mxu0
      %1987 = vmatprep.mubr.bf16.mxu0 %v1028
      %1988 = vmatmul.mubr.bf16.gmra.mxu0 %v1155
      %v1989 = vpop.f32.mrf.mxu0
      %v1990 = vadd.f32 %v1829, %v1989
      %v1991 = vpop.f32.mrf.mxu0
      %v1992 = vpop.f32.mrf.mxu0
      %v1993 = vadd.f32 %v1832, %v1992
      %v1994 = vpop.f32.mrf.mxu0
      %1995 = vmatprep.mubr.bf16.mxu0 %v1029
      %1996 = vmatmul.mubr.bf16.gmra.mxu0 %v1156
      %v1997 = vpop.f32.mrf.mxu0
      %v1998 = vadd.f32 %v1837, %v1997
      %v1999 = vpop.f32.mrf.mxu0
      %v2000 = vpop.f32.mrf.mxu0
      %v2001 = vadd.f32 %v1840, %v2000
      %v2002 = vpop.f32.mrf.mxu0
      %2003 = vmatprep.mubr.bf16.mxu0 %v1030
      %2004 = vmatmul.mubr.bf16.gmra.mxu0 %v1157
      %v2005 = vpop.f32.mrf.mxu0
      %v2006 = vadd.f32 %v1845, %v2005
      %v2007 = vpop.f32.mrf.mxu0
      %v2008 = vpop.f32.mrf.mxu0
      %v2009 = vadd.f32 %v1848, %v2008
      %v2010 = vpop.f32.mrf.mxu0
      %2011 = vmatprep.mubr.bf16.mxu0 %v1031
      %2012 = vmatmul.mubr.bf16.gmra.mxu0 %v1158
      %v2013 = vpop.f32.mrf.mxu0
      %v2014 = vadd.f32 %v1853, %v2013
      %v2015 = vpop.f32.mrf.mxu0
      %v2016 = vpop.f32.mrf.mxu0
      %v2017 = vadd.f32 %v1856, %v2016
      %v2018 = vpop.f32.mrf.mxu0
      %2019 = vmatprep.mubr.bf16.mxu0 %v1032
      %2020 = vmatmul.mubr.bf16.gmra.mxu0 %v1159
      %v2021 = vpop.f32.mrf.mxu0
      %v2022 = vadd.f32 %v1861, %v2021
      %v2023 = vpop.f32.mrf.mxu0
      %v2024 = vpop.f32.mrf.mxu0
      %v2025 = vadd.f32 %v1864, %v2024
      %v2026 = vpop.f32.mrf.mxu0
      %2027 = vmatprep.mubr.bf16.mxu0 %v1033
      %2028 = vmatmul.mubr.bf16.gmra.mxu0 %v1160
      %v2029 = vpop.f32.mrf.mxu0
      %v2030 = vadd.f32 %v1869, %v2029
      %v2031 = vpop.f32.mrf.mxu0
      %v2032 = vpop.f32.mrf.mxu0
      %v2033 = vadd.f32 %v1872, %v2032
      %v2034 = vpop.f32.mrf.mxu0
      %2035 = vmatprep.mubr.bf16.mxu0 %v1034
      %2036 = vmatmul.mubr.bf16.gmra.mxu0 %v1161
      %v2037 = vpop.f32.mrf.mxu0
      %v2038 = vadd.f32 %v1877, %v2037
      %v2039 = vpop.f32.mrf.mxu0
      %v2040 = vpop.f32.mrf.mxu0
      %v2041 = vadd.f32 %v1880, %v2040
      %v2042 = vpop.f32.mrf.mxu0
      %2043 = vmatprep.mubr.bf16.mxu0 %v1035
      %2044 = vmatmul.mubr.bf16.gmra.mxu0 %v1162
      %v2045 = vpop.f32.mrf.mxu0
      %v2046 = vadd.f32 %v1885, %v2045
      %v2047 = vpop.f32.mrf.mxu0
      %v2048 = vpop.f32.mrf.mxu0
      %v2049 = vadd.f32 %v1888, %v2048
      %v2050 = vpop.f32.mrf.mxu0
      %2051 = vmatprep.mubr.bf16.mxu0 %v1036
      %2052 = vmatmul.mubr.bf16.gmra.mxu0 %v1163
      %v2053 = vpop.f32.mrf.mxu0
      %v2054 = vadd.f32 %v1893, %v2053
      %v2055 = vpop.f32.mrf.mxu0
      %v2056 = vpop.f32.mrf.mxu0
      %v2057 = vadd.f32 %v1896, %v2056
      %v2058 = vpop.f32.mrf.mxu0
      %2059 = vmatprep.mubr.bf16.mxu0 %v1037
      %2060 = vmatmul.mubr.bf16.gmra.mxu0 %v1164
      %v2061 = vpop.f32.mrf.mxu0
      %v2062 = vadd.f32 %v1901, %v2061
      %v2063 = vpop.f32.mrf.mxu0
      %v2064 = vpop.f32.mrf.mxu0
      %v2065 = vadd.f32 %v1904, %v2064
      %v2066 = vpop.f32.mrf.mxu0
      %2067 = vmatprep.mubr.bf16.mxu0 %v1038
      %2068 = vmatmul.mubr.bf16.gmra.mxu0 %v1165
      %v2069 = vpop.f32.mrf.mxu0
      %v2070 = vadd.f32 %v1909, %v2069
      %v2071 = vpop.f32.mrf.mxu0
      %v2072 = vpop.f32.mrf.mxu0
      %v2073 = vadd.f32 %v1912, %v2072
      %v2074 = vpop.f32.mrf.mxu0
      %2075 = vmatprep.mubr.bf16.mxu0 %v1039
      %2076 = vmatmul.mubr.bf16.gmra.mxu0 %v1166
      %v2077 = vpop.f32.mrf.mxu0
      %v2078 = vadd.f32 %v1917, %v2077
      %v2079 = vpop.f32.mrf.mxu0
      %v2080 = vpop.f32.mrf.mxu0
      %v2081 = vadd.f32 %v1920, %v2080
      %v2082 = vpop.f32.mrf.mxu0
      %2083 = vmatprep.mubr.bf16.mxu0 %v1040
      %2084 = vmatmul.mubr.bf16.gmra.mxu0 %v1167
      %v2085 = vpop.f32.mrf.mxu0
      %v2086 = vadd.f32 %v1925, %v2085
      %v2087 = vpop.f32.mrf.mxu0
      %v2088 = vpop.f32.mrf.mxu0
      %v2089 = vadd.f32 %v1928, %v2088
      %v2090 = vpop.f32.mrf.mxu0
      %2091 = vmatprep.mubr.bf16.mxu0 %v1041
      %2092 = vmatmul.mubr.bf16.gmra.mxu0 %v1168
      %v2093 = vpop.f32.mrf.mxu0
      %v2094 = vadd.f32 %v1933, %v2093
      %v2095 = vpop.f32.mrf.mxu0
      %v2096 = vpop.f32.mrf.mxu0
      %v2097 = vadd.f32 %v1936, %v2096
      %v2098 = vpop.f32.mrf.mxu0
      %2099 = vmatprep.mubr.bf16.mxu0 %v1188
      %2100 = vmatmul.mubr.bf16.gmra.mxu0 %v1169
      %v2101 = vpop.f32.mrf.mxu0
      %v2102 = vadd.f32 %v1941, %v2101
      %v2103 = vpop.f32.mrf.mxu0
      %v2104 = vpop.f32.mrf.mxu0
      %v2105 = vadd.f32 %v1944, %v2104
      %v2106 = vpop.f32.mrf.mxu0
      %2107 = vdwg.mxu0
      %2108 = vmatprep.subr.bf16.mxu0 0
      %2109 = vmatpush1.bf16.msra.mxu0 %v1681
      %2110 = vmatprep.subr.bf16.mxu0 0
      %2111 = vmatpush1.bf16.msra.mxu0 %v1680
      %2112 = vmatprep.subr.bf16.mxu0 0
      %2113 = vmatpush1.bf16.msra.mxu0 %v1679
      %2114 = vmatprep.subr.bf16.mxu0 0
      %2115 = vmatpush1.bf16.msra.mxu0 %v1678
      %2116 = vmatprep.subr.bf16.mxu0 0
      %2117 = vmatpush1.bf16.msra.mxu0 %v1677
      %2118 = vmatprep.subr.bf16.mxu0 0
      %2119 = vmatpush1.bf16.msra.mxu0 %v1676
      %2120 = vmatprep.subr.bf16.mxu0 0
      %2121 = vmatpush1.bf16.msra.mxu0 %v1675
      %2122 = vmatprep.subr.bf16.mxu0 0
      %2123 = vmatpush1.bf16.msra.mxu0 %v1674
      %2124 = vmatprep.subr.bf16.mxu0 0
      %2125 = vmatpush2.bf16.msra.mxu0 %v1689
      %2126 = vmatprep.subr.bf16.mxu0 0
      %2127 = vmatpush2.bf16.msra.mxu0 %v1688
      %2128 = vmatprep.subr.bf16.mxu0 0
      %2129 = vmatpush2.bf16.msra.mxu0 %v1687
      %2130 = vmatprep.subr.bf16.mxu0 0
      %2131 = vmatpush2.bf16.msra.mxu0 %v1686
      %2132 = vmatprep.subr.bf16.mxu0 0
      %2133 = vmatpush2.bf16.msra.mxu0 %v1685
      %2134 = vmatprep.subr.bf16.mxu0 0
      %2135 = vmatpush2.bf16.msra.mxu0 %v1684
      %2136 = vmatprep.subr.bf16.mxu0 0
      %2137 = vmatpush2.bf16.msra.mxu0 %v1683
      %2138 = vmatprep.subr.bf16.mxu0 0
      %2139 = vmatpush2.bf16.msra.mxu0 %v1682
      %2140 = vmatprep.mubr.bf16.mxu0 %v1155
      %2141 = vmatmul.mubr.bf16.gmra.mxu0 %v1091
      %v2142 = vpop.f32.mrf.mxu0
      %v2143 = vadd.f32 %v1982, %v2142
      %v2144 = vpop.f32.mrf.mxu0
      %v2145 = vpop.f32.mrf.mxu0
      %v2146 = vadd.f32 %v1985, %v2145
      %v2147 = vpop.f32.mrf.mxu0
      %2148 = vmatprep.mubr.bf16.mxu0 %v1156
      %2149 = vmatmul.mubr.bf16.gmra.mxu0 %v1092
      %v2150 = vpop.f32.mrf.mxu0
      %v2151 = vadd.f32 %v1990, %v2150
      %v2152 = vpop.f32.mrf.mxu0
      %v2153 = vpop.f32.mrf.mxu0
      %v2154 = vadd.f32 %v1993, %v2153
      %v2155 = vpop.f32.mrf.mxu0
      %2156 = vmatprep.mubr.bf16.mxu0 %v1157
      %2157 = vmatmul.mubr.bf16.gmra.mxu0 %v1093
      %v2158 = vpop.f32.mrf.mxu0
      %v2159 = vadd.f32 %v1998, %v2158
      %v2160 = vpop.f32.mrf.mxu0
      %v2161 = vpop.f32.mrf.mxu0
      %v2162 = vadd.f32 %v2001, %v2161
      %v2163 = vpop.f32.mrf.mxu0
      %2164 = vmatprep.mubr.bf16.mxu0 %v1158
      %2165 = vmatmul.mubr.bf16.gmra.mxu0 %v1094
      %v2166 = vpop.f32.mrf.mxu0
      %v2167 = vadd.f32 %v2006, %v2166
      %v2168 = vpop.f32.mrf.mxu0
      %v2169 = vpop.f32.mrf.mxu0
      %v2170 = vadd.f32 %v2009, %v2169
      %v2171 = vpop.f32.mrf.mxu0
      %2172 = vmatprep.mubr.bf16.mxu0 %v1159
      %2173 = vmatmul.mubr.bf16.gmra.mxu0 %v1095
      %v2174 = vpop.f32.mrf.mxu0
      %v2175 = vadd.f32 %v2014, %v2174
      %v2176 = vpop.f32.mrf.mxu0
      %v2177 = vpop.f32.mrf.mxu0
      %v2178 = vadd.f32 %v2017, %v2177
      %v2179 = vpop.f32.mrf.mxu0
      %2180 = vmatprep.mubr.bf16.mxu0 %v1160
      %2181 = vmatmul.mubr.bf16.gmra.mxu0 %v1096
      %v2182 = vpop.f32.mrf.mxu0
      %v2183 = vadd.f32 %v2022, %v2182
      %v2184 = vpop.f32.mrf.mxu0
      %v2185 = vpop.f32.mrf.mxu0
      %v2186 = vadd.f32 %v2025, %v2185
      %v2187 = vpop.f32.mrf.mxu0
      %2188 = vmatprep.mubr.bf16.mxu0 %v1161
      %2189 = vmatmul.mubr.bf16.gmra.mxu0 %v1097
      %v2190 = vpop.f32.mrf.mxu0
      %v2191 = vadd.f32 %v2030, %v2190
      %v2192 = vpop.f32.mrf.mxu0
      %v2193 = vpop.f32.mrf.mxu0
      %v2194 = vadd.f32 %v2033, %v2193
      %v2195 = vpop.f32.mrf.mxu0
      %2196 = vmatprep.mubr.bf16.mxu0 %v1162
      %2197 = vmatmul.mubr.bf16.gmra.mxu0 %v1098
      %v2198 = vpop.f32.mrf.mxu0
      %v2199 = vadd.f32 %v2038, %v2198
      %v2200 = vpop.f32.mrf.mxu0
      %v2201 = vpop.f32.mrf.mxu0
      %v2202 = vadd.f32 %v2041, %v2201
      %v2203 = vpop.f32.mrf.mxu0
      %2204 = vmatprep.mubr.bf16.mxu0 %v1163
      %2205 = vmatmul.mubr.bf16.gmra.mxu0 %v1099
      %v2206 = vpop.f32.mrf.mxu0
      %v2207 = vadd.f32 %v2046, %v2206
      %v2208 = vpop.f32.mrf.mxu0
      %v2209 = vpop.f32.mrf.mxu0
      %v2210 = vadd.f32 %v2049, %v2209
      %v2211 = vpop.f32.mrf.mxu0
      %2212 = vmatprep.mubr.bf16.mxu0 %v1164
      %2213 = vmatmul.mubr.bf16.gmra.mxu0 %v1100
      %v2214 = vpop.f32.mrf.mxu0
      %v2215 = vadd.f32 %v2054, %v2214
      %v2216 = vpop.f32.mrf.mxu0
      %v2217 = vpop.f32.mrf.mxu0
      %v2218 = vadd.f32 %v2057, %v2217
      %v2219 = vpop.f32.mrf.mxu0
      %2220 = vmatprep.mubr.bf16.mxu0 %v1165
      %2221 = vmatmul.mubr.bf16.gmra.mxu0 %v1101
      %v2222 = vpop.f32.mrf.mxu0
      %v2223 = vadd.f32 %v2062, %v2222
      %v2224 = vpop.f32.mrf.mxu0
      %v2225 = vpop.f32.mrf.mxu0
      %v2226 = vadd.f32 %v2065, %v2225
      %v2227 = vpop.f32.mrf.mxu0
      %2228 = vmatprep.mubr.bf16.mxu0 %v1166
      %2229 = vmatmul.mubr.bf16.gmra.mxu0 %v1102
      %v2230 = vpop.f32.mrf.mxu0
      %v2231 = vadd.f32 %v2070, %v2230
      %v2232 = vpop.f32.mrf.mxu0
      %v2233 = vpop.f32.mrf.mxu0
      %v2234 = vadd.f32 %v2073, %v2233
      %v2235 = vpop.f32.mrf.mxu0
      %2236 = vmatprep.mubr.bf16.mxu0 %v1167
      %2237 = vmatmul.mubr.bf16.gmra.mxu0 %v1103
      %v2238 = vpop.f32.mrf.mxu0
      %v2239 = vadd.f32 %v2078, %v2238
      %v2240 = vpop.f32.mrf.mxu0
      %v2241 = vpop.f32.mrf.mxu0
      %v2242 = vadd.f32 %v2081, %v2241
      %v2243 = vpop.f32.mrf.mxu0
      %2244 = vmatprep.mubr.bf16.mxu0 %v1168
      %2245 = vmatmul.mubr.bf16.gmra.mxu0 %v1104
      %v2246 = vpop.f32.mrf.mxu0
      %v2247 = vadd.f32 %v2086, %v2246
      %v2248 = vpop.f32.mrf.mxu0
      %v2249 = vpop.f32.mrf.mxu0
      %v2250 = vadd.f32 %v2089, %v2249
      %v2251 = vpop.f32.mrf.mxu0
      %2252 = vmatprep.mubr.bf16.mxu0 %v1169
      %2253 = vmatmul.mubr.bf16.gmra.mxu0 %v1105
      %v2254 = vpop.f32.mrf.mxu0
      %v2255 = vadd.f32 %v2094, %v2254
      %v2256 = vpop.f32.mrf.mxu0
      %v2257 = vpop.f32.mrf.mxu0
      %v2258 = vadd.f32 %v2097, %v2257
      %v2259 = vpop.f32.mrf.mxu0
      %2260 = vmatprep.mubr.bf16.mxu0 %v1196
      %2261 = vmatmul.mubr.bf16.gmra.mxu0 %v1192
      %v2262 = vpop.f32.mrf.mxu0
      %v2263 = vadd.f32 %v2102, %v2262
      %v2264 = vpop.f32.mrf.mxu0
      %v2265 = vpop.f32.mrf.mxu0
      %v2266 = vadd.f32 %v2105, %v2265
      %v2267 = vpop.f32.mrf.mxu0
      %2268 = vdwg.mxu0
      %2269 = vmatprep.subr.bf16.mxu0 0
      %2270 = vmatpush1.bf16.msra.mxu0 %v1697
      %2271 = vmatprep.subr.bf16.mxu0 0
      %2272 = vmatpush1.bf16.msra.mxu0 %v1696
      %2273 = vmatprep.subr.bf16.mxu0 0
      %2274 = vmatpush1.bf16.msra.mxu0 %v1695
      %2275 = vmatprep.subr.bf16.mxu0 0
      %2276 = vmatpush1.bf16.msra.mxu0 %v1694
      %2277 = vmatprep.subr.bf16.mxu0 0
      %2278 = vmatpush1.bf16.msra.mxu0 %v1693
      %2279 = vmatprep.subr.bf16.mxu0 0
      %2280 = vmatpush1.bf16.msra.mxu0 %v1692
      %2281 = vmatprep.subr.bf16.mxu0 0
      %2282 = vmatpush1.bf16.msra.mxu0 %v1691
      %2283 = vmatprep.subr.bf16.mxu0 0
      %2284 = vmatpush1.bf16.msra.mxu0 %v1690
      %2285 = vmatprep.subr.bf16.mxu0 0
      %2286 = vmatpush2.bf16.msra.mxu0 %v1705
      %2287 = vmatprep.subr.bf16.mxu0 0
      %2288 = vmatpush2.bf16.msra.mxu0 %v1704
      %2289 = vmatprep.subr.bf16.mxu0 0
      %2290 = vmatpush2.bf16.msra.mxu0 %v1703
      %2291 = vmatprep.subr.bf16.mxu0 0
      %2292 = vmatpush2.bf16.msra.mxu0 %v1702
      %2293 = vmatprep.subr.bf16.mxu0 0
      %2294 = vmatpush2.bf16.msra.mxu0 %v1701
      %2295 = vmatprep.subr.bf16.mxu0 0
      %2296 = vmatpush2.bf16.msra.mxu0 %v1700
      %2297 = vmatprep.subr.bf16.mxu0 0
      %2298 = vmatpush2.bf16.msra.mxu0 %v1699
      %2299 = vmatprep.subr.bf16.mxu0 0
      %2300 = vmatpush2.bf16.msra.mxu0 %v1698
      %2301 = vmatprep.mubr.bf16.mxu0 %v1092
      %2302 = vmatmul.mubr.bf16.gmra.mxu0 %v1028
      %v2303 = vpop.f32.mrf.mxu0
      %v2304 = vadd.f32 %v2143, %v2303
      %v2305 = vpop.f32.mrf.mxu0
      %v2306 = vpop.f32.mrf.mxu0
      %v2307 = vadd.f32 %v2146, %v2306
      %v2308 = vpop.f32.mrf.mxu0
      %2309 = vmatprep.mubr.bf16.mxu0 %v1093
      %2310 = vmatmul.mubr.bf16.gmra.mxu0 %v1029
      %v2311 = vpop.f32.mrf.mxu0
      %v2312 = vadd.f32 %v2151, %v2311
      %v2313 = vpop.f32.mrf.mxu0
      %v2314 = vpop.f32.mrf.mxu0
      %v2315 = vadd.f32 %v2154, %v2314
      %v2316 = vpop.f32.mrf.mxu0
      %2317 = vmatprep.mubr.bf16.mxu0 %v1094
      %2318 = vmatmul.mubr.bf16.gmra.mxu0 %v1030
      %v2319 = vpop.f32.mrf.mxu0
      %v2320 = vadd.f32 %v2159, %v2319
      %v2321 = vpop.f32.mrf.mxu0
      %v2322 = vpop.f32.mrf.mxu0
      %v2323 = vadd.f32 %v2162, %v2322
      %v2324 = vpop.f32.mrf.mxu0
      %2325 = vmatprep.mubr.bf16.mxu0 %v1095
      %2326 = vmatmul.mubr.bf16.gmra.mxu0 %v1031
      %v2327 = vpop.f32.mrf.mxu0
      %v2328 = vadd.f32 %v2167, %v2327
      %v2329 = vpop.f32.mrf.mxu0
      %v2330 = vpop.f32.mrf.mxu0
      %v2331 = vadd.f32 %v2170, %v2330
      %v2332 = vpop.f32.mrf.mxu0
      %2333 = vmatprep.mubr.bf16.mxu0 %v1096
      %2334 = vmatmul.mubr.bf16.gmra.mxu0 %v1032
      %v2335 = vpop.f32.mrf.mxu0
      %v2336 = vadd.f32 %v2175, %v2335
      %v2337 = vpop.f32.mrf.mxu0
      %v2338 = vpop.f32.mrf.mxu0
      %v2339 = vadd.f32 %v2178, %v2338
      %v2340 = vpop.f32.mrf.mxu0
      %2341 = vmatprep.mubr.bf16.mxu0 %v1097
      %2342 = vmatmul.mubr.bf16.gmra.mxu0 %v1033
      %v2343 = vpop.f32.mrf.mxu0
      %v2344 = vadd.f32 %v2183, %v2343
      %v2345 = vpop.f32.mrf.mxu0
      %v2346 = vpop.f32.mrf.mxu0
      %v2347 = vadd.f32 %v2186, %v2346
      %v2348 = vpop.f32.mrf.mxu0
      %2349 = vmatprep.mubr.bf16.mxu0 %v1098
      %2350 = vmatmul.mubr.bf16.gmra.mxu0 %v1034
      %v2351 = vpop.f32.mrf.mxu0
      %v2352 = vadd.f32 %v2191, %v2351
      %v2353 = vpop.f32.mrf.mxu0
      %v2354 = vpop.f32.mrf.mxu0
      %v2355 = vadd.f32 %v2194, %v2354
      %v2356 = vpop.f32.mrf.mxu0
      %2357 = vmatprep.mubr.bf16.mxu0 %v1099
      %2358 = vmatmul.mubr.bf16.gmra.mxu0 %v1035
      %v2359 = vpop.f32.mrf.mxu0
      %v2360 = vadd.f32 %v2199, %v2359
      %v2361 = vpop.f32.mrf.mxu0
      %v2362 = vpop.f32.mrf.mxu0
      %v2363 = vadd.f32 %v2202, %v2362
      %v2364 = vpop.f32.mrf.mxu0
      %2365 = vmatprep.mubr.bf16.mxu0 %v1100
      %2366 = vmatmul.mubr.bf16.gmra.mxu0 %v1036
      %v2367 = vpop.f32.mrf.mxu0
      %v2368 = vadd.f32 %v2207, %v2367
      %v2369 = vpop.f32.mrf.mxu0
      %v2370 = vpop.f32.mrf.mxu0
      %v2371 = vadd.f32 %v2210, %v2370
      %v2372 = vpop.f32.mrf.mxu0
      %2373 = vmatprep.mubr.bf16.mxu0 %v1101
      %2374 = vmatmul.mubr.bf16.gmra.mxu0 %v1037
      %v2375 = vpop.f32.mrf.mxu0
      %v2376 = vadd.f32 %v2215, %v2375
      %v2377 = vpop.f32.mrf.mxu0
      %v2378 = vpop.f32.mrf.mxu0
      %v2379 = vadd.f32 %v2218, %v2378
      %v2380 = vpop.f32.mrf.mxu0
      %2381 = vmatprep.mubr.bf16.mxu0 %v1102
      %2382 = vmatmul.mubr.bf16.gmra.mxu0 %v1038
      %v2383 = vpop.f32.mrf.mxu0
      %v2384 = vadd.f32 %v2223, %v2383
      %v2385 = vpop.f32.mrf.mxu0
      %v2386 = vpop.f32.mrf.mxu0
      %v2387 = vadd.f32 %v2226, %v2386
      %v2388 = vpop.f32.mrf.mxu0
      %2389 = vmatprep.mubr.bf16.mxu0 %v1103
      %2390 = vmatmul.mubr.bf16.gmra.mxu0 %v1039
      %v2391 = vpop.f32.mrf.mxu0
      %v2392 = vadd.f32 %v2231, %v2391
      %v2393 = vpop.f32.mrf.mxu0
      %v2394 = vpop.f32.mrf.mxu0
      %v2395 = vadd.f32 %v2234, %v2394
      %v2396 = vpop.f32.mrf.mxu0
      %2397 = vmatprep.mubr.bf16.mxu0 %v1104
      %2398 = vmatmul.mubr.bf16.gmra.mxu0 %v1040
      %v2399 = vpop.f32.mrf.mxu0
      %v2400 = vadd.f32 %v2239, %v2399
      %v2401 = vpop.f32.mrf.mxu0
      %v2402 = vpop.f32.mrf.mxu0
      %v2403 = vadd.f32 %v2242, %v2402
      %v2404 = vpop.f32.mrf.mxu0
      %2405 = vmatprep.mubr.bf16.mxu0 %v1105
      %2406 = vmatmul.mubr.bf16.gmra.mxu0 %v1041
      %v2407 = vpop.f32.mrf.mxu0
      %v2408 = vadd.f32 %v2247, %v2407
      %v2409 = vpop.f32.mrf.mxu0
      %v2410 = vpop.f32.mrf.mxu0
      %v2411 = vadd.f32 %v2250, %v2410
      %v2412 = vpop.f32.mrf.mxu0
      %2413 = vmatprep.mubr.bf16.mxu0 %v1192
      %2414 = vmatmul.mubr.bf16.gmra.mxu0 %v1188
      %v2415 = vpop.f32.mrf.mxu0
      %v2416 = vadd.f32 %v2255, %v2415
      %v2417 = vpop.f32.mrf.mxu0
      %v2418 = vpop.f32.mrf.mxu0
      %v2419 = vadd.f32 %v2258, %v2418
      %v2420 = vpop.f32.mrf.mxu0
      %2421 = vmatprep.mubr.bf16.mxu0 %v1204
      %2422 = vmatmul.mubr.bf16.gmra.mxu0 %v1200
      %v2423 = vpop.f32.mrf.mxu0
      %v2424 = vadd.f32 %v2263, %v2423
      %v2425 = vpop.f32.mrf.mxu0
      %v2426 = vpop.f32.mrf.mxu0
      %v2427 = vadd.f32 %v2266, %v2426
      %v2428 = vpop.f32.mrf.mxu0
      %2429 = vdwg.mxu0
      %2430 = vmatprep.subr.bf16.mxu0 0
      %2431 = vmatpush1.bf16.msra.mxu0 %v1713
      %2432 = vmatprep.subr.bf16.mxu0 0
      %2433 = vmatpush1.bf16.msra.mxu0 %v1712
      %2434 = vmatprep.subr.bf16.mxu0 0
      %2435 = vmatpush1.bf16.msra.mxu0 %v1711
      %2436 = vmatprep.subr.bf16.mxu0 0
      %2437 = vmatpush1.bf16.msra.mxu0 %v1710
      %2438 = vmatprep.subr.bf16.mxu0 0
      %2439 = vmatpush1.bf16.msra.mxu0 %v1709
      %2440 = vmatprep.subr.bf16.mxu0 0
      %2441 = vmatpush1.bf16.msra.mxu0 %v1708
      %2442 = vmatprep.subr.bf16.mxu0 0
      %2443 = vmatpush1.bf16.msra.mxu0 %v1707
      %2444 = vmatprep.subr.bf16.mxu0 0
      %2445 = vmatpush1.bf16.msra.mxu0 %v1706
      %2446 = vmatprep.subr.bf16.mxu0 0
      %2447 = vmatpush2.bf16.msra.mxu0 0
      %2448 = vmatprep.subr.bf16.mxu0 0
      %2449 = vmatpush2.bf16.msra.mxu0 0
      %2450 = vmatprep.subr.bf16.mxu0 0
      %2451 = vmatpush2.bf16.msra.mxu0 0
      %2452 = vmatprep.subr.bf16.mxu0 0
      %2453 = vmatpush2.bf16.msra.mxu0 0
      %2454 = vmatprep.subr.bf16.mxu0 0
      %2455 = vmatpush2.bf16.msra.mxu0 0
      %2456 = vmatprep.subr.bf16.mxu0 0
      %2457 = vmatpush2.bf16.msra.mxu0 0
      %2458 = vmatprep.subr.bf16.mxu0 0
      %2459 = vmatpush2.bf16.msra.mxu0 0
      %2460 = vmatprep.subr.bf16.mxu0 0
      %2461 = vmatpush2.bf16.msra.mxu0 0
      %2462 = vmatprep.mubr.bf16.mxu0 0
      %2463 = vmatmul.mubr.bf16.gmra.mxu0 %v1156
      %v2464 = vpop.f32.mrf.mxu0
      %v2465 = vadd.f32 %v2304, %v2464
      %v2466 = vpop.f32.mrf.mxu0
      %v2467 = vpop.f32.mrf.mxu0
      %v2468 = vadd.f32 %v2307, %v2467
      %v2469 = vpop.f32.mrf.mxu0
      %2470 = vmatprep.mubr.bf16.mxu0 0
      %2471 = vmatmul.mubr.bf16.gmra.mxu0 %v1157
      %v2472 = vpop.f32.mrf.mxu0
      %v2473 = vadd.f32 %v2312, %v2472
      %v2474 = vpop.f32.mrf.mxu0
      %v2475 = vpop.f32.mrf.mxu0
      %v2476 = vadd.f32 %v2315, %v2475
      %v2477 = vpop.f32.mrf.mxu0
      %2478 = vmatprep.mubr.bf16.mxu0 0
      %2479 = vmatmul.mubr.bf16.gmra.mxu0 %v1158
      %v2480 = vpop.f32.mrf.mxu0
      %v2481 = vadd.f32 %v2320, %v2480
      %v2482 = vpop.f32.mrf.mxu0
      %v2483 = vpop.f32.mrf.mxu0
      %v2484 = vadd.f32 %v2323, %v2483
      %v2485 = vpop.f32.mrf.mxu0
      %2486 = vmatprep.mubr.bf16.mxu0 0
      %2487 = vmatmul.mubr.bf16.gmra.mxu0 %v1159
      %v2488 = vpop.f32.mrf.mxu0
      %v2489 = vadd.f32 %v2328, %v2488
      %v2490 = vpop.f32.mrf.mxu0
      %v2491 = vpop.f32.mrf.mxu0
      %v2492 = vadd.f32 %v2331, %v2491
      %v2493 = vpop.f32.mrf.mxu0
      %2494 = vmatprep.mubr.bf16.mxu0 0
      %2495 = vmatmul.mubr.bf16.gmra.mxu0 %v1160
      %v2496 = vpop.f32.mrf.mxu0
      %v2497 = vadd.f32 %v2336, %v2496
      %v2498 = vpop.f32.mrf.mxu0
      %v2499 = vpop.f32.mrf.mxu0
      %v2500 = vadd.f32 %v2339, %v2499
      %v2501 = vpop.f32.mrf.mxu0
      %2502 = vmatprep.mubr.bf16.mxu0 0
      %2503 = vmatmul.mubr.bf16.gmra.mxu0 %v1161
      %v2504 = vpop.f32.mrf.mxu0
      %v2505 = vadd.f32 %v2344, %v2504
      %v2506 = vpop.f32.mrf.mxu0
      %v2507 = vpop.f32.mrf.mxu0
      %v2508 = vadd.f32 %v2347, %v2507
      %v2509 = vpop.f32.mrf.mxu0
      %2510 = vmatprep.mubr.bf16.mxu0 0
      %2511 = vmatmul.mubr.bf16.gmra.mxu0 %v1162
      %v2512 = vpop.f32.mrf.mxu0
      %v2513 = vadd.f32 %v2352, %v2512
      %v2514 = vpop.f32.mrf.mxu0
      %v2515 = vpop.f32.mrf.mxu0
      %v2516 = vadd.f32 %v2355, %v2515
      %v2517 = vpop.f32.mrf.mxu0
      %2518 = vmatprep.mubr.bf16.mxu0 0
      %2519 = vmatmul.mubr.bf16.gmra.mxu0 %v1163
      %v2520 = vpop.f32.mrf.mxu0
      %v2521 = vadd.f32 %v2360, %v2520
      %v2522 = vpop.f32.mrf.mxu0
      %v2523 = vpop.f32.mrf.mxu0
      %v2524 = vadd.f32 %v2363, %v2523
      %v2525 = vpop.f32.mrf.mxu0
      %2526 = vmatprep.mubr.bf16.mxu0 0
      %2527 = vmatmul.mubr.bf16.gmra.mxu0 %v1164
      %v2528 = vpop.f32.mrf.mxu0
      %v2529 = vadd.f32 %v2368, %v2528
      %v2530 = vpop.f32.mrf.mxu0
      %v2531 = vpop.f32.mrf.mxu0
      %v2532 = vadd.f32 %v2371, %v2531
      %v2533 = vpop.f32.mrf.mxu0
      %2534 = vmatprep.mubr.bf16.mxu0 0
      %2535 = vmatmul.mubr.bf16.gmra.mxu0 %v1165
      %v2536 = vpop.f32.mrf.mxu0
      %v2537 = vadd.f32 %v2376, %v2536
      %v2538 = vpop.f32.mrf.mxu0
      %v2539 = vpop.f32.mrf.mxu0
      %v2540 = vadd.f32 %v2379, %v2539
      %v2541 = vpop.f32.mrf.mxu0
      %2542 = vmatprep.mubr.bf16.mxu0 0
      %2543 = vmatmul.mubr.bf16.gmra.mxu0 %v1166
      %v2544 = vpop.f32.mrf.mxu0
      %v2545 = vadd.f32 %v2384, %v2544
      %v2546 = vpop.f32.mrf.mxu0
      %v2547 = vpop.f32.mrf.mxu0
      %v2548 = vadd.f32 %v2387, %v2547
      %v2549 = vpop.f32.mrf.mxu0
      %2550 = vmatprep.mubr.bf16.mxu0 0
      %2551 = vmatmul.mubr.bf16.gmra.mxu0 %v1167
      %v2552 = vpop.f32.mrf.mxu0
      %v2553 = vadd.f32 %v2392, %v2552
      %v2554 = vpop.f32.mrf.mxu0
      %v2555 = vpop.f32.mrf.mxu0
      %v2556 = vadd.f32 %v2395, %v2555
      %v2557 = vpop.f32.mrf.mxu0
      %2558 = vmatprep.mubr.bf16.mxu0 0
      %2559 = vmatmul.mubr.bf16.gmra.mxu0 %v1168
      %v2560 = vpop.f32.mrf.mxu0
      %v2561 = vadd.f32 %v2400, %v2560
      %v2562 = vpop.f32.mrf.mxu0
      %v2563 = vpop.f32.mrf.mxu0
      %v2564 = vadd.f32 %v2403, %v2563
      %v2565 = vpop.f32.mrf.mxu0
      %2566 = vmatprep.mubr.bf16.mxu0 0
      %2567 = vmatmul.mubr.bf16.gmra.mxu0 %v1169
      %v2568 = vpop.f32.mrf.mxu0
      %v2569 = vadd.f32 %v2408, %v2568
      %v2570 = vpop.f32.mrf.mxu0
      %v2571 = vpop.f32.mrf.mxu0
      %v2572 = vadd.f32 %v2411, %v2571
      %v2573 = vpop.f32.mrf.mxu0
      %2574 = vmatprep.mubr.bf16.mxu0 0
      %2575 = vmatmul.mubr.bf16.gmra.mxu0 %v1196
      %v2576 = vpop.f32.mrf.mxu0
      %v2577 = vadd.f32 %v2416, %v2576
      %v2578 = vpop.f32.mrf.mxu0
      %v2579 = vpop.f32.mrf.mxu0
      %v2580 = vadd.f32 %v2419, %v2579
      %v2581 = vpop.f32.mrf.mxu0
      %2582 = vmatprep.mubr.bf16.mxu0 0
      %2583 = vmatmul.mubr.bf16.gmra.mxu0 %v1208
      %v2584 = vpop.f32.mrf.mxu0
      %v2585 = vadd.f32 %v2424, %v2584
      %v2586 = vpop.f32.mrf.mxu0
      %v2587 = vpop.f32.mrf.mxu0
      %v2588 = vadd.f32 %v2427, %v2587
      %v2589 = vpop.f32.mrf.mxu0
      %2590 = vdwg.mxu0
      %v2591 = vld [vmem:[%s301] sm:$0x1]
      %v2593 = vlaneseq
      %v2594 = vshrl.u32 %v2593, 7
      %v2595 = vsub.s32 0, %v2594
      %v2596 = vrot.slane %v2591, %v2595
      %v2598 = vmul.f32 %v2465, %v2596
      %v2599 = vmul.f32 %v2468, %v2596
      %v2600 = vmul.f32 %v2473, %v2596
      %v2601 = vmul.f32 %v2476, %v2596
      %v2602 = vmul.f32 %v2481, %v2596
      %v2603 = vmul.f32 %v2484, %v2596
      %v2604 = vmul.f32 %v2489, %v2596
      %v2605 = vmul.f32 %v2492, %v2596
      %v2606 = vmul.f32 %v2497, %v2596
      %v2607 = vmul.f32 %v2500, %v2596
      %v2608 = vmul.f32 %v2505, %v2596
      %v2609 = vmul.f32 %v2508, %v2596
      %v2610 = vmul.f32 %v2513, %v2596
      %v2611 = vmul.f32 %v2516, %v2596
      %v2612 = vmul.f32 %v2521, %v2596
      %v2613 = vmul.f32 %v2524, %v2596
      %v2614 = vmul.f32 %v2529, %v2596
      %v2615 = vmul.f32 %v2532, %v2596
      %v2616 = vmul.f32 %v2537, %v2596
      %v2617 = vmul.f32 %v2540, %v2596
      %v2618 = vmul.f32 %v2545, %v2596
      %v2619 = vmul.f32 %v2548, %v2596
      %v2620 = vmul.f32 %v2553, %v2596
      %v2621 = vmul.f32 %v2556, %v2596
      %v2622 = vmul.f32 %v2561, %v2596
      %v2623 = vmul.f32 %v2564, %v2596
      %v2624 = vmul.f32 %v2569, %v2596
      %v2625 = vmul.f32 %v2572, %v2596
      %v2626 = vmul.f32 %v2577, %v2596
      %v2627 = vmul.f32 %v2580, %v2596
      %v2628 = vmul.f32 %v2585, %v2596
      %v2629 = vmul.f32 %v2588, %v2596
      %v2630 = vld [vmem:[%s304] sm:$0x1]
      %v2632 = vlaneseq
      %v2633 = vshrl.u32 %v2632, 7
      %v2634 = vsub.s32 0, %v2633
      %v2635 = vrot.slane %v2630, %v2634
      %v2637 = vadd.f32 %v2598, %v2635
      %v2638 = vadd.f32 %v2599, %v2635
      %v2639 = vadd.f32 %v2600, %v2635
      %v2640 = vadd.f32 %v2601, %v2635
      %v2641 = vadd.f32 %v2602, %v2635
      %v2642 = vadd.f32 %v2603, %v2635
      %v2643 = vadd.f32 %v2604, %v2635
      %v2644 = vadd.f32 %v2605, %v2635
      %v2645 = vadd.f32 %v2606, %v2635
      %v2646 = vadd.f32 %v2607, %v2635
      %v2647 = vadd.f32 %v2608, %v2635
      %v2648 = vadd.f32 %v2609, %v2635
      %v2649 = vadd.f32 %v2610, %v2635
      %v2650 = vadd.f32 %v2611, %v2635
      %v2651 = vadd.f32 %v2612, %v2635
      %v2652 = vadd.f32 %v2613, %v2635
      %v2653 = vadd.f32 %v2614, %v2635
      %v2654 = vadd.f32 %v2615, %v2635
      %v2655 = vadd.f32 %v2616, %v2635
      %v2656 = vadd.f32 %v2617, %v2635
      %v2657 = vadd.f32 %v2618, %v2635
      %v2658 = vadd.f32 %v2619, %v2635
      %v2659 = vadd.f32 %v2620, %v2635
      %v2660 = vadd.f32 %v2621, %v2635
      %v2661 = vadd.f32 %v2622, %v2635
      %v2662 = vadd.f32 %v2623, %v2635
      %v2663 = vadd.f32 %v2624, %v2635
      %v2664 = vadd.f32 %v2625, %v2635
      %v2665 = vadd.f32 %v2626, %v2635
      %v2666 = vadd.f32 %v2627, %v2635
      %v2667 = vadd.f32 %v2628, %v2635
      %v2668 = vadd.f32 %v2629, %v2635
      %v2669 = vld [vmem:[%s312] sm:$0xf]
      %v2670 = vld [vmem:[%s312 + $0x4] sm:$0xf]
      %v2671 = vld [vmem:[%s312 + $0x8] sm:$0xf]
      %v2672 = vld [vmem:[%s312 + $0xc] sm:$0xf]
      %v2673 = vld [vmem:[%s312 + $0x10] sm:$0xf]
      %v2674 = vld [vmem:[%s312 + $0x14] sm:$0xf]
      %v2675 = vld [vmem:[%s312 + $0x18] sm:$0xf]
      %v2676 = vld [vmem:[%s312 + $0x1c] sm:$0xf]
      %v2677 = vld [vmem:[%s312 + $0x20] sm:$0xf]
      %v2678 = vld [vmem:[%s312 + $0x24] sm:$0xf]
      %v2679 = vld [vmem:[%s312 + $0x28] sm:$0xf]
      %v2680 = vld [vmem:[%s312 + $0x2c] sm:$0xf]
      %v2681 = vld [vmem:[%s312 + $0x30] sm:$0xf]
      %v2682 = vld [vmem:[%s312 + $0x34] sm:$0xf]
      %v2683 = vld [vmem:[%s312 + $0x38] sm:$0xf]
      %v2684 = vld [vmem:[%s312 + $0x3c] sm:$0xf]
      %v2685 = vld [vmem:[%s312 + $0x40] sm:$0xf]
      %v2686 = vld [vmem:[%s312 + $0x44] sm:$0xf]
      %v2687 = vld [vmem:[%s312 + $0x48] sm:$0xf]
      %v2688 = vld [vmem:[%s312 + $0x4c] sm:$0xf]
      %v2689 = vld [vmem:[%s312 + $0x50] sm:$0xf]
      %v2690 = vld [vmem:[%s312 + $0x54] sm:$0xf]
      %v2691 = vld [vmem:[%s312 + $0x58] sm:$0xf]
      %v2692 = vld [vmem:[%s312 + $0x5c] sm:$0xf]
      %v2693 = vld [vmem:[%s312 + $0x60] sm:$0xf]
      %v2694 = vld [vmem:[%s312 + $0x64] sm:$0xf]
      %v2695 = vld [vmem:[%s312 + $0x68] sm:$0xf]
      %v2696 = vld [vmem:[%s312 + $0x6c] sm:$0xf]
      %v2697 = vld [vmem:[%s312 + $0x70] sm:$0xf]
      %v2698 = vld [vmem:[%s312 + $0x74] sm:$0xf]
      %v2699 = vld [vmem:[%s312 + $0x78] sm:$0xf]
      %v2700 = vld [vmem:[%s312 + $0x7c] sm:$0xf]
      %v2701 = vunpack.c.l.bf16 %v2669
      %v2702 = vunpack.c.l.bf16 %v2670
      %v2703 = vunpack.c.l.bf16 %v2671
      %v2704 = vunpack.c.l.bf16 %v2672
      %v2705 = vunpack.c.l.bf16 %v2673
      %v2706 = vunpack.c.l.bf16 %v2674
      %v2707 = vunpack.c.l.bf16 %v2675
      %v2708 = vunpack.c.l.bf16 %v2676
      %v2709 = vunpack.c.l.bf16 %v2677
      %v2710 = vunpack.c.l.bf16 %v2678
      %v2711 = vunpack.c.l.bf16 %v2679
      %v2712 = vunpack.c.l.bf16 %v2680
      %v2713 = vunpack.c.l.bf16 %v2681
      %v2714 = vunpack.c.l.bf16 %v2682
      %v2715 = vunpack.c.l.bf16 %v2683
      %v2716 = vunpack.c.l.bf16 %v2684
      %v2717 = vunpack.c.l.bf16 %v2685
      %v2718 = vunpack.c.l.bf16 %v2686
      %v2719 = vunpack.c.l.bf16 %v2687
      %v2720 = vunpack.c.l.bf16 %v2688
      %v2721 = vunpack.c.l.bf16 %v2689
      %v2722 = vunpack.c.l.bf16 %v2690
      %v2723 = vunpack.c.l.bf16 %v2691
      %v2724 = vunpack.c.l.bf16 %v2692
      %v2725 = vunpack.c.l.bf16 %v2693
      %v2726 = vunpack.c.l.bf16 %v2694
      %v2727 = vunpack.c.l.bf16 %v2695
      %v2728 = vunpack.c.l.bf16 %v2696
      %v2729 = vunpack.c.l.bf16 %v2697
      %v2730 = vunpack.c.l.bf16 %v2698
      %v2731 = vunpack.c.l.bf16 %v2699
      %v2732 = vunpack.c.l.bf16 %v2700
      %v2733 = vadd.f32 %v2637, %v2701
      %v2734 = vadd.f32 %v2638, %v2702
      %v2735 = vadd.f32 %v2639, %v2703
      %v2736 = vadd.f32 %v2640, %v2704
      %v2737 = vadd.f32 %v2641, %v2705
      %v2738 = vadd.f32 %v2642, %v2706
      %v2739 = vadd.f32 %v2643, %v2707
      %v2740 = vadd.f32 %v2644, %v2708
      %v2741 = vadd.f32 %v2645, %v2709
      %v2742 = vadd.f32 %v2646, %v2710
      %v2743 = vadd.f32 %v2647, %v2711
      %v2744 = vadd.f32 %v2648, %v2712
      %v2745 = vadd.f32 %v2649, %v2713
      %v2746 = vadd.f32 %v2650, %v2714
      %v2747 = vadd.f32 %v2651, %v2715
      %v2748 = vadd.f32 %v2652, %v2716
      %v2749 = vadd.f32 %v2653, %v2717
      %v2750 = vadd.f32 %v2654, %v2718
      %v2751 = vadd.f32 %v2655, %v2719
      %v2752 = vadd.f32 %v2656, %v2720
      %v2753 = vadd.f32 %v2657, %v2721
      %v2754 = vadd.f32 %v2658, %v2722
      %v2755 = vadd.f32 %v2659, %v2723
      %v2756 = vadd.f32 %v2660, %v2724
      %v2757 = vadd.f32 %v2661, %v2725
      %v2758 = vadd.f32 %v2662, %v2726
      %v2759 = vadd.f32 %v2663, %v2727
      %v2760 = vadd.f32 %v2664, %v2728
      %v2761 = vadd.f32 %v2665, %v2729
      %v2762 = vadd.f32 %v2666, %v2730
      %v2763 = vadd.f32 %v2667, %v2731
      %v2764 = vadd.f32 %v2668, %v2732
      %v2765 = vmax.f32 %v2733, 0.0
      %v2766 = vmax.f32 %v2734, 0.0
      %v2767 = vmax.f32 %v2735, 0.0
      %v2768 = vmax.f32 %v2736, 0.0
      %v2769 = vmax.f32 %v2737, 0.0
      %v2770 = vmax.f32 %v2738, 0.0
      %v2771 = vmax.f32 %v2739, 0.0
      %v2772 = vmax.f32 %v2740, 0.0
      %v2773 = vmax.f32 %v2741, 0.0
      %v2774 = vmax.f32 %v2742, 0.0
      %v2775 = vmax.f32 %v2743, 0.0
      %v2776 = vmax.f32 %v2744, 0.0
      %v2777 = vmax.f32 %v2745, 0.0
      %v2778 = vmax.f32 %v2746, 0.0
      %v2779 = vmax.f32 %v2747, 0.0
      %v2780 = vmax.f32 %v2748, 0.0
      %v2781 = vmax.f32 %v2749, 0.0
      %v2782 = vmax.f32 %v2750, 0.0
      %v2783 = vmax.f32 %v2751, 0.0
      %v2784 = vmax.f32 %v2752, 0.0
      %v2785 = vmax.f32 %v2753, 0.0
      %v2786 = vmax.f32 %v2754, 0.0
      %v2787 = vmax.f32 %v2755, 0.0
      %v2788 = vmax.f32 %v2756, 0.0
      %v2789 = vmax.f32 %v2757, 0.0
      %v2790 = vmax.f32 %v2758, 0.0
      %v2791 = vmax.f32 %v2759, 0.0
      %v2792 = vmax.f32 %v2760, 0.0
      %v2793 = vmax.f32 %v2761, 0.0
      %v2794 = vmax.f32 %v2762, 0.0
      %v2795 = vmax.f32 %v2763, 0.0
      %v2796 = vmax.f32 %v2764, 0.0
      %2797 = vst [vmem:[%s320] sm:$0xff] %v2765
      %2798 = vst [vmem:[%s320 + $0x8] sm:$0xff] %v2766
      %2799 = vst [vmem:[%s320 + $0x10] sm:$0xff] %v2767
      %2800 = vst [vmem:[%s320 + $0x18] sm:$0xff] %v2768
      %2801 = vst [vmem:[%s320 + $0x20] sm:$0xff] %v2769
      %2802 = vst [vmem:[%s320 + $0x28] sm:$0xff] %v2770
      %2803 = vst [vmem:[%s320 + $0x30] sm:$0xff] %v2771
      %2804 = vst [vmem:[%s320 + $0x38] sm:$0xff] %v2772
      %2805 = vst [vmem:[%s320 + $0x40] sm:$0xff] %v2773
      %2806 = vst [vmem:[%s320 + $0x48] sm:$0xff] %v2774
      %2807 = vst [vmem:[%s320 + $0x50] sm:$0xff] %v2775
      %2808 = vst [vmem:[%s320 + $0x58] sm:$0xff] %v2776
      %2809 = vst [vmem:[%s320 + $0x60] sm:$0xff] %v2777
      %2810 = vst [vmem:[%s320 + $0x68] sm:$0xff] %v2778
      %2811 = vst [vmem:[%s320 + $0x70] sm:$0xff] %v2779
      %2812 = vst [vmem:[%s320 + $0x78] sm:$0xff] %v2780
      %2813 = vst [vmem:[%s320 + $0x80] sm:$0xff] %v2781
      %2814 = vst [vmem:[%s320 + $0x88] sm:$0xff] %v2782
      %2815 = vst [vmem:[%s320 + $0x90] sm:$0xff] %v2783
      %2816 = vst [vmem:[%s320 + $0x98] sm:$0xff] %v2784
      %2817 = vst [vmem:[%s320 + $0xa0] sm:$0xff] %v2785
      %2818 = vst [vmem:[%s320 + $0xa8] sm:$0xff] %v2786
      %2819 = vst [vmem:[%s320 + $0xb0] sm:$0xff] %v2787
      %2820 = vst [vmem:[%s320 + $0xb8] sm:$0xff] %v2788
      %2821 = vst [vmem:[%s320 + $0xc0] sm:$0xff] %v2789
      %2822 = vst [vmem:[%s320 + $0xc8] sm:$0xff] %v2790
      %2823 = vst [vmem:[%s320 + $0xd0] sm:$0xff] %v2791
      %2824 = vst [vmem:[%s320 + $0xd8] sm:$0xff] %v2792
      %2825 = vst [vmem:[%s320 + $0xe0] sm:$0xff] %v2793
      %2826 = vst [vmem:[%s320 + $0xe8] sm:$0xff] %v2794
      %2827 = vst [vmem:[%s320 + $0xf0] sm:$0xff] %v2795
      %2828 = vst [vmem:[%s320 + $0xf8] sm:$0xff] %v2796
      %p2829 = scmp.lt.s32.totalorder %s20, 1
      %s2830 = scalar_select %p2829, %s20, 1
      %p2831 = scmp.lt.s32.totalorder %s21, 0
      %s2832 = scalar_select %p2831, %s21, 0
      %s2833 = smul.addr %s2830, 32
      %s2834 = sadd.s32 %s2832, %s2833
      %s2835 = smul.addr %s2834, 8
      %s2836 = scalar_lea.vmem %s5, %s2835
      // Predicated region
      $region41: #{basic_block_forward.3} parent=39 // pred_check
        %p2837 = pneg %p180
      $region42: #{basic_block_forward.3} parent=39 // pred_check_branch
        %2839 = sbr.rel (%p2837) target = $region44
      $region43: #{basic_block_forward.3} parent=39 // pred_region
        _
      $region44: #{basic_block_forward.3} parent=39 // pred_fallthru
        _
    $region40: #{basic_block_forward.3} parent=5 // pred_fallthru
      _
    %p2840 = scmp.le.s32.totalorder 2, %s11
    // Predicated region
    $region45: #{basic_block_forward.3} parent=5 // pred_check
      %p2841 = pneg %p2840
    $region46: #{basic_block_forward.3} parent=5 // pred_check_branch
      %2843 = sbr.rel (%p2841) target = $region48
    $region47: #{basic_block_forward.3} parent=5 // pred_region
      %s2844 = ssub.s32 %s11, 2
      // Predicated region
      $region49: #{basic_block_forward.3} parent=47 // pred_check
        %p2845 = pneg %p186
      $region50: #{basic_block_forward.3} parent=47 // pred_check_branch
        %2847 = sbr.rel (%p2845) target = $region52
      $region51: #{basic_block_forward.3} parent=47 // pred_region
        %p2848 = scmp.lt.s32.totalorder %s22, 1
        %s2849 = scalar_select %p2848, %s22, 1
        %p2850 = scmp.lt.s32.totalorder %s23, 0
        %s2851 = scalar_select %p2850, %s23, 0
        %s2852 = smul.addr %s2849, 32
        %s2853 = sadd.s32 %s2851, %s2852
        %s2854 = smul.addr %s2853, 8
        %s2855 = scalar_lea.vmem %s5, %s2854
      $region52: #{basic_block_forward.3} parent=47 // pred_fallthru
        _
    $region48: #{basic_block_forward.3} parent=5 // pred_fallthru
      _
  $region6: #{basic_block_forward.3} parent=0 // loop_footer
    %s15 = sadd.s32 1, %s11
  $region7: #{basic_block_forward.3} parent=0 // loop_footer_branch
    %10 = sbr.rel target = $region3
  $region8: #{basic_block_forward.3} parent=0 // loop_exit
    _

// kernel: basic_block_forward.2
$region0: #{basic_block_forward.2}
  #allocation0 [shape = 'u32[]', space=smem, size = 0x4, offset = 0x4, fixed_abs, tag = 'smem constant byte address 0x4 - core index']
  #allocation1 [shape = 'u32[144,128]{1,0:T(1,128)}', space=vmem, size = 0x12000, scoped, tag = 'internal scratch']
  %s0 = inlined_call_operand.vmem [shape: bf16[2,18,18,128], index: 0, kind: input, shape index: {}]
  %s1 = inlined_call_operand.vmem [shape: bf16[1152,128], index: 1, kind: input, shape index: {}]
  %s2 = inlined_call_operand.vmem [shape: f32[1,128], index: 2, kind: input, shape index: {}]
  %s3 = inlined_call_operand.vmem [shape: f32[1,128], index: 3, kind: input, shape index: {}]
  %s4 = inlined_call_operand.vmem [shape: bf16[2,16,16,128], index: 4, kind: output, shape index: {}]
  %s5 = sld [smem:[#allocation0]]
  $region49: #{basic_block_forward.2} parent=0
    _
  %s7 = ssub.s32 1, %s5
  %s8 = scalar_select 0, %s7, %s5
  loop: start=0, step=1, limit=4
  $region2: #{basic_block_forward.2} parent=0 // loop_pre_header
    _
  $region3: #{basic_block_forward.2} parent=0 // loop_header
    %s10 = sphi 0, %s14
    %p11 = scmp.ge.s32.totalorder %s10, 4
    %s17 = sphi 0, %s29
    %s18 = sphi 0, %s25
    %s19 = sphi 0, %s17
    %s20 = sphi 0, %s18
    %s21 = sphi 0, %s19
    %s22 = sphi 0, %s20
    %s32 = sphi 0, %s34
    %s35 = sphi 0, %s32
    %s36 = sphi 0, %s35
    %s52 = sphi 0, %s36
    %s58 = sphi 0, %s60
    %s61 = sphi 0, %s58
    %s62 = sphi 0, %s61
    %s78 = sphi 0, %s62
    %s84 = sphi 0, %s86
    %s87 = sphi 0, %s84
    %s88 = sphi 0, %s87
    %s104 = sphi 0, %s88
    %s110 = sphi 0, %s112
    %s113 = sphi 0, %s110
    %s114 = sphi 0, %s113
    %s130 = sphi 0, %s114
    %s138 = sphi 0, %s140
    %s141 = sphi 0, %s138
    %s142 = sphi 0, %s141
    %s158 = sphi 0, %s142
  $region4: #{basic_block_forward.2} parent=0 // loop_header_branch
    %13 = sbr.rel (%p11) target = $region8
  $region5: #{basic_block_forward.2} parent=0 // loop_body
    %s15 = ssub.s32 %s10, 1
    %s16 = ssub.s32 %s10, 2
    %s23 = sadd.s32 1, %s18
    %p24 = scmp.ge.s32.totalorder %s23, 1
    %s25 = scalar_select %p24, 0, %s23
    %s26 = sadd.s32 1, %s17
    %s27 = scalar_select %p24, %s26, %s17
    %p28 = scmp.ge.s32.totalorder %s27, 2
    %s29 = scalar_select %p28, 0, %s27
    %s30 = ssub.s32 %s17, %s29
    %p31 = scmp.eq.s32.totalorder %s30, 0
    %s33 = sadd.s32 %s32, 1
    %s34 = scalar_select %p31, %s32, %s33
    %p37 = pneg %p31
    %p38 = scmp.eq.s32.totalorder %s10, 1
    %p39 = por %p37, %p38
    %p40 = scmp.ne.s32.totalorder %s32, %s35
    %p41 = scmp.eq.s32.totalorder %s10, 0
    %p42 = por %p40, %p41
    %p43 = scmp.ne.s32.totalorder %s32, %s35
    %p44 = scmp.eq.s32.totalorder %s15, 1
    %p45 = por %p43, %p44
    %p46 = scmp.ne.s32.totalorder %s35, %s36
    %p47 = scmp.eq.s32.totalorder %s15, 0
    %p48 = por %p46, %p47
    %p49 = scmp.ne.s32.totalorder %s35, %s36
    %p50 = scmp.eq.s32.totalorder %s16, 1
    %p51 = por %p49, %p50
    %p53 = scmp.ne.s32.totalorder %s36, %s52
    %p54 = scmp.eq.s32.totalorder %s16, 0
    %p55 = por %p53, %p54
    %s56 = ssub.s32 %s18, %s25
    %p57 = scmp.eq.s32.totalorder %s56, 0
    %s59 = sadd.s32 %s58, 1
    %s60 = scalar_select %p57, %s58, %s59
    %p63 = pneg %p57
    %p64 = scmp.eq.s32.totalorder %s10, 1
    %p65 = por %p63, %p64
    %p66 = scmp.ne.s32.totalorder %s58, %s61
    %p67 = scmp.eq.s32.totalorder %s10, 0
    %p68 = por %p66, %p67
    %p69 = scmp.ne.s32.totalorder %s58, %s61
    %p70 = scmp.eq.s32.totalorder %s15, 1
    %p71 = por %p69, %p70
    %p72 = scmp.ne.s32.totalorder %s61, %s62
    %p73 = scmp.eq.s32.totalorder %s15, 0
    %p74 = por %p72, %p73
    %p75 = scmp.ne.s32.totalorder %s61, %s62
    %p76 = scmp.eq.s32.totalorder %s16, 1
    %p77 = por %p75, %p76
    %p79 = scmp.ne.s32.totalorder %s62, %s78
    %p80 = scmp.eq.s32.totalorder %s16, 0
    %p81 = por %p79, %p80
    %s82 = ssub.s32 %s18, %s25
    %p83 = scmp.eq.s32.totalorder %s82, 0
    %s85 = sadd.s32 %s84, 1
    %s86 = scalar_select %p83, %s84, %s85
    %p89 = pneg %p83
    %p90 = scmp.eq.s32.totalorder %s10, 1
    %p91 = por %p89, %p90
    %p92 = scmp.ne.s32.totalorder %s84, %s87
    %p93 = scmp.eq.s32.totalorder %s10, 0
    %p94 = por %p92, %p93
    %p95 = scmp.ne.s32.totalorder %s84, %s87
    %p96 = scmp.eq.s32.totalorder %s15, 1
    %p97 = por %p95, %p96
    %p98 = scmp.ne.s32.totalorder %s87, %s88
    %p99 = scmp.eq.s32.totalorder %s15, 0
    %p100 = por %p98, %p99
    %p101 = scmp.ne.s32.totalorder %s87, %s88
    %p102 = scmp.eq.s32.totalorder %s16, 1
    %p103 = por %p101, %p102
    %p105 = scmp.ne.s32.totalorder %s88, %s104
    %p106 = scmp.eq.s32.totalorder %s16, 0
    %p107 = por %p105, %p106
    %s108 = ssub.s32 %s18, %s25
    %p109 = scmp.eq.s32.totalorder %s108, 0
    %s111 = sadd.s32 %s110, 1
    %s112 = scalar_select %p109, %s110, %s111
    %p115 = pneg %p109
    %p116 = scmp.eq.s32.totalorder %s10, 1
    %p117 = por %p115, %p116
    %p118 = scmp.ne.s32.totalorder %s110, %s113
    %p119 = scmp.eq.s32.totalorder %s10, 0
    %p120 = por %p118, %p119
    %p121 = scmp.ne.s32.totalorder %s110, %s113
    %p122 = scmp.eq.s32.totalorder %s15, 1
    %p123 = por %p121, %p122
    %p124 = scmp.ne.s32.totalorder %s113, %s114
    %p125 = scmp.eq.s32.totalorder %s15, 0
    %p126 = por %p124, %p125
    %p127 = scmp.ne.s32.totalorder %s113, %s114
    %p128 = scmp.eq.s32.totalorder %s16, 1
    %p129 = por %p127, %p128
    %p131 = scmp.ne.s32.totalorder %s114, %s130
    %p132 = scmp.eq.s32.totalorder %s16, 0
    %p133 = por %p131, %p132
    %s134 = ssub.s32 %s17, %s29
    %s135 = ssub.s32 %s18, %s25
    %s136 = sor.u32 %s134, %s135
    %p137 = scmp.eq.s32.totalorder %s136, 0
    %s139 = sadd.s32 %s138, 1
    %s140 = scalar_select %p137, %s138, %s139
    %p143 = pneg %p137
    %p144 = scmp.eq.s32.totalorder %s10, 1
    %p145 = por %p143, %p144
    %p146 = scmp.ne.s32.totalorder %s138, %s141
    %p147 = scmp.eq.s32.totalorder %s10, 0
    %p148 = por %p146, %p147
    %p149 = scmp.ne.s32.totalorder %s138, %s141
    %p150 = scmp.eq.s32.totalorder %s15, 1
    %p151 = por %p149, %p150
    %p152 = scmp.ne.s32.totalorder %s141, %s142
    %p153 = scmp.eq.s32.totalorder %s15, 0
    %p154 = por %p152, %p153
    %p155 = scmp.ne.s32.totalorder %s141, %s142
    %p156 = scmp.eq.s32.totalorder %s16, 1
    %p157 = por %p155, %p156
    %p159 = scmp.ne.s32.totalorder %s142, %s158
    %p160 = scmp.eq.s32.totalorder %s16, 0
    %p161 = por %p159, %p160
    %p162 = scmp.le.s32.totalorder 1, %s10
    %p163 = scmp.lt.s32.totalorder %s10, 3
    %p164 = pnand %p162, %p163
    %p165 = pneg %p164
    // Predicated region
    $region9: #{basic_block_forward.2} parent=5 // pred_check
      _
    $region10: #{basic_block_forward.2} parent=5 // pred_check_branch
      %167 = sbr.rel (%p164) target = $region12
    $region11: #{basic_block_forward.2} parent=5 // pred_region
      %s168 = ssub.s32 %s10, 1
      // Predicated region
      $region13: #{basic_block_forward.2} parent=11 // pred_check
        %p169 = pneg %p74
      $region14: #{basic_block_forward.2} parent=11 // pred_check_branch
        %171 = sbr.rel (%p169) target = $region16
      $region15: #{basic_block_forward.2} parent=11 // pred_region
        %p172 = scmp.lt.s32.totalorder %s20, 0
        %s173 = scalar_select %p172, %s20, 0
        %s174 = smul.addr %s173, 4
        %s175 = scalar_lea.vmem %s1, %s174
      $region16: #{basic_block_forward.2} parent=11 // pred_fallthru
        _
      // Predicated region
      $region17: #{basic_block_forward.2} parent=11 // pred_check
        %p176 = pneg %p100
      $region18: #{basic_block_forward.2} parent=11 // pred_check_branch
        %178 = sbr.rel (%p176) target = $region20
      $region19: #{basic_block_forward.2} parent=11 // pred_region
        %p179 = scmp.lt.s32.totalorder %s20, 0
        %s180 = scalar_select %p179, %s20, 0
        %s181 = scalar_lea.vmem %s2, %s180
      $region20: #{basic_block_forward.2} parent=11 // pred_fallthru
        _
      // Predicated region
      $region21: #{basic_block_forward.2} parent=11 // pred_check
        %p182 = pneg %p126
      $region22: #{basic_block_forward.2} parent=11 // pred_check_branch
        %184 = sbr.rel (%p182) target = $region24
      $region23: #{basic_block_forward.2} parent=11 // pred_region
        %p185 = scmp.lt.s32.totalorder %s20, 0
        %s186 = scalar_select %p185, %s20, 0
        %s187 = scalar_lea.vmem %s3, %s186
      $region24: #{basic_block_forward.2} parent=11 // pred_fallthru
        _
    $region12: #{basic_block_forward.2} parent=5 // pred_fallthru
      _
    %p188 = scmp.lt.s32.totalorder %s10, 2
    // Predicated region
    $region25: #{basic_block_forward.2} parent=5 // pred_check
      %p189 = pneg %p188
    $region26: #{basic_block_forward.2} parent=5 // pred_check_branch
      %191 = sbr.rel (%p189) target = $region28
    $region27: #{basic_block_forward.2} parent=5 // pred_region
      // Predicated region
      $region29: #{basic_block_forward.2} parent=27 // pred_check
        %p192 = pneg %p42
      $region30: #{basic_block_forward.2} parent=27 // pred_check_branch
        %194 = sbr.rel (%p192) target = $region32
      $region31: #{basic_block_forward.2} parent=27 // pred_region
        %p195 = scmp.lt.s32.totalorder %s17, 1
        %s196 = scalar_select %p195, %s17, 1
        %s197 = smul.addr %s196, 54
        %s198 = smul.addr %s197, 4
        %s199 = scalar_lea.vmem %s0, %s198
      $region32: #{basic_block_forward.2} parent=27 // pred_fallthru
        _
    $region28: #{basic_block_forward.2} parent=5 // pred_fallthru
      _
    %p200 = scmp.le.s32.totalorder 1, %s10
    %p201 = scmp.lt.s32.totalorder %s10, 3
    %p202 = pnand %p200, %p201
    %p203 = pneg %p202
    // Predicated region
    $region33: #{basic_block_forward.2} parent=5 // pred_check
      _
    $region34: #{basic_block_forward.2} parent=5 // pred_check_branch
      %205 = sbr.rel (%p202) target = $region36
    $region35: #{basic_block_forward.2} parent=5 // pred_region
      %s206 = ssub.s32 %s10, 1
      %p207 = scmp.lt.s32.totalorder %s19, 1
      %s208 = scalar_select %p207, %s19, 1
      %s209 = smul.addr %s208, 54
      %s210 = smul.addr %s209, 4
      %s211 = scalar_lea.vmem %s0, %s210
      %p212 = pneg %p48
      %p213 = pneg %p45
      %p214 = scmp.lt.s32.totalorder %s20, 0
      %s215 = scalar_select %p214, %s20, 0
      %s216 = smul.addr %s215, 4
      %s217 = scalar_lea.vmem %s1, %s216
      %p218 = pneg %p74
      %p219 = pneg %p71
      %p220 = scmp.lt.s32.totalorder %s20, 0
      %s221 = scalar_select %p220, %s20, 0
      %s222 = scalar_lea.vmem %s2, %s221
      %p223 = pneg %p100
      %p224 = pneg %p97
      %p225 = scmp.lt.s32.totalorder %s20, 0
      %s226 = scalar_select %p225, %s20, 0
      %s227 = scalar_lea.vmem %s3, %s226
      %p228 = pneg %p126
      %p229 = pneg %p123
      %p230 = pneg %p154
      %p231 = pneg %p151
      %p232 = scmp.lt.s32.totalorder %s19, 1
      %s233 = scalar_select %p232, %s19, 1
      %p234 = scmp.lt.s32.totalorder %s20, 0
      %s235 = scalar_select %p234, %s20, 0
      %s236 = smul.addr %s233, 32
      %s237 = sadd.s32 %s235, %s236
      %s238 = smul.addr %s237, 4
      %s239 = scalar_lea.vmem %s4, %s238
      %p240 = scmp.lt.s32.totalorder %s19, 1
      %s241 = scalar_select %p240, %s19, 1
      %s242 = smul.addr %s241, 54
      %s243 = smul.addr %s242, 4
      %s244 = scalar_lea.vmem %s0, %s243
      %p245 = scmp.lt.s32.totalorder %s20, 0
      %s246 = scalar_select %p245, %s20, 0
      %s247 = smul.addr %s246, 4
      %s248 = scalar_lea.vmem %s1, %s247
      %p249 = scmp.lt.s32.totalorder %s20, 0
      %s250 = scalar_select %p249, %s20, 0
      %s251 = scalar_lea.vmem %s2, %s250
      %p252 = scmp.lt.s32.totalorder %s20, 0
      %s253 = scalar_select %p252, %s20, 0
      %s254 = scalar_lea.vmem %s3, %s253
      %p255 = scmp.lt.s32.totalorder %s19, 1
      %s256 = scalar_select %p255, %s19, 1
      %p257 = scmp.lt.s32.totalorder %s20, 0
      %s258 = scalar_select %p257, %s20, 0
      %s259 = smul.addr %s256, 32
      %s260 = sadd.s32 %s258, %s259
      %s261 = smul.addr %s260, 4
      %s262 = scalar_lea.vmem %s4, %s261
      %v264 = vld [vmem:[%s244] sm:$0xf]
      %v265 = vld [vmem:[%s244 + $0x4] sm:$0xf]
      %v266 = vld [vmem:[%s244 + $0x8] sm:$0x1]
      %v267 = vld [vmem:[%s244 + $0xc] sm:$0xf]
      %v268 = vld [vmem:[%s244 + $0x10] sm:$0xf]
      %v269 = vld [vmem:[%s244 + $0x14] sm:$0x1]
      %v270 = vld [vmem:[%s244 + $0x18] sm:$0xf]
      %v271 = vld [vmem:[%s244 + $0x1c] sm:$0xf]
      %v272 = vld [vmem:[%s244 + $0x20] sm:$0x1]
      %v273 = vld [vmem:[%s244 + $0x24] sm:$0xf]
      %v274 = vld [vmem:[%s244 + $0x28] sm:$0xf]
      %v275 = vld [vmem:[%s244 + $0x2c] sm:$0x1]
      %v276 = vld [vmem:[%s244 + $0x30] sm:$0xf]
      %v277 = vld [vmem:[%s244 + $0x34] sm:$0xf]
      %v278 = vld [vmem:[%s244 + $0x38] sm:$0x1]
      %v279 = vld [vmem:[%s244 + $0x3c] sm:$0xf]
      %v280 = vld [vmem:[%s244 + $0x40] sm:$0xf]
      %v281 = vld [vmem:[%s244 + $0x44] sm:$0x1]
      %v282 = vld [vmem:[%s244 + $0x48] sm:$0xf]
      %v283 = vld [vmem:[%s244 + $0x4c] sm:$0xf]
      %v284 = vld [vmem:[%s244 + $0x50] sm:$0x1]
      %v285 = vld [vmem:[%s244 + $0x54] sm:$0xf]
      %v286 = vld [vmem:[%s244 + $0x58] sm:$0xf]
      %v287 = vld [vmem:[%s244 + $0x5c] sm:$0x1]
      %v288 = vld [vmem:[%s244 + $0x60] sm:$0xf]
      %v289 = vld [vmem:[%s244 + $0x64] sm:$0xf]
      %v290 = vld [vmem:[%s244 + $0x68] sm:$0x1]
      %v291 = vld [vmem:[%s244 + $0x6c] sm:$0xf]
      %v292 = vld [vmem:[%s244 + $0x70] sm:$0xf]
      %v293 = vld [vmem:[%s244 + $0x74] sm:$0x1]
      %v294 = vld [vmem:[%s244 + $0x78] sm:$0xf]
      %v295 = vld [vmem:[%s244 + $0x7c] sm:$0xf]
      %v296 = vld [vmem:[%s244 + $0x80] sm:$0x1]
      %v297 = vld [vmem:[%s244 + $0x84] sm:$0xf]
      %v298 = vld [vmem:[%s244 + $0x88] sm:$0xf]
      %v299 = vld [vmem:[%s244 + $0x8c] sm:$0x1]
      %v300 = vld [vmem:[%s244 + $0x90] sm:$0xf]
      %v301 = vld [vmem:[%s244 + $0x94] sm:$0xf]
      %v302 = vld [vmem:[%s244 + $0x98] sm:$0x1]
      %v303 = vld [vmem:[%s244 + $0x9c] sm:$0xf]
      %v304 = vld [vmem:[%s244 + $0xa0] sm:$0xf]
      %v305 = vld [vmem:[%s244 + $0xa4] sm:$0x1]
      %v306 = vld [vmem:[%s244 + $0xa8] sm:$0xf]
      %v307 = vld [vmem:[%s244 + $0xac] sm:$0xf]
      %v308 = vld [vmem:[%s244 + $0xb0] sm:$0x1]
      %v309 = vld [vmem:[%s244 + $0xb4] sm:$0xf]
      %v310 = vld [vmem:[%s244 + $0xb8] sm:$0xf]
      %v311 = vld [vmem:[%s244 + $0xbc] sm:$0x1]
      %v312 = vld [vmem:[%s244 + $0xc0] sm:$0xf]
      %v313 = vld [vmem:[%s244 + $0xc4] sm:$0xf]
      %v314 = vld [vmem:[%s244 + $0xc8] sm:$0x1]
      %v315 = vld [vmem:[%s244 + $0xcc] sm:$0xf]
      %v316 = vld [vmem:[%s244 + $0xd0] sm:$0xf]
      %v317 = vld [vmem:[%s244 + $0xd4] sm:$0x1]
      %vm318 = vsmask.f32 3328
      %vm319 = vsmask.f32 7440
      %vm320 = vmor %vm318, %vm319
      %v322 = vshrl.u32 %v264, 16
      %v324 = vrot.slane %v322, 4
      %v325 = vshll.u32 %v264, 16
      %v327 = vrot.slane %v325, 5
      %v328 = vor.u32 %v324, %v327
      %v329 = vrot.slane %v328, 4
      %v331 = vshll.u32 %v265, 16
      %v333 = vrot.slane %v331, 5
      %v334 = vsel %vm320, %v329, %v333
      %v335 = vshrl.u32 %v265, 16
      %v337 = vrot.slane %v335, 4
      %v338 = vor.u32 %v337, %v333
      %v339 = vrot.slane %v338, 4
      %v341 = vshll.u32 %v266, 16
      %v343 = vrot.slane %v341, 5
      %v344 = vsel %vm320, %v339, %v343
      %v346 = vshrl.u32 %v267, 16
      %v348 = vrot.slane %v346, 4
      %v349 = vshll.u32 %v267, 16
      %v351 = vrot.slane %v349, 5
      %v352 = vor.u32 %v348, %v351
      %v353 = vrot.slane %v352, 4
      %v355 = vshll.u32 %v268, 16
      %v357 = vrot.slane %v355, 5
      %v358 = vsel %vm320, %v353, %v357
      %v359 = vshrl.u32 %v268, 16
      %v361 = vrot.slane %v359, 4
      %v362 = vor.u32 %v361, %v357
      %v363 = vrot.slane %v362, 4
      %v365 = vshll.u32 %v269, 16
      %v367 = vrot.slane %v365, 5
      %v368 = vsel %vm320, %v363, %v367
      %v370 = vshrl.u32 %v270, 16
      %v372 = vrot.slane %v370, 4
      %v373 = vshll.u32 %v270, 16
      %v375 = vrot.slane %v373, 5
      %v376 = vor.u32 %v372, %v375
      %v377 = vrot.slane %v376, 4
      %v379 = vshll.u32 %v271, 16
      %v381 = vrot.slane %v379, 5
      %v382 = vsel %vm320, %v377, %v381
      %v383 = vshrl.u32 %v271, 16
      %v385 = vrot.slane %v383, 4
      %v386 = vor.u32 %v385, %v381
      %v387 = vrot.slane %v386, 4
      %v389 = vshll.u32 %v272, 16
      %v391 = vrot.slane %v389, 5
      %v392 = vsel %vm320, %v387, %v391
      %v394 = vshrl.u32 %v273, 16
      %v396 = vrot.slane %v394, 4
      %v397 = vshll.u32 %v273, 16
      %v399 = vrot.slane %v397, 5
      %v400 = vor.u32 %v396, %v399
      %v401 = vrot.slane %v400, 4
      %v403 = vshll.u32 %v274, 16
      %v405 = vrot.slane %v403, 5
      %v406 = vsel %vm320, %v401, %v405
      %v407 = vshrl.u32 %v274, 16
      %v409 = vrot.slane %v407, 4
      %v410 = vor.u32 %v409, %v405
      %v411 = vrot.slane %v410, 4
      %v413 = vshll.u32 %v275, 16
      %v415 = vrot.slane %v413, 5
      %v416 = vsel %vm320, %v411, %v415
      %v418 = vshrl.u32 %v276, 16
      %v420 = vrot.slane %v418, 4
      %v421 = vshll.u32 %v276, 16
      %v423 = vrot.slane %v421, 5
      %v424 = vor.u32 %v420, %v423
      %v425 = vrot.slane %v424, 4
      %v427 = vshll.u32 %v277, 16
      %v429 = vrot.slane %v427, 5
      %v430 = vsel %vm320, %v425, %v429
      %v431 = vshrl.u32 %v277, 16
      %v433 = vrot.slane %v431, 4
      %v434 = vor.u32 %v433, %v429
      %v435 = vrot.slane %v434, 4
      %v437 = vshll.u32 %v278, 16
      %v439 = vrot.slane %v437, 5
      %v440 = vsel %vm320, %v435, %v439
      %v442 = vshrl.u32 %v279, 16
      %v444 = vrot.slane %v442, 4
      %v445 = vshll.u32 %v279, 16
      %v447 = vrot.slane %v445, 5
      %v448 = vor.u32 %v444, %v447
      %v449 = vrot.slane %v448, 4
      %v451 = vshll.u32 %v280, 16
      %v453 = vrot.slane %v451, 5
      %v454 = vsel %vm320, %v449, %v453
      %v455 = vshrl.u32 %v280, 16
      %v457 = vrot.slane %v455, 4
      %v458 = vor.u32 %v457, %v453
      %v459 = vrot.slane %v458, 4
      %v461 = vshll.u32 %v281, 16
      %v463 = vrot.slane %v461, 5
      %v464 = vsel %vm320, %v459, %v463
      %v466 = vshrl.u32 %v282, 16
      %v468 = vrot.slane %v466, 4
      %v469 = vshll.u32 %v282, 16
      %v471 = vrot.slane %v469, 5
      %v472 = vor.u32 %v468, %v471
      %v473 = vrot.slane %v472, 4
      %v475 = vshll.u32 %v283, 16
      %v477 = vrot.slane %v475, 5
      %v478 = vsel %vm320, %v473, %v477
      %v479 = vshrl.u32 %v283, 16
      %v481 = vrot.slane %v479, 4
      %v482 = vor.u32 %v481, %v477
      %v483 = vrot.slane %v482, 4
      %v485 = vshll.u32 %v284, 16
      %v487 = vrot.slane %v485, 5
      %v488 = vsel %vm320, %v483, %v487
      %v490 = vshrl.u32 %v285, 16
      %v492 = vrot.slane %v490, 4
      %v493 = vshll.u32 %v285, 16
      %v495 = vrot.slane %v493, 5
      %v496 = vor.u32 %v492, %v495
      %v497 = vrot.slane %v496, 4
      %v499 = vshll.u32 %v286, 16
      %v501 = vrot.slane %v499, 5
      %v502 = vsel %vm320, %v497, %v501
      %v503 = vshrl.u32 %v286, 16
      %v505 = vrot.slane %v503, 4
      %v506 = vor.u32 %v505, %v501
      %v507 = vrot.slane %v506, 4
      %v509 = vshll.u32 %v287, 16
      %v511 = vrot.slane %v509, 5
      %v512 = vsel %vm320, %v507, %v511
      %v514 = vshrl.u32 %v288, 16
      %v516 = vrot.slane %v514, 4
      %v517 = vshll.u32 %v288, 16
      %v519 = vrot.slane %v517, 5
      %v520 = vor.u32 %v516, %v519
      %v521 = vrot.slane %v520, 4
      %v523 = vshll.u32 %v289, 16
      %v525 = vrot.slane %v523, 5
      %v526 = vsel %vm320, %v521, %v525
      %v527 = vshrl.u32 %v289, 16
      %v529 = vrot.slane %v527, 4
      %v530 = vor.u32 %v529, %v525
      %v531 = vrot.slane %v530, 4
      %v533 = vshll.u32 %v290, 16
      %v535 = vrot.slane %v533, 5
      %v536 = vsel %vm320, %v531, %v535
      %v538 = vshrl.u32 %v291, 16
      %v540 = vrot.slane %v538, 4
      %v541 = vshll.u32 %v291, 16
      %v543 = vrot.slane %v541, 5
      %v544 = vor.u32 %v540, %v543
      %v545 = vrot.slane %v544, 4
      %v547 = vshll.u32 %v292, 16
      %v549 = vrot.slane %v547, 5
      %v550 = vsel %vm320, %v545, %v549
      %v551 = vshrl.u32 %v292, 16
      %v553 = vrot.slane %v551, 4
      %v554 = vor.u32 %v553, %v549
      %v555 = vrot.slane %v554, 4
      %v557 = vshll.u32 %v293, 16
      %v559 = vrot.slane %v557, 5
      %v560 = vsel %vm320, %v555, %v559
      %v562 = vshrl.u32 %v294, 16
      %v564 = vrot.slane %v562, 4
      %v565 = vshll.u32 %v294, 16
      %v567 = vrot.slane %v565, 5
      %v568 = vor.u32 %v564, %v567
      %v569 = vrot.slane %v568, 4
      %v571 = vshll.u32 %v295, 16
      %v573 = vrot.slane %v571, 5
      %v574 = vsel %vm320, %v569, %v573
      %v575 = vshrl.u32 %v295, 16
      %v577 = vrot.slane %v575, 4
      %v578 = vor.u32 %v577, %v573
      %v579 = vrot.slane %v578, 4
      %v581 = vshll.u32 %v296, 16
      %v583 = vrot.slane %v581, 5
      %v584 = vsel %vm320, %v579, %v583
      %v586 = vshrl.u32 %v297, 16
      %v588 = vrot.slane %v586, 4
      %v589 = vshll.u32 %v297, 16
      %v591 = vrot.slane %v589, 5
      %v592 = vor.u32 %v588, %v591
      %v593 = vrot.slane %v592, 4
      %v595 = vshll.u32 %v298, 16
      %v597 = vrot.slane %v595, 5
      %v598 = vsel %vm320, %v593, %v597
      %v599 = vshrl.u32 %v298, 16
      %v601 = vrot.slane %v599, 4
      %v602 = vor.u32 %v601, %v597
      %v603 = vrot.slane %v602, 4
      %v605 = vshll.u32 %v299, 16
      %v607 = vrot.slane %v605, 5
      %v608 = vsel %vm320, %v603, %v607
      %v610 = vshrl.u32 %v300, 16
      %v612 = vrot.slane %v610, 4
      %v613 = vshll.u32 %v300, 16
      %v615 = vrot.slane %v613, 5
      %v616 = vor.u32 %v612, %v615
      %v617 = vrot.slane %v616, 4
      %v619 = vshll.u32 %v301, 16
      %v621 = vrot.slane %v619, 5
      %v622 = vsel %vm320, %v617, %v621
      %v623 = vshrl.u32 %v301, 16
      %v625 = vrot.slane %v623, 4
      %v626 = vor.u32 %v625, %v621
      %v627 = vrot.slane %v626, 4
      %v629 = vshll.u32 %v302, 16
      %v631 = vrot.slane %v629, 5
      %v632 = vsel %vm320, %v627, %v631
      %v634 = vshrl.u32 %v303, 16
      %v636 = vrot.slane %v634, 4
      %v637 = vshll.u32 %v303, 16
      %v639 = vrot.slane %v637, 5
      %v640 = vor.u32 %v636, %v639
      %v641 = vrot.slane %v640, 4
      %v643 = vshll.u32 %v304, 16
      %v645 = vrot.slane %v643, 5
      %v646 = vsel %vm320, %v641, %v645
      %v647 = vshrl.u32 %v304, 16
      %v649 = vrot.slane %v647, 4
      %v650 = vor.u32 %v649, %v645
      %v651 = vrot.slane %v650, 4
      %v653 = vshll.u32 %v305, 16
      %v655 = vrot.slane %v653, 5
      %v656 = vsel %vm320, %v651, %v655
      %v658 = vshrl.u32 %v306, 16
      %v660 = vrot.slane %v658, 4
      %v661 = vshll.u32 %v306, 16
      %v663 = vrot.slane %v661, 5
      %v664 = vor.u32 %v660, %v663
      %v665 = vrot.slane %v664, 4
      %v667 = vshll.u32 %v307, 16
      %v669 = vrot.slane %v667, 5
      %v670 = vsel %vm320, %v665, %v669
      %v671 = vshrl.u32 %v307, 16
      %v673 = vrot.slane %v671, 4
      %v674 = vor.u32 %v673, %v669
      %v675 = vrot.slane %v674, 4
      %v677 = vshll.u32 %v308, 16
      %v679 = vrot.slane %v677, 5
      %v680 = vsel %vm320, %v675, %v679
      %v682 = vshrl.u32 %v309, 16
      %v684 = vrot.slane %v682, 4
      %v685 = vshll.u32 %v309, 16
      %v687 = vrot.slane %v685, 5
      %v688 = vor.u32 %v684, %v687
      %v689 = vrot.slane %v688, 4
      %v691 = vshll.u32 %v310, 16
      %v693 = vrot.slane %v691, 5
      %v694 = vsel %vm320, %v689, %v693
      %v695 = vshrl.u32 %v310, 16
      %v697 = vrot.slane %v695, 4
      %v698 = vor.u32 %v697, %v693
      %v699 = vrot.slane %v698, 4
      %v701 = vshll.u32 %v311, 16
      %v703 = vrot.slane %v701, 5
      %v704 = vsel %vm320, %v699, %v703
      %vm753 = vcmask 1042432
      %vm754 = vcmask 1046532
      %vm755 = vmor %vm753, %vm754
      %v756 = vrot.slane %v264, 5
      %v757 = vrot.slane %v756, 4
      %v758 = vrot.slane %v265, 5
      %v759 = vsel %vm755, %v757, %v758
      %v760 = vrot.slane %v758, 4
      %v761 = vrot.slane %v266, 5
      %v762 = vsel %vm755, %v760, %v761
      %v763 = vrot.slane %v267, 5
      %v764 = vrot.slane %v763, 4
      %v765 = vrot.slane %v268, 5
      %v766 = vsel %vm755, %v764, %v765
      %v767 = vrot.slane %v765, 4
      %v768 = vrot.slane %v269, 5
      %v769 = vsel %vm755, %v767, %v768
      %v770 = vrot.slane %v270, 5
      %v771 = vrot.slane %v770, 4
      %v772 = vrot.slane %v271, 5
      %v773 = vsel %vm755, %v771, %v772
      %v774 = vrot.slane %v772, 4
      %v775 = vrot.slane %v272, 5
      %v776 = vsel %vm755, %v774, %v775
      %v777 = vrot.slane %v273, 5
      %v778 = vrot.slane %v777, 4
      %v779 = vrot.slane %v274, 5
      %v780 = vsel %vm755, %v778, %v779
      %v781 = vrot.slane %v779, 4
      %v782 = vrot.slane %v275, 5
      %v783 = vsel %vm755, %v781, %v782
      %v784 = vrot.slane %v276, 5
      %v785 = vrot.slane %v784, 4
      %v786 = vrot.slane %v277, 5
      %v787 = vsel %vm755, %v785, %v786
      %v788 = vrot.slane %v786, 4
      %v789 = vrot.slane %v278, 5
      %v790 = vsel %vm755, %v788, %v789
      %v791 = vrot.slane %v279, 5
      %v792 = vrot.slane %v791, 4
      %v793 = vrot.slane %v280, 5
      %v794 = vsel %vm755, %v792, %v793
      %v795 = vrot.slane %v793, 4
      %v796 = vrot.slane %v281, 5
      %v797 = vsel %vm755, %v795, %v796
      %v798 = vrot.slane %v282, 5
      %v799 = vrot.slane %v798, 4
      %v800 = vrot.slane %v283, 5
      %v801 = vsel %vm755, %v799, %v800
      %v802 = vrot.slane %v800, 4
      %v803 = vrot.slane %v284, 5
      %v804 = vsel %vm755, %v802, %v803
      %v805 = vrot.slane %v285, 5
      %v806 = vrot.slane %v805, 4
      %v807 = vrot.slane %v286, 5
      %v808 = vsel %vm755, %v806, %v807
      %v809 = vrot.slane %v807, 4
      %v810 = vrot.slane %v287, 5
      %v811 = vsel %vm755, %v809, %v810
      %v812 = vrot.slane %v288, 5
      %v813 = vrot.slane %v812, 4
      %v814 = vrot.slane %v289, 5
      %v815 = vsel %vm755, %v813, %v814
      %v816 = vrot.slane %v814, 4
      %v817 = vrot.slane %v290, 5
      %v818 = vsel %vm755, %v816, %v817
      %v819 = vrot.slane %v291, 5
      %v820 = vrot.slane %v819, 4
      %v821 = vrot.slane %v292, 5
      %v822 = vsel %vm755, %v820, %v821
      %v823 = vrot.slane %v821, 4
      %v824 = vrot.slane %v293, 5
      %v825 = vsel %vm755, %v823, %v824
      %v826 = vrot.slane %v294, 5
      %v827 = vrot.slane %v826, 4
      %v828 = vrot.slane %v295, 5
      %v829 = vsel %vm755, %v827, %v828
      %v830 = vrot.slane %v828, 4
      %v831 = vrot.slane %v296, 5
      %v832 = vsel %vm755, %v830, %v831
      %v833 = vrot.slane %v297, 5
      %v834 = vrot.slane %v833, 4
      %v835 = vrot.slane %v298, 5
      %v836 = vsel %vm755, %v834, %v835
      %v837 = vrot.slane %v835, 4
      %v838 = vrot.slane %v299, 5
      %v839 = vsel %vm755, %v837, %v838
      %v840 = vrot.slane %v300, 5
      %v841 = vrot.slane %v840, 4
      %v842 = vrot.slane %v301, 5
      %v843 = vsel %vm755, %v841, %v842
      %v844 = vrot.slane %v842, 4
      %v845 = vrot.slane %v302, 5
      %v846 = vsel %vm755, %v844, %v845
      %v847 = vrot.slane %v303, 5
      %v848 = vrot.slane %v847, 4
      %v849 = vrot.slane %v304, 5
      %v850 = vsel %vm755, %v848, %v849
      %v851 = vrot.slane %v849, 4
      %v852 = vrot.slane %v305, 5
      %v853 = vsel %vm755, %v851, %v852
      %v854 = vrot.slane %v306, 5
      %v855 = vrot.slane %v854, 4
      %v856 = vrot.slane %v307, 5
      %v857 = vsel %vm755, %v855, %v856
      %v858 = vrot.slane %v856, 4
      %v859 = vrot.slane %v308, 5
      %v860 = vsel %vm755, %v858, %v859
      %v861 = vrot.slane %v309, 5
      %v862 = vrot.slane %v861, 4
      %v863 = vrot.slane %v310, 5
      %v864 = vsel %vm755, %v862, %v863
      %v865 = vrot.slane %v863, 4
      %v866 = vrot.slane %v311, 5
      %v867 = vsel %vm755, %v865, %v866
      %v869 = vshrl.u32 %v312, 16
      %v871 = vrot.slane %v869, 4
      %v872 = vshll.u32 %v312, 16
      %v874 = vrot.slane %v872, 5
      %v875 = vor.u32 %v871, %v874
      %v876 = vrot.slane %v875, 4
      %v878 = vshll.u32 %v313, 16
      %v880 = vrot.slane %v878, 5
      %v881 = vsel %vm320, %v876, %v880
      %v882 = vshrl.u32 %v313, 16
      %v884 = vrot.slane %v882, 4
      %v885 = vor.u32 %v884, %v880
      %v886 = vrot.slane %v885, 4
      %v888 = vshll.u32 %v314, 16
      %v890 = vrot.slane %v888, 5
      %v891 = vsel %vm320, %v886, %v890
      %v895 = vrot.slane %v312, 5
      %v896 = vrot.slane %v895, 4
      %v897 = vrot.slane %v313, 5
      %v898 = vsel %vm755, %v896, %v897
      %v899 = vrot.slane %v897, 4
      %v900 = vrot.slane %v314, 5
      %v901 = vsel %vm755, %v899, %v900
      %v903 = vshrl.u32 %v315, 16
      %v905 = vrot.slane %v903, 4
      %v906 = vshll.u32 %v315, 16
      %v908 = vrot.slane %v906, 5
      %v909 = vor.u32 %v905, %v908
      %v910 = vrot.slane %v909, 4
      %v912 = vshll.u32 %v316, 16
      %v914 = vrot.slane %v912, 5
      %v915 = vsel %vm320, %v910, %v914
      %v916 = vshrl.u32 %v316, 16
      %v918 = vrot.slane %v916, 4
      %v919 = vor.u32 %v918, %v914
      %v920 = vrot.slane %v919, 4
      %v922 = vshll.u32 %v317, 16
      %v924 = vrot.slane %v922, 5
      %v925 = vsel %vm320, %v920, %v924
      %v929 = vrot.slane %v315, 5
      %v930 = vrot.slane %v929, 4
      %v931 = vrot.slane %v316, 5
      %v932 = vsel %vm755, %v930, %v931
      %v933 = vrot.slane %v931, 4
      %v934 = vrot.slane %v317, 5
      %v935 = vsel %vm755, %v933, %v934
      %v936 = vunpack.c.l.b16 %v264
      %v937 = vunpack.c.l.b16 %v265
      %v938 = vunpack.c.l.b16 %v267
      %v939 = vunpack.c.l.b16 %v268
      %v940 = vunpack.c.l.b16 %v270
      %v941 = vunpack.c.l.b16 %v271
      %v942 = vunpack.c.l.b16 %v273
      %v943 = vunpack.c.l.b16 %v274
      %v944 = vunpack.c.l.b16 %v276
      %v945 = vunpack.c.l.b16 %v277
      %v946 = vunpack.c.l.b16 %v279
      %v947 = vunpack.c.l.b16 %v280
      %v948 = vunpack.c.l.b16 %v282
      %v949 = vunpack.c.l.b16 %v283
      %v950 = vunpack.c.l.b16 %v285
      %v951 = vunpack.c.l.b16 %v286
      %v952 = vunpack.c.l.b16 %v288
      %v953 = vunpack.c.l.b16 %v289
      %v954 = vunpack.c.l.b16 %v291
      %v955 = vunpack.c.l.b16 %v292
      %v956 = vunpack.c.l.b16 %v294
      %v957 = vunpack.c.l.b16 %v295
      %v958 = vunpack.c.l.b16 %v297
      %v959 = vunpack.c.l.b16 %v298
      %v960 = vunpack.c.l.b16 %v300
      %v961 = vunpack.c.l.b16 %v301
      %v962 = vunpack.c.l.b16 %v303
      %v963 = vunpack.c.l.b16 %v304
      %v964 = vunpack.c.l.b16 %v306
      %v965 = vunpack.c.l.b16 %v307
      %v966 = vunpack.c.l.b16 %v309
      %v967 = vunpack.c.l.b16 %v310
      %v968 = vpack.c.b16 %v937, %v936
      %v969 = vpack.c.b16 %v939, %v938
      %v970 = vpack.c.b16 %v941, %v940
      %v971 = vpack.c.b16 %v943, %v942
      %v972 = vpack.c.b16 %v945, %v944
      %v973 = vpack.c.b16 %v947, %v946
      %v974 = vpack.c.b16 %v949, %v948
      %v975 = vpack.c.b16 %v951, %v950
      %v976 = vpack.c.b16 %v953, %v952
      %v977 = vpack.c.b16 %v955, %v954
      %v978 = vpack.c.b16 %v957, %v956
      %v979 = vpack.c.b16 %v959, %v958
      %v980 = vpack.c.b16 %v961, %v960
      %v981 = vpack.c.b16 %v963, %v962
      %v982 = vpack.c.b16 %v965, %v964
      %v983 = vpack.c.b16 %v967, %v966
      %v1000 = vunpack.c.l.b16 %v334
      %v1001 = vunpack.c.l.b16 %v344
      %v1002 = vunpack.c.l.b16 %v358
      %v1003 = vunpack.c.l.b16 %v368
      %v1004 = vunpack.c.l.b16 %v382
      %v1005 = vunpack.c.l.b16 %v392
      %v1006 = vunpack.c.l.b16 %v406
      %v1007 = vunpack.c.l.b16 %v416
      %v1008 = vunpack.c.l.b16 %v430
      %v1009 = vunpack.c.l.b16 %v440
      %v1010 = vunpack.c.l.b16 %v454
      %v1011 = vunpack.c.l.b16 %v464
      %v1012 = vunpack.c.l.b16 %v478
      %v1013 = vunpack.c.l.b16 %v488
      %v1014 = vunpack.c.l.b16 %v502
      %v1015 = vunpack.c.l.b16 %v512
      %v1016 = vunpack.c.l.b16 %v526
      %v1017 = vunpack.c.l.b16 %v536
      %v1018 = vunpack.c.l.b16 %v550
      %v1019 = vunpack.c.l.b16 %v560
      %v1020 = vunpack.c.l.b16 %v574
      %v1021 = vunpack.c.l.b16 %v584
      %v1022 = vunpack.c.l.b16 %v598
      %v1023 = vunpack.c.l.b16 %v608
      %v1024 = vunpack.c.l.b16 %v622
      %v1025 = vunpack.c.l.b16 %v632
      %v1026 = vunpack.c.l.b16 %v646
      %v1027 = vunpack.c.l.b16 %v656
      %v1028 = vunpack.c.l.b16 %v670
      %v1029 = vunpack.c.l.b16 %v680
      %v1030 = vunpack.c.l.b16 %v694
      %v1031 = vunpack.c.l.b16 %v704
      %v1032 = vpack.c.b16 %v1001, %v1000
      %v1033 = vpack.c.b16 %v1003, %v1002
      %v1034 = vpack.c.b16 %v1005, %v1004
      %v1035 = vpack.c.b16 %v1007, %v1006
      %v1036 = vpack.c.b16 %v1009, %v1008
      %v1037 = vpack.c.b16 %v1011, %v1010
      %v1038 = vpack.c.b16 %v1013, %v1012
      %v1039 = vpack.c.b16 %v1015, %v1014
      %v1040 = vpack.c.b16 %v1017, %v1016
      %v1041 = vpack.c.b16 %v1019, %v1018
      %v1042 = vpack.c.b16 %v1021, %v1020
      %v1043 = vpack.c.b16 %v1023, %v1022
      %v1044 = vpack.c.b16 %v1025, %v1024
      %v1045 = vpack.c.b16 %v1027, %v1026
      %v1046 = vpack.c.b16 %v1029, %v1028
      %v1047 = vpack.c.b16 %v1031, %v1030
      %v1064 = vunpack.c.l.b16 %v759
      %v1065 = vunpack.c.l.b16 %v762
      %v1066 = vunpack.c.l.b16 %v766
      %v1067 = vunpack.c.l.b16 %v769
      %v1068 = vunpack.c.l.b16 %v773
      %v1069 = vunpack.c.l.b16 %v776
      %v1070 = vunpack.c.l.b16 %v780
      %v1071 = vunpack.c.l.b16 %v783
      %v1072 = vunpack.c.l.b16 %v787
      %v1073 = vunpack.c.l.b16 %v790
      %v1074 = vunpack.c.l.b16 %v794
      %v1075 = vunpack.c.l.b16 %v797
      %v1076 = vunpack.c.l.b16 %v801
      %v1077 = vunpack.c.l.b16 %v804
      %v1078 = vunpack.c.l.b16 %v808
      %v1079 = vunpack.c.l.b16 %v811
      %v1080 = vunpack.c.l.b16 %v815
      %v1081 = vunpack.c.l.b16 %v818
      %v1082 = vunpack.c.l.b16 %v822
      %v1083 = vunpack.c.l.b16 %v825
      %v1084 = vunpack.c.l.b16 %v829
      %v1085 = vunpack.c.l.b16 %v832
      %v1086 = vunpack.c.l.b16 %v836
      %v1087 = vunpack.c.l.b16 %v839
      %v1088 = vunpack.c.l.b16 %v843
      %v1089 = vunpack.c.l.b16 %v846
      %v1090 = vunpack.c.l.b16 %v850
      %v1091 = vunpack.c.l.b16 %v853
      %v1092 = vunpack.c.l.b16 %v857
      %v1093 = vunpack.c.l.b16 %v860
      %v1094 = vunpack.c.l.b16 %v864
      %v1095 = vunpack.c.l.b16 %v867
      %v1096 = vpack.c.b16 %v1065, %v1064
      %v1097 = vpack.c.b16 %v1067, %v1066
      %v1098 = vpack.c.b16 %v1069, %v1068
      %v1099 = vpack.c.b16 %v1071, %v1070
      %v1100 = vpack.c.b16 %v1073, %v1072
      %v1101 = vpack.c.b16 %v1075, %v1074
      %v1102 = vpack.c.b16 %v1077, %v1076
      %v1103 = vpack.c.b16 %v1079, %v1078
      %v1104 = vpack.c.b16 %v1081, %v1080
      %v1105 = vpack.c.b16 %v1083, %v1082
      %v1106 = vpack.c.b16 %v1085, %v1084
      %v1107 = vpack.c.b16 %v1087, %v1086
      %v1108 = vpack.c.b16 %v1089, %v1088
      %v1109 = vpack.c.b16 %v1091, %v1090
      %v1110 = vpack.c.b16 %v1093, %v1092
      %v1111 = vpack.c.b16 %v1095, %v1094
      %v1128 = vunpack.c.l.b16 %v312
      %v1129 = vunpack.c.l.b16 %v313
      %v1130 = vpack.c.b16 %v1129, %v1128
      %v1132 = vunpack.c.l.b16 %v881
      %v1133 = vunpack.c.l.b16 %v891
      %v1134 = vpack.c.b16 %v1133, %v1132
      %v1136 = vunpack.c.l.b16 %v898
      %v1137 = vunpack.c.l.b16 %v901
      %v1138 = vpack.c.b16 %v1137, %v1136
      %v1140 = vunpack.c.l.b16 %v315
      %v1141 = vunpack.c.l.b16 %v316
      %v1142 = vpack.c.b16 %v1141, %v1140
      %v1144 = vunpack.c.l.b16 %v915
      %v1145 = vunpack.c.l.b16 %v925
      %v1146 = vpack.c.b16 %v1145, %v1144
      %v1148 = vunpack.c.l.b16 %v932
      %v1149 = vunpack.c.l.b16 %v935
      %v1150 = vpack.c.b16 %v1149, %v1148
      %v1152 = vld [vmem:[%s248] sm:$0xf]
      %v1153 = vld [vmem:[%s248 + $0x4] sm:$0xf]
      %v1154 = vld [vmem:[%s248 + $0x8] sm:$0xf]
      %v1155 = vld [vmem:[%s248 + $0xc] sm:$0xf]
      %v1156 = vld [vmem:[%s248 + $0x10] sm:$0xf]
      %v1157 = vld [vmem:[%s248 + $0x14] sm:$0xf]
      %v1158 = vld [vmem:[%s248 + $0x18] sm:$0xf]
      %v1159 = vld [vmem:[%s248 + $0x1c] sm:$0xf]
      %v1160 = vld [vmem:[%s248 + $0x20] sm:$0xf]
      %v1161 = vld [vmem:[%s248 + $0x24] sm:$0xf]
      %v1162 = vld [vmem:[%s248 + $0x28] sm:$0xf]
      %v1163 = vld [vmem:[%s248 + $0x2c] sm:$0xf]
      %v1164 = vld [vmem:[%s248 + $0x30] sm:$0xf]
      %v1165 = vld [vmem:[%s248 + $0x34] sm:$0xf]
      %v1166 = vld [vmem:[%s248 + $0x38] sm:$0xf]
      %v1167 = vld [vmem:[%s248 + $0x3c] sm:$0xf]
      %v1168 = vld [vmem:[%s248 + $0x40] sm:$0xf]
      %v1169 = vld [vmem:[%s248 + $0x44] sm:$0xf]
      %v1170 = vld [vmem:[%s248 + $0x48] sm:$0xf]
      %v1171 = vld [vmem:[%s248 + $0x4c] sm:$0xf]
      %v1172 = vld [vmem:[%s248 + $0x50] sm:$0xf]
      %v1173 = vld [vmem:[%s248 + $0x54] sm:$0xf]
      %v1174 = vld [vmem:[%s248 + $0x58] sm:$0xf]
      %v1175 = vld [vmem:[%s248 + $0x5c] sm:$0xf]
      %v1176 = vld [vmem:[%s248 + $0x60] sm:$0xf]
      %v1177 = vld [vmem:[%s248 + $0x64] sm:$0xf]
      %v1178 = vld [vmem:[%s248 + $0x68] sm:$0xf]
      %v1179 = vld [vmem:[%s248 + $0x6c] sm:$0xf]
      %v1180 = vld [vmem:[%s248 + $0x70] sm:$0xf]
      %v1181 = vld [vmem:[%s248 + $0x74] sm:$0xf]
      %v1182 = vld [vmem:[%s248 + $0x78] sm:$0xf]
      %v1183 = vld [vmem:[%s248 + $0x7c] sm:$0xf]
      %v1184 = vld [vmem:[%s248 + $0x80] sm:$0xf]
      %v1185 = vld [vmem:[%s248 + $0x84] sm:$0xf]
      %v1186 = vld [vmem:[%s248 + $0x88] sm:$0xf]
      %v1187 = vld [vmem:[%s248 + $0x8c] sm:$0xf]
      %v1188 = vld [vmem:[%s248 + $0x90] sm:$0xf]
      %v1189 = vld [vmem:[%s248 + $0x94] sm:$0xf]
      %v1190 = vld [vmem:[%s248 + $0x98] sm:$0xf]
      %v1191 = vld [vmem:[%s248 + $0x9c] sm:$0xf]
      %v1192 = vld [vmem:[%s248 + $0xa0] sm:$0xf]
      %v1193 = vld [vmem:[%s248 + $0xa4] sm:$0xf]
      %v1194 = vld [vmem:[%s248 + $0xa8] sm:$0xf]
      %v1195 = vld [vmem:[%s248 + $0xac] sm:$0xf]
      %v1196 = vld [vmem:[%s248 + $0xb0] sm:$0xf]
      %v1197 = vld [vmem:[%s248 + $0xb4] sm:$0xf]
      %v1198 = vld [vmem:[%s248 + $0xb8] sm:$0xf]
      %v1199 = vld [vmem:[%s248 + $0xbc] sm:$0xf]
      %v1200 = vld [vmem:[%s248 + $0xc0] sm:$0xf]
      %v1201 = vld [vmem:[%s248 + $0xc4] sm:$0xf]
      %v1202 = vld [vmem:[%s248 + $0xc8] sm:$0xf]
      %v1203 = vld [vmem:[%s248 + $0xcc] sm:$0xf]
      %v1204 = vld [vmem:[%s248 + $0xd0] sm:$0xf]
      %v1205 = vld [vmem:[%s248 + $0xd4] sm:$0xf]
      %v1206 = vld [vmem:[%s248 + $0xd8] sm:$0xf]
      %v1207 = vld [vmem:[%s248 + $0xdc] sm:$0xf]
      %v1208 = vld [vmem:[%s248 + $0xe0] sm:$0xf]
      %v1209 = vld [vmem:[%s248 + $0xe4] sm:$0xf]
      %v1210 = vld [vmem:[%s248 + $0xe8] sm:$0xf]
      %v1211 = vld [vmem:[%s248 + $0xec] sm:$0xf]
      %v1212 = vld [vmem:[%s248 + $0xf0] sm:$0xf]
      %v1213 = vld [vmem:[%s248 + $0xf4] sm:$0xf]
      %v1214 = vld [vmem:[%s248 + $0xf8] sm:$0xf]
      %v1215 = vld [vmem:[%s248 + $0xfc] sm:$0xf]
      %v1216 = vld [vmem:[%s248 + $0x100] sm:$0xf]
      %v1217 = vld [vmem:[%s248 + $0x104] sm:$0xf]
      %v1218 = vld [vmem:[%s248 + $0x108] sm:$0xf]
      %v1219 = vld [vmem:[%s248 + $0x10c] sm:$0xf]
      %v1220 = vld [vmem:[%s248 + $0x110] sm:$0xf]
      %v1221 = vld [vmem:[%s248 + $0x114] sm:$0xf]
      %v1222 = vld [vmem:[%s248 + $0x118] sm:$0xf]
      %v1223 = vld [vmem:[%s248 + $0x11c] sm:$0xf]
      %v1224 = vld [vmem:[%s248 + $0x120] sm:$0xf]
      %v1225 = vld [vmem:[%s248 + $0x124] sm:$0xf]
      %v1226 = vld [vmem:[%s248 + $0x128] sm:$0xf]
      %v1227 = vld [vmem:[%s248 + $0x12c] sm:$0xf]
      %v1228 = vld [vmem:[%s248 + $0x130] sm:$0xf]
      %v1229 = vld [vmem:[%s248 + $0x134] sm:$0xf]
      %v1230 = vld [vmem:[%s248 + $0x138] sm:$0xf]
      %v1231 = vld [vmem:[%s248 + $0x13c] sm:$0xf]
      %v1232 = vld [vmem:[%s248 + $0x140] sm:$0xf]
      %v1233 = vld [vmem:[%s248 + $0x144] sm:$0xf]
      %v1234 = vld [vmem:[%s248 + $0x148] sm:$0xf]
      %v1235 = vld [vmem:[%s248 + $0x14c] sm:$0xf]
      %v1236 = vld [vmem:[%s248 + $0x150] sm:$0xf]
      %v1237 = vld [vmem:[%s248 + $0x154] sm:$0xf]
      %v1238 = vld [vmem:[%s248 + $0x158] sm:$0xf]
      %v1239 = vld [vmem:[%s248 + $0x15c] sm:$0xf]
      %v1240 = vld [vmem:[%s248 + $0x160] sm:$0xf]
      %v1241 = vld [vmem:[%s248 + $0x164] sm:$0xf]
      %v1242 = vld [vmem:[%s248 + $0x168] sm:$0xf]
      %v1243 = vld [vmem:[%s248 + $0x16c] sm:$0xf]
      %v1244 = vld [vmem:[%s248 + $0x170] sm:$0xf]
      %v1245 = vld [vmem:[%s248 + $0x174] sm:$0xf]
      %v1246 = vld [vmem:[%s248 + $0x178] sm:$0xf]
      %v1247 = vld [vmem:[%s248 + $0x17c] sm:$0xf]
      %v1248 = vld [vmem:[%s248 + $0x180] sm:$0xf]
      %v1249 = vld [vmem:[%s248 + $0x184] sm:$0xf]
      %v1250 = vld [vmem:[%s248 + $0x188] sm:$0xf]
      %v1251 = vld [vmem:[%s248 + $0x18c] sm:$0xf]
      %v1252 = vld [vmem:[%s248 + $0x190] sm:$0xf]
      %v1253 = vld [vmem:[%s248 + $0x194] sm:$0xf]
      %v1254 = vld [vmem:[%s248 + $0x198] sm:$0xf]
      %v1255 = vld [vmem:[%s248 + $0x19c] sm:$0xf]
      %v1256 = vld [vmem:[%s248 + $0x1a0] sm:$0xf]
      %v1257 = vld [vmem:[%s248 + $0x1a4] sm:$0xf]
      %v1258 = vld [vmem:[%s248 + $0x1a8] sm:$0xf]
      %v1259 = vld [vmem:[%s248 + $0x1ac] sm:$0xf]
      %v1260 = vld [vmem:[%s248 + $0x1b0] sm:$0xf]
      %v1261 = vld [vmem:[%s248 + $0x1b4] sm:$0xf]
      %v1262 = vld [vmem:[%s248 + $0x1b8] sm:$0xf]
      %v1263 = vld [vmem:[%s248 + $0x1bc] sm:$0xf]
      %v1264 = vld [vmem:[%s248 + $0x1c0] sm:$0xf]
      %v1265 = vld [vmem:[%s248 + $0x1c4] sm:$0xf]
      %v1266 = vld [vmem:[%s248 + $0x1c8] sm:$0xf]
      %v1267 = vld [vmem:[%s248 + $0x1cc] sm:$0xf]
      %v1268 = vld [vmem:[%s248 + $0x1d0] sm:$0xf]
      %v1269 = vld [vmem:[%s248 + $0x1d4] sm:$0xf]
      %v1270 = vld [vmem:[%s248 + $0x1d8] sm:$0xf]
      %v1271 = vld [vmem:[%s248 + $0x1dc] sm:$0xf]
      %v1272 = vld [vmem:[%s248 + $0x1e0] sm:$0xf]
      %v1273 = vld [vmem:[%s248 + $0x1e4] sm:$0xf]
      %v1274 = vld [vmem:[%s248 + $0x1e8] sm:$0xf]
      %v1275 = vld [vmem:[%s248 + $0x1ec] sm:$0xf]
      %v1276 = vld [vmem:[%s248 + $0x1f0] sm:$0xf]
      %v1277 = vld [vmem:[%s248 + $0x1f4] sm:$0xf]
      %v1278 = vld [vmem:[%s248 + $0x1f8] sm:$0xf]
      %v1279 = vld [vmem:[%s248 + $0x1fc] sm:$0xf]
      %v1280 = vld [vmem:[%s248 + $0x200] sm:$0xf]
      %v1281 = vld [vmem:[%s248 + $0x204] sm:$0xf]
      %v1282 = vld [vmem:[%s248 + $0x208] sm:$0xf]
      %v1283 = vld [vmem:[%s248 + $0x20c] sm:$0xf]
      %v1284 = vld [vmem:[%s248 + $0x210] sm:$0xf]
      %v1285 = vld [vmem:[%s248 + $0x214] sm:$0xf]
      %v1286 = vld [vmem:[%s248 + $0x218] sm:$0xf]
      %v1287 = vld [vmem:[%s248 + $0x21c] sm:$0xf]
      %v1288 = vld [vmem:[%s248 + $0x220] sm:$0xf]
      %v1289 = vld [vmem:[%s248 + $0x224] sm:$0xf]
      %v1290 = vld [vmem:[%s248 + $0x228] sm:$0xf]
      %v1291 = vld [vmem:[%s248 + $0x22c] sm:$0xf]
      %v1292 = vld [vmem:[%s248 + $0x230] sm:$0xf]
      %v1293 = vld [vmem:[%s248 + $0x234] sm:$0xf]
      %v1294 = vld [vmem:[%s248 + $0x238] sm:$0xf]
      %v1295 = vld [vmem:[%s248 + $0x23c] sm:$0xf]
      %v1440 = vunpack.c.l.b16 %v1152
      %v1441 = vunpack.c.l.b16 %v1153
      %v1442 = vunpack.c.l.b16 %v1154
      %v1443 = vunpack.c.l.b16 %v1155
      %v1444 = vunpack.c.l.b16 %v1156
      %v1445 = vunpack.c.l.b16 %v1157
      %v1446 = vunpack.c.l.b16 %v1158
      %v1447 = vunpack.c.l.b16 %v1159
      %v1448 = vunpack.c.l.b16 %v1160
      %v1449 = vunpack.c.l.b16 %v1161
      %v1450 = vunpack.c.l.b16 %v1162
      %v1451 = vunpack.c.l.b16 %v1163
      %v1452 = vunpack.c.l.b16 %v1164
      %v1453 = vunpack.c.l.b16 %v1165
      %v1454 = vunpack.c.l.b16 %v1166
      %v1455 = vunpack.c.l.b16 %v1167
      %v1456 = vunpack.c.l.b16 %v1168
      %v1457 = vunpack.c.l.b16 %v1169
      %v1458 = vunpack.c.l.b16 %v1170
      %v1459 = vunpack.c.l.b16 %v1171
      %v1460 = vunpack.c.l.b16 %v1172
      %v1461 = vunpack.c.l.b16 %v1173
      %v1462 = vunpack.c.l.b16 %v1174
      %v1463 = vunpack.c.l.b16 %v1175
      %v1464 = vunpack.c.l.b16 %v1176
      %v1465 = vunpack.c.l.b16 %v1177
      %v1466 = vunpack.c.l.b16 %v1178
      %v1467 = vunpack.c.l.b16 %v1179
      %v1468 = vunpack.c.l.b16 %v1180
      %v1469 = vunpack.c.l.b16 %v1181
      %v1470 = vunpack.c.l.b16 %v1182
      %v1471 = vunpack.c.l.b16 %v1183
      %v1472 = vunpack.c.l.b16 %v1184
      %v1473 = vunpack.c.l.b16 %v1185
      %v1474 = vunpack.c.l.b16 %v1186
      %v1475 = vunpack.c.l.b16 %v1187
      %v1476 = vunpack.c.l.b16 %v1188
      %v1477 = vunpack.c.l.b16 %v1189
      %v1478 = vunpack.c.l.b16 %v1190
      %v1479 = vunpack.c.l.b16 %v1191
      %v1480 = vunpack.c.l.b16 %v1192
      %v1481 = vunpack.c.l.b16 %v1193
      %v1482 = vunpack.c.l.b16 %v1194
      %v1483 = vunpack.c.l.b16 %v1195
      %v1484 = vunpack.c.l.b16 %v1196
      %v1485 = vunpack.c.l.b16 %v1197
      %v1486 = vunpack.c.l.b16 %v1198
      %v1487 = vunpack.c.l.b16 %v1199
      %v1488 = vunpack.c.l.b16 %v1200
      %v1489 = vunpack.c.l.b16 %v1201
      %v1490 = vunpack.c.l.b16 %v1202
      %v1491 = vunpack.c.l.b16 %v1203
      %v1492 = vunpack.c.l.b16 %v1204
      %v1493 = vunpack.c.l.b16 %v1205
      %v1494 = vunpack.c.l.b16 %v1206
      %v1495 = vunpack.c.l.b16 %v1207
      %v1496 = vunpack.c.l.b16 %v1208
      %v1497 = vunpack.c.l.b16 %v1209
      %v1498 = vunpack.c.l.b16 %v1210
      %v1499 = vunpack.c.l.b16 %v1211
      %v1500 = vunpack.c.l.b16 %v1212
      %v1501 = vunpack.c.l.b16 %v1213
      %v1502 = vunpack.c.l.b16 %v1214
      %v1503 = vunpack.c.l.b16 %v1215
      %v1504 = vunpack.c.l.b16 %v1216
      %v1505 = vunpack.c.l.b16 %v1217
      %v1506 = vunpack.c.l.b16 %v1218
      %v1507 = vunpack.c.l.b16 %v1219
      %v1508 = vunpack.c.l.b16 %v1220
      %v1509 = vunpack.c.l.b16 %v1221
      %v1510 = vunpack.c.l.b16 %v1222
      %v1511 = vunpack.c.l.b16 %v1223
      %v1512 = vunpack.c.l.b16 %v1224
      %v1513 = vunpack.c.l.b16 %v1225
      %v1514 = vunpack.c.l.b16 %v1226
      %v1515 = vunpack.c.l.b16 %v1227
      %v1516 = vunpack.c.l.b16 %v1228
      %v1517 = vunpack.c.l.b16 %v1229
      %v1518 = vunpack.c.l.b16 %v1230
      %v1519 = vunpack.c.l.b16 %v1231
      %v1520 = vunpack.c.l.b16 %v1232
      %v1521 = vunpack.c.l.b16 %v1233
      %v1522 = vunpack.c.l.b16 %v1234
      %v1523 = vunpack.c.l.b16 %v1235
      %v1524 = vunpack.c.l.b16 %v1236
      %v1525 = vunpack.c.l.b16 %v1237
      %v1526 = vunpack.c.l.b16 %v1238
      %v1527 = vunpack.c.l.b16 %v1239
      %v1528 = vunpack.c.l.b16 %v1240
      %v1529 = vunpack.c.l.b16 %v1241
      %v1530 = vunpack.c.l.b16 %v1242
      %v1531 = vunpack.c.l.b16 %v1243
      %v1532 = vunpack.c.l.b16 %v1244
      %v1533 = vunpack.c.l.b16 %v1245
      %v1534 = vunpack.c.l.b16 %v1246
      %v1535 = vunpack.c.l.b16 %v1247
      %v1536 = vunpack.c.l.b16 %v1248
      %v1537 = vunpack.c.l.b16 %v1249
      %v1538 = vunpack.c.l.b16 %v1250
      %v1539 = vunpack.c.l.b16 %v1251
      %v1540 = vunpack.c.l.b16 %v1252
      %v1541 = vunpack.c.l.b16 %v1253
      %v1542 = vunpack.c.l.b16 %v1254
      %v1543 = vunpack.c.l.b16 %v1255
      %v1544 = vunpack.c.l.b16 %v1256
      %v1545 = vunpack.c.l.b16 %v1257
      %v1546 = vunpack.c.l.b16 %v1258
      %v1547 = vunpack.c.l.b16 %v1259
      %v1548 = vunpack.c.l.b16 %v1260
      %v1549 = vunpack.c.l.b16 %v1261
      %v1550 = vunpack.c.l.b16 %v1262
      %v1551 = vunpack.c.l.b16 %v1263
      %v1552 = vunpack.c.l.b16 %v1264
      %v1553 = vunpack.c.l.b16 %v1265
      %v1554 = vunpack.c.l.b16 %v1266
      %v1555 = vunpack.c.l.b16 %v1267
      %v1556 = vunpack.c.l.b16 %v1268
      %v1557 = vunpack.c.l.b16 %v1269
      %v1558 = vunpack.c.l.b16 %v1270
      %v1559 = vunpack.c.l.b16 %v1271
      %v1560 = vunpack.c.l.b16 %v1272
      %v1561 = vunpack.c.l.b16 %v1273
      %v1562 = vunpack.c.l.b16 %v1274
      %v1563 = vunpack.c.l.b16 %v1275
      %v1564 = vunpack.c.l.b16 %v1276
      %v1565 = vunpack.c.l.b16 %v1277
      %v1566 = vunpack.c.l.b16 %v1278
      %v1567 = vunpack.c.l.b16 %v1279
      %v1568 = vunpack.c.l.b16 %v1280
      %v1569 = vunpack.c.l.b16 %v1281
      %v1570 = vunpack.c.l.b16 %v1282
      %v1571 = vunpack.c.l.b16 %v1283
      %v1572 = vunpack.c.l.b16 %v1284
      %v1573 = vunpack.c.l.b16 %v1285
      %v1574 = vunpack.c.l.b16 %v1286
      %v1575 = vunpack.c.l.b16 %v1287
      %v1576 = vunpack.c.l.b16 %v1288
      %v1577 = vunpack.c.l.b16 %v1289
      %v1578 = vunpack.c.l.b16 %v1290
      %v1579 = vunpack.c.l.b16 %v1291
      %v1580 = vunpack.c.l.b16 %v1292
      %v1581 = vunpack.c.l.b16 %v1293
      %v1582 = vunpack.c.l.b16 %v1294
      %v1583 = vunpack.c.l.b16 %v1295
      %v1584 = vpack.c.b16 %v1441, %v1440
      %v1585 = vpack.c.b16 %v1443, %v1442
      %v1586 = vpack.c.b16 %v1445, %v1444
      %v1587 = vpack.c.b16 %v1447, %v1446
      %v1588 = vpack.c.b16 %v1449, %v1448
      %v1589 = vpack.c.b16 %v1451, %v1450
      %v1590 = vpack.c.b16 %v1453, %v1452
      %v1591 = vpack.c.b16 %v1455, %v1454
      %v1592 = vpack.c.b16 %v1457, %v1456
      %v1593 = vpack.c.b16 %v1459, %v1458
      %v1594 = vpack.c.b16 %v1461, %v1460
      %v1595 = vpack.c.b16 %v1463, %v1462
      %v1596 = vpack.c.b16 %v1465, %v1464
      %v1597 = vpack.c.b16 %v1467, %v1466
      %v1598 = vpack.c.b16 %v1469, %v1468
      %v1599 = vpack.c.b16 %v1471, %v1470
      %v1600 = vpack.c.b16 %v1473, %v1472
      %v1601 = vpack.c.b16 %v1475, %v1474
      %v1602 = vpack.c.b16 %v1477, %v1476
      %v1603 = vpack.c.b16 %v1479, %v1478
      %v1604 = vpack.c.b16 %v1481, %v1480
      %v1605 = vpack.c.b16 %v1483, %v1482
      %v1606 = vpack.c.b16 %v1485, %v1484
      %v1607 = vpack.c.b16 %v1487, %v1486
      %v1608 = vpack.c.b16 %v1489, %v1488
      %v1609 = vpack.c.b16 %v1491, %v1490
      %v1610 = vpack.c.b16 %v1493, %v1492
      %v1611 = vpack.c.b16 %v1495, %v1494
      %v1612 = vpack.c.b16 %v1497, %v1496
      %v1613 = vpack.c.b16 %v1499, %v1498
      %v1614 = vpack.c.b16 %v1501, %v1500
      %v1615 = vpack.c.b16 %v1503, %v1502
      %v1616 = vpack.c.b16 %v1505, %v1504
      %v1617 = vpack.c.b16 %v1507, %v1506
      %v1618 = vpack.c.b16 %v1509, %v1508
      %v1619 = vpack.c.b16 %v1511, %v1510
      %v1620 = vpack.c.b16 %v1513, %v1512
      %v1621 = vpack.c.b16 %v1515, %v1514
      %v1622 = vpack.c.b16 %v1517, %v1516
      %v1623 = vpack.c.b16 %v1519, %v1518
      %v1624 = vpack.c.b16 %v1521, %v1520
      %v1625 = vpack.c.b16 %v1523, %v1522
      %v1626 = vpack.c.b16 %v1525, %v1524
      %v1627 = vpack.c.b16 %v1527, %v1526
      %v1628 = vpack.c.b16 %v1529, %v1528
      %v1629 = vpack.c.b16 %v1531, %v1530
      %v1630 = vpack.c.b16 %v1533, %v1532
      %v1631 = vpack.c.b16 %v1535, %v1534
      %v1632 = vpack.c.b16 %v1537, %v1536
      %v1633 = vpack.c.b16 %v1539, %v1538
      %v1634 = vpack.c.b16 %v1541, %v1540
      %v1635 = vpack.c.b16 %v1543, %v1542
      %v1636 = vpack.c.b16 %v1545, %v1544
      %v1637 = vpack.c.b16 %v1547, %v1546
      %v1638 = vpack.c.b16 %v1549, %v1548
      %v1639 = vpack.c.b16 %v1551, %v1550
      %v1640 = vpack.c.b16 %v1553, %v1552
      %v1641 = vpack.c.b16 %v1555, %v1554
      %v1642 = vpack.c.b16 %v1557, %v1556
      %v1643 = vpack.c.b16 %v1559, %v1558
      %v1644 = vpack.c.b16 %v1561, %v1560
      %v1645 = vpack.c.b16 %v1563, %v1562
      %v1646 = vpack.c.b16 %v1565, %v1564
      %v1647 = vpack.c.b16 %v1567, %v1566
      %v1648 = vpack.c.b16 %v1569, %v1568
      %v1649 = vpack.c.b16 %v1571, %v1570
      %v1650 = vpack.c.b16 %v1573, %v1572
      %v1651 = vpack.c.b16 %v1575, %v1574
      %v1652 = vpack.c.b16 %v1577, %v1576
      %v1653 = vpack.c.b16 %v1579, %v1578
      %v1654 = vpack.c.b16 %v1581, %v1580
      %v1655 = vpack.c.b16 %v1583, %v1582
      %1728 = vmatprep.subr.bf16.mxu0 0
      %1729 = vmatpush1.bf16.msra.mxu0 %v1591
      %1730 = vmatprep.subr.bf16.mxu0 0
      %1731 = vmatpush1.bf16.msra.mxu0 %v1590
      %1732 = vmatprep.subr.bf16.mxu0 0
      %1733 = vmatpush1.bf16.msra.mxu0 %v1589
      %1734 = vmatprep.subr.bf16.mxu0 0
      %1735 = vmatpush1.bf16.msra.mxu0 %v1588
      %1736 = vmatprep.subr.bf16.mxu0 0
      %1737 = vmatpush1.bf16.msra.mxu0 %v1587
      %1738 = vmatprep.subr.bf16.mxu0 0
      %1739 = vmatpush1.bf16.msra.mxu0 %v1586
      %1740 = vmatprep.subr.bf16.mxu0 0
      %1741 = vmatpush1.bf16.msra.mxu0 %v1585
      %1742 = vmatprep.subr.bf16.mxu0 0
      %1743 = vmatpush1.bf16.msra.mxu0 %v1584
      %1744 = vmatprep.subr.bf16.mxu0 0
      %1745 = vmatpush2.bf16.msra.mxu0 %v1599
      %1746 = vmatprep.subr.bf16.mxu0 0
      %1747 = vmatpush2.bf16.msra.mxu0 %v1598
      %1748 = vmatprep.subr.bf16.mxu0 0
      %1749 = vmatpush2.bf16.msra.mxu0 %v1597
      %1750 = vmatprep.subr.bf16.mxu0 0
      %1751 = vmatpush2.bf16.msra.mxu0 %v1596
      %1752 = vmatprep.subr.bf16.mxu0 0
      %1753 = vmatpush2.bf16.msra.mxu0 %v1595
      %1754 = vmatprep.subr.bf16.mxu0 0
      %1755 = vmatpush2.bf16.msra.mxu0 %v1594
      %1756 = vmatprep.subr.bf16.mxu0 0
      %1757 = vmatpush2.bf16.msra.mxu0 %v1593
      %1758 = vmatprep.subr.bf16.mxu0 0
      %1759 = vmatpush2.bf16.msra.mxu0 %v1592
      %1760 = vmatprep.mubr.bf16.mxu0 %v1032
      %1761 = vmatmul.mubr.bf16.gmra.mxu0 %v968
      %v1762 = vpop.f32.mrf.mxu0
      %v1763 = vadd.f32 0.0, %v1762
      %v1764 = vpop.f32.mrf.mxu0
      %v1765 = vpop.f32.mrf.mxu0
      %v1766 = vadd.f32 0.0, %v1765
      %v1767 = vpop.f32.mrf.mxu0
      %1768 = vmatprep.mubr.bf16.mxu0 %v1033
      %1769 = vmatmul.mubr.bf16.gmra.mxu0 %v969
      %v1770 = vpop.f32.mrf.mxu0
      %v1771 = vadd.f32 0.0, %v1770
      %v1772 = vpop.f32.mrf.mxu0
      %v1773 = vpop.f32.mrf.mxu0
      %v1774 = vadd.f32 0.0, %v1773
      %v1775 = vpop.f32.mrf.mxu0
      %1776 = vmatprep.mubr.bf16.mxu0 %v1034
      %1777 = vmatmul.mubr.bf16.gmra.mxu0 %v970
      %v1778 = vpop.f32.mrf.mxu0
      %v1779 = vadd.f32 0.0, %v1778
      %v1780 = vpop.f32.mrf.mxu0
      %v1781 = vpop.f32.mrf.mxu0
      %v1782 = vadd.f32 0.0, %v1781
      %v1783 = vpop.f32.mrf.mxu0
      %1784 = vmatprep.mubr.bf16.mxu0 %v1035
      %1785 = vmatmul.mubr.bf16.gmra.mxu0 %v971
      %v1786 = vpop.f32.mrf.mxu0
      %v1787 = vadd.f32 0.0, %v1786
      %v1788 = vpop.f32.mrf.mxu0
      %v1789 = vpop.f32.mrf.mxu0
      %v1790 = vadd.f32 0.0, %v1789
      %v1791 = vpop.f32.mrf.mxu0
      %1792 = vmatprep.mubr.bf16.mxu0 %v1036
      %1793 = vmatmul.mubr.bf16.gmra.mxu0 %v972
      %v1794 = vpop.f32.mrf.mxu0
      %v1795 = vadd.f32 0.0, %v1794
      %v1796 = vpop.f32.mrf.mxu0
      %v1797 = vpop.f32.mrf.mxu0
      %v1798 = vadd.f32 0.0, %v1797
      %v1799 = vpop.f32.mrf.mxu0
      %1800 = vmatprep.mubr.bf16.mxu0 %v1037
      %1801 = vmatmul.mubr.bf16.gmra.mxu0 %v973
      %v1802 = vpop.f32.mrf.mxu0
      %v1803 = vadd.f32 0.0, %v1802
      %v1804 = vpop.f32.mrf.mxu0
      %v1805 = vpop.f32.mrf.mxu0
      %v1806 = vadd.f32 0.0, %v1805
      %v1807 = vpop.f32.mrf.mxu0
      %1808 = vmatprep.mubr.bf16.mxu0 %v1038
      %1809 = vmatmul.mubr.bf16.gmra.mxu0 %v974
      %v1810 = vpop.f32.mrf.mxu0
      %v1811 = vadd.f32 0.0, %v1810
      %v1812 = vpop.f32.mrf.mxu0
      %v1813 = vpop.f32.mrf.mxu0
      %v1814 = vadd.f32 0.0, %v1813
      %v1815 = vpop.f32.mrf.mxu0
      %1816 = vmatprep.mubr.bf16.mxu0 %v1039
      %1817 = vmatmul.mubr.bf16.gmra.mxu0 %v975
      %v1818 = vpop.f32.mrf.mxu0
      %v1819 = vadd.f32 0.0, %v1818
      %v1820 = vpop.f32.mrf.mxu0
      %v1821 = vpop.f32.mrf.mxu0
      %v1822 = vadd.f32 0.0, %v1821
      %v1823 = vpop.f32.mrf.mxu0
      %1824 = vmatprep.mubr.bf16.mxu0 %v1040
      %1825 = vmatmul.mubr.bf16.gmra.mxu0 %v976
      %v1826 = vpop.f32.mrf.mxu0
      %v1827 = vadd.f32 0.0, %v1826
      %v1828 = vpop.f32.mrf.mxu0
      %v1829 = vpop.f32.mrf.mxu0
      %v1830 = vadd.f32 0.0, %v1829
      %v1831 = vpop.f32.mrf.mxu0
      %1832 = vmatprep.mubr.bf16.mxu0 %v1041
      %1833 = vmatmul.mubr.bf16.gmra.mxu0 %v977
      %v1834 = vpop.f32.mrf.mxu0
      %v1835 = vadd.f32 0.0, %v1834
      %v1836 = vpop.f32.mrf.mxu0
      %v1837 = vpop.f32.mrf.mxu0
      %v1838 = vadd.f32 0.0, %v1837
      %v1839 = vpop.f32.mrf.mxu0
      %1840 = vmatprep.mubr.bf16.mxu0 %v1042
      %1841 = vmatmul.mubr.bf16.gmra.mxu0 %v978
      %v1842 = vpop.f32.mrf.mxu0
      %v1843 = vadd.f32 0.0, %v1842
      %v1844 = vpop.f32.mrf.mxu0
      %v1845 = vpop.f32.mrf.mxu0
      %v1846 = vadd.f32 0.0, %v1845
      %v1847 = vpop.f32.mrf.mxu0
      %1848 = vmatprep.mubr.bf16.mxu0 %v1043
      %1849 = vmatmul.mubr.bf16.gmra.mxu0 %v979
      %v1850 = vpop.f32.mrf.mxu0
      %v1851 = vadd.f32 0.0, %v1850
      %v1852 = vpop.f32.mrf.mxu0
      %v1853 = vpop.f32.mrf.mxu0
      %v1854 = vadd.f32 0.0, %v1853
      %v1855 = vpop.f32.mrf.mxu0
      %1856 = vmatprep.mubr.bf16.mxu0 %v1044
      %1857 = vmatmul.mubr.bf16.gmra.mxu0 %v980
      %v1858 = vpop.f32.mrf.mxu0
      %v1859 = vadd.f32 0.0, %v1858
      %v1860 = vpop.f32.mrf.mxu0
      %v1861 = vpop.f32.mrf.mxu0
      %v1862 = vadd.f32 0.0, %v1861
      %v1863 = vpop.f32.mrf.mxu0
      %1864 = vmatprep.mubr.bf16.mxu0 %v1045
      %1865 = vmatmul.mubr.bf16.gmra.mxu0 %v981
      %v1866 = vpop.f32.mrf.mxu0
      %v1867 = vadd.f32 0.0, %v1866
      %v1868 = vpop.f32.mrf.mxu0
      %v1869 = vpop.f32.mrf.mxu0
      %v1870 = vadd.f32 0.0, %v1869
      %v1871 = vpop.f32.mrf.mxu0
      %1872 = vmatprep.mubr.bf16.mxu0 %v1046
      %1873 = vmatmul.mubr.bf16.gmra.mxu0 %v982
      %v1874 = vpop.f32.mrf.mxu0
      %v1875 = vadd.f32 0.0, %v1874
      %v1876 = vpop.f32.mrf.mxu0
      %v1877 = vpop.f32.mrf.mxu0
      %v1878 = vadd.f32 0.0, %v1877
      %v1879 = vpop.f32.mrf.mxu0
      %1880 = vmatprep.mubr.bf16.mxu0 %v1047
      %1881 = vmatmul.mubr.bf16.gmra.mxu0 %v983
      %v1882 = vpop.f32.mrf.mxu0
      %v1883 = vadd.f32 0.0, %v1882
      %v1884 = vpop.f32.mrf.mxu0
      %v1885 = vpop.f32.mrf.mxu0
      %v1886 = vadd.f32 0.0, %v1885
      %v1887 = vpop.f32.mrf.mxu0
      %1888 = vdwg.mxu0
      %1889 = vmatprep.subr.bf16.mxu0 0
      %1890 = vmatpush1.bf16.msra.mxu0 %v1607
      %1891 = vmatprep.subr.bf16.mxu0 0
      %1892 = vmatpush1.bf16.msra.mxu0 %v1606
      %1893 = vmatprep.subr.bf16.mxu0 0
      %1894 = vmatpush1.bf16.msra.mxu0 %v1605
      %1895 = vmatprep.subr.bf16.mxu0 0
      %1896 = vmatpush1.bf16.msra.mxu0 %v1604
      %1897 = vmatprep.subr.bf16.mxu0 0
      %1898 = vmatpush1.bf16.msra.mxu0 %v1603
      %1899 = vmatprep.subr.bf16.mxu0 0
      %1900 = vmatpush1.bf16.msra.mxu0 %v1602
      %1901 = vmatprep.subr.bf16.mxu0 0
      %1902 = vmatpush1.bf16.msra.mxu0 %v1601
      %1903 = vmatprep.subr.bf16.mxu0 0
      %1904 = vmatpush1.bf16.msra.mxu0 %v1600
      %1905 = vmatprep.subr.bf16.mxu0 0
      %1906 = vmatpush2.bf16.msra.mxu0 %v1615
      %1907 = vmatprep.subr.bf16.mxu0 0
      %1908 = vmatpush2.bf16.msra.mxu0 %v1614
      %1909 = vmatprep.subr.bf16.mxu0 0
      %1910 = vmatpush2.bf16.msra.mxu0 %v1613
      %1911 = vmatprep.subr.bf16.mxu0 0
      %1912 = vmatpush2.bf16.msra.mxu0 %v1612
      %1913 = vmatprep.subr.bf16.mxu0 0
      %1914 = vmatpush2.bf16.msra.mxu0 %v1611
      %1915 = vmatprep.subr.bf16.mxu0 0
      %1916 = vmatpush2.bf16.msra.mxu0 %v1610
      %1917 = vmatprep.subr.bf16.mxu0 0
      %1918 = vmatpush2.bf16.msra.mxu0 %v1609
      %1919 = vmatprep.subr.bf16.mxu0 0
      %1920 = vmatpush2.bf16.msra.mxu0 %v1608
      %1921 = vmatprep.mubr.bf16.mxu0 %v969
      %1922 = vmatmul.mubr.bf16.gmra.mxu0 %v1096
      %v1923 = vpop.f32.mrf.mxu0
      %v1924 = vadd.f32 %v1763, %v1923
      %v1925 = vpop.f32.mrf.mxu0
      %v1926 = vpop.f32.mrf.mxu0
      %v1927 = vadd.f32 %v1766, %v1926
      %v1928 = vpop.f32.mrf.mxu0
      %1929 = vmatprep.mubr.bf16.mxu0 %v970
      %1930 = vmatmul.mubr.bf16.gmra.mxu0 %v1097
      %v1931 = vpop.f32.mrf.mxu0
      %v1932 = vadd.f32 %v1771, %v1931
      %v1933 = vpop.f32.mrf.mxu0
      %v1934 = vpop.f32.mrf.mxu0
      %v1935 = vadd.f32 %v1774, %v1934
      %v1936 = vpop.f32.mrf.mxu0
      %1937 = vmatprep.mubr.bf16.mxu0 %v971
      %1938 = vmatmul.mubr.bf16.gmra.mxu0 %v1098
      %v1939 = vpop.f32.mrf.mxu0
      %v1940 = vadd.f32 %v1779, %v1939
      %v1941 = vpop.f32.mrf.mxu0
      %v1942 = vpop.f32.mrf.mxu0
      %v1943 = vadd.f32 %v1782, %v1942
      %v1944 = vpop.f32.mrf.mxu0
      %1945 = vmatprep.mubr.bf16.mxu0 %v972
      %1946 = vmatmul.mubr.bf16.gmra.mxu0 %v1099
      %v1947 = vpop.f32.mrf.mxu0
      %v1948 = vadd.f32 %v1787, %v1947
      %v1949 = vpop.f32.mrf.mxu0
      %v1950 = vpop.f32.mrf.mxu0
      %v1951 = vadd.f32 %v1790, %v1950
      %v1952 = vpop.f32.mrf.mxu0
      %1953 = vmatprep.mubr.bf16.mxu0 %v973
      %1954 = vmatmul.mubr.bf16.gmra.mxu0 %v1100
      %v1955 = vpop.f32.mrf.mxu0
      %v1956 = vadd.f32 %v1795, %v1955
      %v1957 = vpop.f32.mrf.mxu0
      %v1958 = vpop.f32.mrf.mxu0
      %v1959 = vadd.f32 %v1798, %v1958
      %v1960 = vpop.f32.mrf.mxu0
      %1961 = vmatprep.mubr.bf16.mxu0 %v974
      %1962 = vmatmul.mubr.bf16.gmra.mxu0 %v1101
      %v1963 = vpop.f32.mrf.mxu0
      %v1964 = vadd.f32 %v1803, %v1963
      %v1965 = vpop.f32.mrf.mxu0
      %v1966 = vpop.f32.mrf.mxu0
      %v1967 = vadd.f32 %v1806, %v1966
      %v1968 = vpop.f32.mrf.mxu0
      %1969 = vmatprep.mubr.bf16.mxu0 %v975
      %1970 = vmatmul.mubr.bf16.gmra.mxu0 %v1102
      %v1971 = vpop.f32.mrf.mxu0
      %v1972 = vadd.f32 %v1811, %v1971
      %v1973 = vpop.f32.mrf.mxu0
      %v1974 = vpop.f32.mrf.mxu0
      %v1975 = vadd.f32 %v1814, %v1974
      %v1976 = vpop.f32.mrf.mxu0
      %1977 = vmatprep.mubr.bf16.mxu0 %v976
      %1978 = vmatmul.mubr.bf16.gmra.mxu0 %v1103
      %v1979 = vpop.f32.mrf.mxu0
      %v1980 = vadd.f32 %v1819, %v1979
      %v1981 = vpop.f32.mrf.mxu0
      %v1982 = vpop.f32.mrf.mxu0
      %v1983 = vadd.f32 %v1822, %v1982
      %v1984 = vpop.f32.mrf.mxu0
      %1985 = vmatprep.mubr.bf16.mxu0 %v977
      %1986 = vmatmul.mubr.bf16.gmra.mxu0 %v1104
      %v1987 = vpop.f32.mrf.mxu0
      %v1988 = vadd.f32 %v1827, %v1987
      %v1989 = vpop.f32.mrf.mxu0
      %v1990 = vpop.f32.mrf.mxu0
      %v1991 = vadd.f32 %v1830, %v1990
      %v1992 = vpop.f32.mrf.mxu0
      %1993 = vmatprep.mubr.bf16.mxu0 %v978
      %1994 = vmatmul.mubr.bf16.gmra.mxu0 %v1105
      %v1995 = vpop.f32.mrf.mxu0
      %v1996 = vadd.f32 %v1835, %v1995
      %v1997 = vpop.f32.mrf.mxu0
      %v1998 = vpop.f32.mrf.mxu0
      %v1999 = vadd.f32 %v1838, %v1998
      %v2000 = vpop.f32.mrf.mxu0
      %2001 = vmatprep.mubr.bf16.mxu0 %v979
      %2002 = vmatmul.mubr.bf16.gmra.mxu0 %v1106
      %v2003 = vpop.f32.mrf.mxu0
      %v2004 = vadd.f32 %v1843, %v2003
      %v2005 = vpop.f32.mrf.mxu0
      %v2006 = vpop.f32.mrf.mxu0
      %v2007 = vadd.f32 %v1846, %v2006
      %v2008 = vpop.f32.mrf.mxu0
      %2009 = vmatprep.mubr.bf16.mxu0 %v980
      %2010 = vmatmul.mubr.bf16.gmra.mxu0 %v1107
      %v2011 = vpop.f32.mrf.mxu0
      %v2012 = vadd.f32 %v1851, %v2011
      %v2013 = vpop.f32.mrf.mxu0
      %v2014 = vpop.f32.mrf.mxu0
      %v2015 = vadd.f32 %v1854, %v2014
      %v2016 = vpop.f32.mrf.mxu0
      %2017 = vmatprep.mubr.bf16.mxu0 %v981
      %2018 = vmatmul.mubr.bf16.gmra.mxu0 %v1108
      %v2019 = vpop.f32.mrf.mxu0
      %v2020 = vadd.f32 %v1859, %v2019
      %v2021 = vpop.f32.mrf.mxu0
      %v2022 = vpop.f32.mrf.mxu0
      %v2023 = vadd.f32 %v1862, %v2022
      %v2024 = vpop.f32.mrf.mxu0
      %2025 = vmatprep.mubr.bf16.mxu0 %v982
      %2026 = vmatmul.mubr.bf16.gmra.mxu0 %v1109
      %v2027 = vpop.f32.mrf.mxu0
      %v2028 = vadd.f32 %v1867, %v2027
      %v2029 = vpop.f32.mrf.mxu0
      %v2030 = vpop.f32.mrf.mxu0
      %v2031 = vadd.f32 %v1870, %v2030
      %v2032 = vpop.f32.mrf.mxu0
      %2033 = vmatprep.mubr.bf16.mxu0 %v983
      %2034 = vmatmul.mubr.bf16.gmra.mxu0 %v1110
      %v2035 = vpop.f32.mrf.mxu0
      %v2036 = vadd.f32 %v1875, %v2035
      %v2037 = vpop.f32.mrf.mxu0
      %v2038 = vpop.f32.mrf.mxu0
      %v2039 = vadd.f32 %v1878, %v2038
      %v2040 = vpop.f32.mrf.mxu0
      %2041 = vmatprep.mubr.bf16.mxu0 %v1130
      %2042 = vmatmul.mubr.bf16.gmra.mxu0 %v1111
      %v2043 = vpop.f32.mrf.mxu0
      %v2044 = vadd.f32 %v1883, %v2043
      %v2045 = vpop.f32.mrf.mxu0
      %v2046 = vpop.f32.mrf.mxu0
      %v2047 = vadd.f32 %v1886, %v2046
      %v2048 = vpop.f32.mrf.mxu0
      %2049 = vdwg.mxu0
      %2050 = vmatprep.subr.bf16.mxu0 0
      %2051 = vmatpush1.bf16.msra.mxu0 %v1623
      %2052 = vmatprep.subr.bf16.mxu0 0
      %2053 = vmatpush1.bf16.msra.mxu0 %v1622
      %2054 = vmatprep.subr.bf16.mxu0 0
      %2055 = vmatpush1.bf16.msra.mxu0 %v1621
      %2056 = vmatprep.subr.bf16.mxu0 0
      %2057 = vmatpush1.bf16.msra.mxu0 %v1620
      %2058 = vmatprep.subr.bf16.mxu0 0
      %2059 = vmatpush1.bf16.msra.mxu0 %v1619
      %2060 = vmatprep.subr.bf16.mxu0 0
      %2061 = vmatpush1.bf16.msra.mxu0 %v1618
      %2062 = vmatprep.subr.bf16.mxu0 0
      %2063 = vmatpush1.bf16.msra.mxu0 %v1617
      %2064 = vmatprep.subr.bf16.mxu0 0
      %2065 = vmatpush1.bf16.msra.mxu0 %v1616
      %2066 = vmatprep.subr.bf16.mxu0 0
      %2067 = vmatpush2.bf16.msra.mxu0 %v1631
      %2068 = vmatprep.subr.bf16.mxu0 0
      %2069 = vmatpush2.bf16.msra.mxu0 %v1630
      %2070 = vmatprep.subr.bf16.mxu0 0
      %2071 = vmatpush2.bf16.msra.mxu0 %v1629
      %2072 = vmatprep.subr.bf16.mxu0 0
      %2073 = vmatpush2.bf16.msra.mxu0 %v1628
      %2074 = vmatprep.subr.bf16.mxu0 0
      %2075 = vmatpush2.bf16.msra.mxu0 %v1627
      %2076 = vmatprep.subr.bf16.mxu0 0
      %2077 = vmatpush2.bf16.msra.mxu0 %v1626
      %2078 = vmatprep.subr.bf16.mxu0 0
      %2079 = vmatpush2.bf16.msra.mxu0 %v1625
      %2080 = vmatprep.subr.bf16.mxu0 0
      %2081 = vmatpush2.bf16.msra.mxu0 %v1624
      %2082 = vmatprep.mubr.bf16.mxu0 %v1097
      %2083 = vmatmul.mubr.bf16.gmra.mxu0 %v1033
      %v2084 = vpop.f32.mrf.mxu0
      %v2085 = vadd.f32 %v1924, %v2084
      %v2086 = vpop.f32.mrf.mxu0
      %v2087 = vpop.f32.mrf.mxu0
      %v2088 = vadd.f32 %v1927, %v2087
      %v2089 = vpop.f32.mrf.mxu0
      %2090 = vmatprep.mubr.bf16.mxu0 %v1098
      %2091 = vmatmul.mubr.bf16.gmra.mxu0 %v1034
      %v2092 = vpop.f32.mrf.mxu0
      %v2093 = vadd.f32 %v1932, %v2092
      %v2094 = vpop.f32.mrf.mxu0
      %v2095 = vpop.f32.mrf.mxu0
      %v2096 = vadd.f32 %v1935, %v2095
      %v2097 = vpop.f32.mrf.mxu0
      %2098 = vmatprep.mubr.bf16.mxu0 %v1099
      %2099 = vmatmul.mubr.bf16.gmra.mxu0 %v1035
      %v2100 = vpop.f32.mrf.mxu0
      %v2101 = vadd.f32 %v1940, %v2100
      %v2102 = vpop.f32.mrf.mxu0
      %v2103 = vpop.f32.mrf.mxu0
      %v2104 = vadd.f32 %v1943, %v2103
      %v2105 = vpop.f32.mrf.mxu0
      %2106 = vmatprep.mubr.bf16.mxu0 %v1100
      %2107 = vmatmul.mubr.bf16.gmra.mxu0 %v1036
      %v2108 = vpop.f32.mrf.mxu0
      %v2109 = vadd.f32 %v1948, %v2108
      %v2110 = vpop.f32.mrf.mxu0
      %v2111 = vpop.f32.mrf.mxu0
      %v2112 = vadd.f32 %v1951, %v2111
      %v2113 = vpop.f32.mrf.mxu0
      %2114 = vmatprep.mubr.bf16.mxu0 %v1101
      %2115 = vmatmul.mubr.bf16.gmra.mxu0 %v1037
      %v2116 = vpop.f32.mrf.mxu0
      %v2117 = vadd.f32 %v1956, %v2116
      %v2118 = vpop.f32.mrf.mxu0
      %v2119 = vpop.f32.mrf.mxu0
      %v2120 = vadd.f32 %v1959, %v2119
      %v2121 = vpop.f32.mrf.mxu0
      %2122 = vmatprep.mubr.bf16.mxu0 %v1102
      %2123 = vmatmul.mubr.bf16.gmra.mxu0 %v1038
      %v2124 = vpop.f32.mrf.mxu0
      %v2125 = vadd.f32 %v1964, %v2124
      %v2126 = vpop.f32.mrf.mxu0
      %v2127 = vpop.f32.mrf.mxu0
      %v2128 = vadd.f32 %v1967, %v2127
      %v2129 = vpop.f32.mrf.mxu0
      %2130 = vmatprep.mubr.bf16.mxu0 %v1103
      %2131 = vmatmul.mubr.bf16.gmra.mxu0 %v1039
      %v2132 = vpop.f32.mrf.mxu0
      %v2133 = vadd.f32 %v1972, %v2132
      %v2134 = vpop.f32.mrf.mxu0
      %v2135 = vpop.f32.mrf.mxu0
      %v2136 = vadd.f32 %v1975, %v2135
      %v2137 = vpop.f32.mrf.mxu0
      %2138 = vmatprep.mubr.bf16.mxu0 %v1104
      %2139 = vmatmul.mubr.bf16.gmra.mxu0 %v1040
      %v2140 = vpop.f32.mrf.mxu0
      %v2141 = vadd.f32 %v1980, %v2140
      %v2142 = vpop.f32.mrf.mxu0
      %v2143 = vpop.f32.mrf.mxu0
      %v2144 = vadd.f32 %v1983, %v2143
      %v2145 = vpop.f32.mrf.mxu0
      %2146 = vmatprep.mubr.bf16.mxu0 %v1105
      %2147 = vmatmul.mubr.bf16.gmra.mxu0 %v1041
      %v2148 = vpop.f32.mrf.mxu0
      %v2149 = vadd.f32 %v1988, %v2148
      %v2150 = vpop.f32.mrf.mxu0
      %v2151 = vpop.f32.mrf.mxu0
      %v2152 = vadd.f32 %v1991, %v2151
      %v2153 = vpop.f32.mrf.mxu0
      %2154 = vmatprep.mubr.bf16.mxu0 %v1106
      %2155 = vmatmul.mubr.bf16.gmra.mxu0 %v1042
      %v2156 = vpop.f32.mrf.mxu0
      %v2157 = vadd.f32 %v1996, %v2156
      %v2158 = vpop.f32.mrf.mxu0
      %v2159 = vpop.f32.mrf.mxu0
      %v2160 = vadd.f32 %v1999, %v2159
      %v2161 = vpop.f32.mrf.mxu0
      %2162 = vmatprep.mubr.bf16.mxu0 %v1107
      %2163 = vmatmul.mubr.bf16.gmra.mxu0 %v1043
      %v2164 = vpop.f32.mrf.mxu0
      %v2165 = vadd.f32 %v2004, %v2164
      %v2166 = vpop.f32.mrf.mxu0
      %v2167 = vpop.f32.mrf.mxu0
      %v2168 = vadd.f32 %v2007, %v2167
      %v2169 = vpop.f32.mrf.mxu0
      %2170 = vmatprep.mubr.bf16.mxu0 %v1108
      %2171 = vmatmul.mubr.bf16.gmra.mxu0 %v1044
      %v2172 = vpop.f32.mrf.mxu0
      %v2173 = vadd.f32 %v2012, %v2172
      %v2174 = vpop.f32.mrf.mxu0
      %v2175 = vpop.f32.mrf.mxu0
      %v2176 = vadd.f32 %v2015, %v2175
      %v2177 = vpop.f32.mrf.mxu0
      %2178 = vmatprep.mubr.bf16.mxu0 %v1109
      %2179 = vmatmul.mubr.bf16.gmra.mxu0 %v1045
      %v2180 = vpop.f32.mrf.mxu0
      %v2181 = vadd.f32 %v2020, %v2180
      %v2182 = vpop.f32.mrf.mxu0
      %v2183 = vpop.f32.mrf.mxu0
      %v2184 = vadd.f32 %v2023, %v2183
      %v2185 = vpop.f32.mrf.mxu0
      %2186 = vmatprep.mubr.bf16.mxu0 %v1110
      %2187 = vmatmul.mubr.bf16.gmra.mxu0 %v1046
      %v2188 = vpop.f32.mrf.mxu0
      %v2189 = vadd.f32 %v2028, %v2188
      %v2190 = vpop.f32.mrf.mxu0
      %v2191 = vpop.f32.mrf.mxu0
      %v2192 = vadd.f32 %v2031, %v2191
      %v2193 = vpop.f32.mrf.mxu0
      %2194 = vmatprep.mubr.bf16.mxu0 %v1111
      %2195 = vmatmul.mubr.bf16.gmra.mxu0 %v1047
      %v2196 = vpop.f32.mrf.mxu0
      %v2197 = vadd.f32 %v2036, %v2196
      %v2198 = vpop.f32.mrf.mxu0
      %v2199 = vpop.f32.mrf.mxu0
      %v2200 = vadd.f32 %v2039, %v2199
      %v2201 = vpop.f32.mrf.mxu0
      %2202 = vmatprep.mubr.bf16.mxu0 %v1138
      %2203 = vmatmul.mubr.bf16.gmra.mxu0 %v1134
      %v2204 = vpop.f32.mrf.mxu0
      %v2205 = vadd.f32 %v2044, %v2204
      %v2206 = vpop.f32.mrf.mxu0
      %v2207 = vpop.f32.mrf.mxu0
      %v2208 = vadd.f32 %v2047, %v2207
      %v2209 = vpop.f32.mrf.mxu0
      %2210 = vdwg.mxu0
      %2211 = vmatprep.subr.bf16.mxu0 0
      %2212 = vmatpush1.bf16.msra.mxu0 %v1639
      %2213 = vmatprep.subr.bf16.mxu0 0
      %2214 = vmatpush1.bf16.msra.mxu0 %v1638
      %2215 = vmatprep.subr.bf16.mxu0 0
      %2216 = vmatpush1.bf16.msra.mxu0 %v1637
      %2217 = vmatprep.subr.bf16.mxu0 0
      %2218 = vmatpush1.bf16.msra.mxu0 %v1636
      %2219 = vmatprep.subr.bf16.mxu0 0
      %2220 = vmatpush1.bf16.msra.mxu0 %v1635
      %2221 = vmatprep.subr.bf16.mxu0 0
      %2222 = vmatpush1.bf16.msra.mxu0 %v1634
      %2223 = vmatprep.subr.bf16.mxu0 0
      %2224 = vmatpush1.bf16.msra.mxu0 %v1633
      %2225 = vmatprep.subr.bf16.mxu0 0
      %2226 = vmatpush1.bf16.msra.mxu0 %v1632
      %2227 = vmatprep.subr.bf16.mxu0 0
      %2228 = vmatpush2.bf16.msra.mxu0 %v1647
      %2229 = vmatprep.subr.bf16.mxu0 0
      %2230 = vmatpush2.bf16.msra.mxu0 %v1646
      %2231 = vmatprep.subr.bf16.mxu0 0
      %2232 = vmatpush2.bf16.msra.mxu0 %v1645
      %2233 = vmatprep.subr.bf16.mxu0 0
      %2234 = vmatpush2.bf16.msra.mxu0 %v1644
      %2235 = vmatprep.subr.bf16.mxu0 0
      %2236 = vmatpush2.bf16.msra.mxu0 %v1643
      %2237 = vmatprep.subr.bf16.mxu0 0
      %2238 = vmatpush2.bf16.msra.mxu0 %v1642
      %2239 = vmatprep.subr.bf16.mxu0 0
      %2240 = vmatpush2.bf16.msra.mxu0 %v1641
      %2241 = vmatprep.subr.bf16.mxu0 0
      %2242 = vmatpush2.bf16.msra.mxu0 %v1640
      %2243 = vmatprep.mubr.bf16.mxu0 %v1034
      %2244 = vmatmul.mubr.bf16.gmra.mxu0 %v970
      %v2245 = vpop.f32.mrf.mxu0
      %v2246 = vadd.f32 %v2085, %v2245
      %v2247 = vpop.f32.mrf.mxu0
      %v2248 = vpop.f32.mrf.mxu0
      %v2249 = vadd.f32 %v2088, %v2248
      %v2250 = vpop.f32.mrf.mxu0
      %2251 = vmatprep.mubr.bf16.mxu0 %v1035
      %2252 = vmatmul.mubr.bf16.gmra.mxu0 %v971
      %v2253 = vpop.f32.mrf.mxu0
      %v2254 = vadd.f32 %v2093, %v2253
      %v2255 = vpop.f32.mrf.mxu0
      %v2256 = vpop.f32.mrf.mxu0
      %v2257 = vadd.f32 %v2096, %v2256
      %v2258 = vpop.f32.mrf.mxu0
      %2259 = vmatprep.mubr.bf16.mxu0 %v1036
      %2260 = vmatmul.mubr.bf16.gmra.mxu0 %v972
      %v2261 = vpop.f32.mrf.mxu0
      %v2262 = vadd.f32 %v2101, %v2261
      %v2263 = vpop.f32.mrf.mxu0
      %v2264 = vpop.f32.mrf.mxu0
      %v2265 = vadd.f32 %v2104, %v2264
      %v2266 = vpop.f32.mrf.mxu0
      %2267 = vmatprep.mubr.bf16.mxu0 %v1037
      %2268 = vmatmul.mubr.bf16.gmra.mxu0 %v973
      %v2269 = vpop.f32.mrf.mxu0
      %v2270 = vadd.f32 %v2109, %v2269
      %v2271 = vpop.f32.mrf.mxu0
      %v2272 = vpop.f32.mrf.mxu0
      %v2273 = vadd.f32 %v2112, %v2272
      %v2274 = vpop.f32.mrf.mxu0
      %2275 = vmatprep.mubr.bf16.mxu0 %v1038
      %2276 = vmatmul.mubr.bf16.gmra.mxu0 %v974
      %v2277 = vpop.f32.mrf.mxu0
      %v2278 = vadd.f32 %v2117, %v2277
      %v2279 = vpop.f32.mrf.mxu0
      %v2280 = vpop.f32.mrf.mxu0
      %v2281 = vadd.f32 %v2120, %v2280
      %v2282 = vpop.f32.mrf.mxu0
      %2283 = vmatprep.mubr.bf16.mxu0 %v1039
      %2284 = vmatmul.mubr.bf16.gmra.mxu0 %v975
      %v2285 = vpop.f32.mrf.mxu0
      %v2286 = vadd.f32 %v2125, %v2285
      %v2287 = vpop.f32.mrf.mxu0
      %v2288 = vpop.f32.mrf.mxu0
      %v2289 = vadd.f32 %v2128, %v2288
      %v2290 = vpop.f32.mrf.mxu0
      %2291 = vmatprep.mubr.bf16.mxu0 %v1040
      %2292 = vmatmul.mubr.bf16.gmra.mxu0 %v976
      %v2293 = vpop.f32.mrf.mxu0
      %v2294 = vadd.f32 %v2133, %v2293
      %v2295 = vpop.f32.mrf.mxu0
      %v2296 = vpop.f32.mrf.mxu0
      %v2297 = vadd.f32 %v2136, %v2296
      %v2298 = vpop.f32.mrf.mxu0
      %2299 = vmatprep.mubr.bf16.mxu0 %v1041
      %2300 = vmatmul.mubr.bf16.gmra.mxu0 %v977
      %v2301 = vpop.f32.mrf.mxu0
      %v2302 = vadd.f32 %v2141, %v2301
      %v2303 = vpop.f32.mrf.mxu0
      %v2304 = vpop.f32.mrf.mxu0
      %v2305 = vadd.f32 %v2144, %v2304
      %v2306 = vpop.f32.mrf.mxu0
      %2307 = vmatprep.mubr.bf16.mxu0 %v1042
      %2308 = vmatmul.mubr.bf16.gmra.mxu0 %v978
      %v2309 = vpop.f32.mrf.mxu0
      %v2310 = vadd.f32 %v2149, %v2309
      %v2311 = vpop.f32.mrf.mxu0
      %v2312 = vpop.f32.mrf.mxu0
      %v2313 = vadd.f32 %v2152, %v2312
      %v2314 = vpop.f32.mrf.mxu0
      %2315 = vmatprep.mubr.bf16.mxu0 %v1043
      %2316 = vmatmul.mubr.bf16.gmra.mxu0 %v979
      %v2317 = vpop.f32.mrf.mxu0
      %v2318 = vadd.f32 %v2157, %v2317
      %v2319 = vpop.f32.mrf.mxu0
      %v2320 = vpop.f32.mrf.mxu0
      %v2321 = vadd.f32 %v2160, %v2320
      %v2322 = vpop.f32.mrf.mxu0
      %2323 = vmatprep.mubr.bf16.mxu0 %v1044
      %2324 = vmatmul.mubr.bf16.gmra.mxu0 %v980
      %v2325 = vpop.f32.mrf.mxu0
      %v2326 = vadd.f32 %v2165, %v2325
      %v2327 = vpop.f32.mrf.mxu0
      %v2328 = vpop.f32.mrf.mxu0
      %v2329 = vadd.f32 %v2168, %v2328
      %v2330 = vpop.f32.mrf.mxu0
      %2331 = vmatprep.mubr.bf16.mxu0 %v1045
      %2332 = vmatmul.mubr.bf16.gmra.mxu0 %v981
      %v2333 = vpop.f32.mrf.mxu0
      %v2334 = vadd.f32 %v2173, %v2333
      %v2335 = vpop.f32.mrf.mxu0
      %v2336 = vpop.f32.mrf.mxu0
      %v2337 = vadd.f32 %v2176, %v2336
      %v2338 = vpop.f32.mrf.mxu0
      %2339 = vmatprep.mubr.bf16.mxu0 %v1046
      %2340 = vmatmul.mubr.bf16.gmra.mxu0 %v982
      %v2341 = vpop.f32.mrf.mxu0
      %v2342 = vadd.f32 %v2181, %v2341
      %v2343 = vpop.f32.mrf.mxu0
      %v2344 = vpop.f32.mrf.mxu0
      %v2345 = vadd.f32 %v2184, %v2344
      %v2346 = vpop.f32.mrf.mxu0
      %2347 = vmatprep.mubr.bf16.mxu0 %v1047
      %2348 = vmatmul.mubr.bf16.gmra.mxu0 %v983
      %v2349 = vpop.f32.mrf.mxu0
      %v2350 = vadd.f32 %v2189, %v2349
      %v2351 = vpop.f32.mrf.mxu0
      %v2352 = vpop.f32.mrf.mxu0
      %v2353 = vadd.f32 %v2192, %v2352
      %v2354 = vpop.f32.mrf.mxu0
      %2355 = vmatprep.mubr.bf16.mxu0 %v1134
      %2356 = vmatmul.mubr.bf16.gmra.mxu0 %v1130
      %v2357 = vpop.f32.mrf.mxu0
      %v2358 = vadd.f32 %v2197, %v2357
      %v2359 = vpop.f32.mrf.mxu0
      %v2360 = vpop.f32.mrf.mxu0
      %v2361 = vadd.f32 %v2200, %v2360
      %v2362 = vpop.f32.mrf.mxu0
      %2363 = vmatprep.mubr.bf16.mxu0 %v1146
      %2364 = vmatmul.mubr.bf16.gmra.mxu0 %v1142
      %v2365 = vpop.f32.mrf.mxu0
      %v2366 = vadd.f32 %v2205, %v2365
      %v2367 = vpop.f32.mrf.mxu0
      %v2368 = vpop.f32.mrf.mxu0
      %v2369 = vadd.f32 %v2208, %v2368
      %v2370 = vpop.f32.mrf.mxu0
      %2371 = vdwg.mxu0
      %2372 = vmatprep.subr.bf16.mxu0 0
      %2373 = vmatpush1.bf16.msra.mxu0 %v1655
      %2374 = vmatprep.subr.bf16.mxu0 0
      %2375 = vmatpush1.bf16.msra.mxu0 %v1654
      %2376 = vmatprep.subr.bf16.mxu0 0
      %2377 = vmatpush1.bf16.msra.mxu0 %v1653
      %2378 = vmatprep.subr.bf16.mxu0 0
      %2379 = vmatpush1.bf16.msra.mxu0 %v1652
      %2380 = vmatprep.subr.bf16.mxu0 0
      %2381 = vmatpush1.bf16.msra.mxu0 %v1651
      %2382 = vmatprep.subr.bf16.mxu0 0
      %2383 = vmatpush1.bf16.msra.mxu0 %v1650
      %2384 = vmatprep.subr.bf16.mxu0 0
      %2385 = vmatpush1.bf16.msra.mxu0 %v1649
      %2386 = vmatprep.subr.bf16.mxu0 0
      %2387 = vmatpush1.bf16.msra.mxu0 %v1648
      %2388 = vmatprep.subr.bf16.mxu0 0
      %2389 = vmatpush2.bf16.msra.mxu0 0
      %2390 = vmatprep.subr.bf16.mxu0 0
      %2391 = vmatpush2.bf16.msra.mxu0 0
      %2392 = vmatprep.subr.bf16.mxu0 0
      %2393 = vmatpush2.bf16.msra.mxu0 0
      %2394 = vmatprep.subr.bf16.mxu0 0
      %2395 = vmatpush2.bf16.msra.mxu0 0
      %2396 = vmatprep.subr.bf16.mxu0 0
      %2397 = vmatpush2.bf16.msra.mxu0 0
      %2398 = vmatprep.subr.bf16.mxu0 0
      %2399 = vmatpush2.bf16.msra.mxu0 0
      %2400 = vmatprep.subr.bf16.mxu0 0
      %2401 = vmatpush2.bf16.msra.mxu0 0
      %2402 = vmatprep.subr.bf16.mxu0 0
      %2403 = vmatpush2.bf16.msra.mxu0 0
      %2404 = vmatprep.mubr.bf16.mxu0 0
      %2405 = vmatmul.mubr.bf16.gmra.mxu0 %v1098
      %v2406 = vpop.f32.mrf.mxu0
      %v2407 = vadd.f32 %v2246, %v2406
      %v2408 = vpop.f32.mrf.mxu0
      %v2409 = vpop.f32.mrf.mxu0
      %v2410 = vadd.f32 %v2249, %v2409
      %v2411 = vpop.f32.mrf.mxu0
      %2412 = vmatprep.mubr.bf16.mxu0 0
      %2413 = vmatmul.mubr.bf16.gmra.mxu0 %v1099
      %v2414 = vpop.f32.mrf.mxu0
      %v2415 = vadd.f32 %v2254, %v2414
      %v2416 = vpop.f32.mrf.mxu0
      %v2417 = vpop.f32.mrf.mxu0
      %v2418 = vadd.f32 %v2257, %v2417
      %v2419 = vpop.f32.mrf.mxu0
      %2420 = vmatprep.mubr.bf16.mxu0 0
      %2421 = vmatmul.mubr.bf16.gmra.mxu0 %v1100
      %v2422 = vpop.f32.mrf.mxu0
      %v2423 = vadd.f32 %v2262, %v2422
      %v2424 = vpop.f32.mrf.mxu0
      %v2425 = vpop.f32.mrf.mxu0
      %v2426 = vadd.f32 %v2265, %v2425
      %v2427 = vpop.f32.mrf.mxu0
      %2428 = vmatprep.mubr.bf16.mxu0 0
      %2429 = vmatmul.mubr.bf16.gmra.mxu0 %v1101
      %v2430 = vpop.f32.mrf.mxu0
      %v2431 = vadd.f32 %v2270, %v2430
      %v2432 = vpop.f32.mrf.mxu0
      %v2433 = vpop.f32.mrf.mxu0
      %v2434 = vadd.f32 %v2273, %v2433
      %v2435 = vpop.f32.mrf.mxu0
      %2436 = vmatprep.mubr.bf16.mxu0 0
      %2437 = vmatmul.mubr.bf16.gmra.mxu0 %v1102
      %v2438 = vpop.f32.mrf.mxu0
      %v2439 = vadd.f32 %v2278, %v2438
      %v2440 = vpop.f32.mrf.mxu0
      %v2441 = vpop.f32.mrf.mxu0
      %v2442 = vadd.f32 %v2281, %v2441
      %v2443 = vpop.f32.mrf.mxu0
      %2444 = vmatprep.mubr.bf16.mxu0 0
      %2445 = vmatmul.mubr.bf16.gmra.mxu0 %v1103
      %v2446 = vpop.f32.mrf.mxu0
      %v2447 = vadd.f32 %v2286, %v2446
      %v2448 = vpop.f32.mrf.mxu0
      %v2449 = vpop.f32.mrf.mxu0
      %v2450 = vadd.f32 %v2289, %v2449
      %v2451 = vpop.f32.mrf.mxu0
      %2452 = vmatprep.mubr.bf16.mxu0 0
      %2453 = vmatmul.mubr.bf16.gmra.mxu0 %v1104
      %v2454 = vpop.f32.mrf.mxu0
      %v2455 = vadd.f32 %v2294, %v2454
      %v2456 = vpop.f32.mrf.mxu0
      %v2457 = vpop.f32.mrf.mxu0
      %v2458 = vadd.f32 %v2297, %v2457
      %v2459 = vpop.f32.mrf.mxu0
      %2460 = vmatprep.mubr.bf16.mxu0 0
      %2461 = vmatmul.mubr.bf16.gmra.mxu0 %v1105
      %v2462 = vpop.f32.mrf.mxu0
      %v2463 = vadd.f32 %v2302, %v2462
      %v2464 = vpop.f32.mrf.mxu0
      %v2465 = vpop.f32.mrf.mxu0
      %v2466 = vadd.f32 %v2305, %v2465
      %v2467 = vpop.f32.mrf.mxu0
      %2468 = vmatprep.mubr.bf16.mxu0 0
      %2469 = vmatmul.mubr.bf16.gmra.mxu0 %v1106
      %v2470 = vpop.f32.mrf.mxu0
      %v2471 = vadd.f32 %v2310, %v2470
      %v2472 = vpop.f32.mrf.mxu0
      %v2473 = vpop.f32.mrf.mxu0
      %v2474 = vadd.f32 %v2313, %v2473
      %v2475 = vpop.f32.mrf.mxu0
      %2476 = vmatprep.mubr.bf16.mxu0 0
      %2477 = vmatmul.mubr.bf16.gmra.mxu0 %v1107
      %v2478 = vpop.f32.mrf.mxu0
      %v2479 = vadd.f32 %v2318, %v2478
      %v2480 = vpop.f32.mrf.mxu0
      %v2481 = vpop.f32.mrf.mxu0
      %v2482 = vadd.f32 %v2321, %v2481
      %v2483 = vpop.f32.mrf.mxu0
      %2484 = vmatprep.mubr.bf16.mxu0 0
      %2485 = vmatmul.mubr.bf16.gmra.mxu0 %v1108
      %v2486 = vpop.f32.mrf.mxu0
      %v2487 = vadd.f32 %v2326, %v2486
      %v2488 = vpop.f32.mrf.mxu0
      %v2489 = vpop.f32.mrf.mxu0
      %v2490 = vadd.f32 %v2329, %v2489
      %v2491 = vpop.f32.mrf.mxu0
      %2492 = vmatprep.mubr.bf16.mxu0 0
      %2493 = vmatmul.mubr.bf16.gmra.mxu0 %v1109
      %v2494 = vpop.f32.mrf.mxu0
      %v2495 = vadd.f32 %v2334, %v2494
      %v2496 = vpop.f32.mrf.mxu0
      %v2497 = vpop.f32.mrf.mxu0
      %v2498 = vadd.f32 %v2337, %v2497
      %v2499 = vpop.f32.mrf.mxu0
      %2500 = vmatprep.mubr.bf16.mxu0 0
      %2501 = vmatmul.mubr.bf16.gmra.mxu0 %v1110
      %v2502 = vpop.f32.mrf.mxu0
      %v2503 = vadd.f32 %v2342, %v2502
      %v2504 = vpop.f32.mrf.mxu0
      %v2505 = vpop.f32.mrf.mxu0
      %v2506 = vadd.f32 %v2345, %v2505
      %v2507 = vpop.f32.mrf.mxu0
      %2508 = vmatprep.mubr.bf16.mxu0 0
      %2509 = vmatmul.mubr.bf16.gmra.mxu0 %v1111
      %v2510 = vpop.f32.mrf.mxu0
      %v2511 = vadd.f32 %v2350, %v2510
      %v2512 = vpop.f32.mrf.mxu0
      %v2513 = vpop.f32.mrf.mxu0
      %v2514 = vadd.f32 %v2353, %v2513
      %v2515 = vpop.f32.mrf.mxu0
      %2516 = vmatprep.mubr.bf16.mxu0 0
      %2517 = vmatmul.mubr.bf16.gmra.mxu0 %v1138
      %v2518 = vpop.f32.mrf.mxu0
      %v2519 = vadd.f32 %v2358, %v2518
      %v2520 = vpop.f32.mrf.mxu0
      %v2521 = vpop.f32.mrf.mxu0
      %v2522 = vadd.f32 %v2361, %v2521
      %v2523 = vpop.f32.mrf.mxu0
      %2524 = vmatprep.mubr.bf16.mxu0 0
      %2525 = vmatmul.mubr.bf16.gmra.mxu0 %v1150
      %v2526 = vpop.f32.mrf.mxu0
      %v2527 = vadd.f32 %v2366, %v2526
      %v2528 = vpop.f32.mrf.mxu0
      %v2529 = vpop.f32.mrf.mxu0
      %v2530 = vadd.f32 %v2369, %v2529
      %v2531 = vpop.f32.mrf.mxu0
      %2532 = vdwg.mxu0
      %v2533 = vld [vmem:[%s251] sm:$0x1]
      %v2535 = vlaneseq
      %v2536 = vshrl.u32 %v2535, 7
      %v2537 = vsub.s32 0, %v2536
      %v2538 = vrot.slane %v2533, %v2537
      %v2540 = vmul.f32 %v2407, %v2538
      %v2541 = vmul.f32 %v2410, %v2538
      %v2542 = vmul.f32 %v2415, %v2538
      %v2543 = vmul.f32 %v2418, %v2538
      %v2544 = vmul.f32 %v2423, %v2538
      %v2545 = vmul.f32 %v2426, %v2538
      %v2546 = vmul.f32 %v2431, %v2538
      %v2547 = vmul.f32 %v2434, %v2538
      %v2548 = vmul.f32 %v2439, %v2538
      %v2549 = vmul.f32 %v2442, %v2538
      %v2550 = vmul.f32 %v2447, %v2538
      %v2551 = vmul.f32 %v2450, %v2538
      %v2552 = vmul.f32 %v2455, %v2538
      %v2553 = vmul.f32 %v2458, %v2538
      %v2554 = vmul.f32 %v2463, %v2538
      %v2555 = vmul.f32 %v2466, %v2538
      %v2556 = vmul.f32 %v2471, %v2538
      %v2557 = vmul.f32 %v2474, %v2538
      %v2558 = vmul.f32 %v2479, %v2538
      %v2559 = vmul.f32 %v2482, %v2538
      %v2560 = vmul.f32 %v2487, %v2538
      %v2561 = vmul.f32 %v2490, %v2538
      %v2562 = vmul.f32 %v2495, %v2538
      %v2563 = vmul.f32 %v2498, %v2538
      %v2564 = vmul.f32 %v2503, %v2538
      %v2565 = vmul.f32 %v2506, %v2538
      %v2566 = vmul.f32 %v2511, %v2538
      %v2567 = vmul.f32 %v2514, %v2538
      %v2568 = vmul.f32 %v2519, %v2538
      %v2569 = vmul.f32 %v2522, %v2538
      %v2570 = vmul.f32 %v2527, %v2538
      %v2571 = vmul.f32 %v2530, %v2538
      %v2572 = vld [vmem:[%s254] sm:$0x1]
      %v2574 = vlaneseq
      %v2575 = vshrl.u32 %v2574, 7
      %v2576 = vsub.s32 0, %v2575
      %v2577 = vrot.slane %v2572, %v2576
      %v2579 = vadd.f32 %v2540, %v2577
      %v2580 = vadd.f32 %v2541, %v2577
      %v2581 = vadd.f32 %v2542, %v2577
      %v2582 = vadd.f32 %v2543, %v2577
      %v2583 = vadd.f32 %v2544, %v2577
      %v2584 = vadd.f32 %v2545, %v2577
      %v2585 = vadd.f32 %v2546, %v2577
      %v2586 = vadd.f32 %v2547, %v2577
      %v2587 = vadd.f32 %v2548, %v2577
      %v2588 = vadd.f32 %v2549, %v2577
      %v2589 = vadd.f32 %v2550, %v2577
      %v2590 = vadd.f32 %v2551, %v2577
      %v2591 = vadd.f32 %v2552, %v2577
      %v2592 = vadd.f32 %v2553, %v2577
      %v2593 = vadd.f32 %v2554, %v2577
      %v2594 = vadd.f32 %v2555, %v2577
      %v2595 = vadd.f32 %v2556, %v2577
      %v2596 = vadd.f32 %v2557, %v2577
      %v2597 = vadd.f32 %v2558, %v2577
      %v2598 = vadd.f32 %v2559, %v2577
      %v2599 = vadd.f32 %v2560, %v2577
      %v2600 = vadd.f32 %v2561, %v2577
      %v2601 = vadd.f32 %v2562, %v2577
      %v2602 = vadd.f32 %v2563, %v2577
      %v2603 = vadd.f32 %v2564, %v2577
      %v2604 = vadd.f32 %v2565, %v2577
      %v2605 = vadd.f32 %v2566, %v2577
      %v2606 = vadd.f32 %v2567, %v2577
      %v2607 = vadd.f32 %v2568, %v2577
      %v2608 = vadd.f32 %v2569, %v2577
      %v2609 = vadd.f32 %v2570, %v2577
      %v2610 = vadd.f32 %v2571, %v2577
      %v2611 = vmax.f32 %v2579, 0.0
      %v2612 = vmax.f32 %v2580, 0.0
      %v2613 = vmax.f32 %v2581, 0.0
      %v2614 = vmax.f32 %v2582, 0.0
      %v2615 = vmax.f32 %v2583, 0.0
      %v2616 = vmax.f32 %v2584, 0.0
      %v2617 = vmax.f32 %v2585, 0.0
      %v2618 = vmax.f32 %v2586, 0.0
      %v2619 = vmax.f32 %v2587, 0.0
      %v2620 = vmax.f32 %v2588, 0.0
      %v2621 = vmax.f32 %v2589, 0.0
      %v2622 = vmax.f32 %v2590, 0.0
      %v2623 = vmax.f32 %v2591, 0.0
      %v2624 = vmax.f32 %v2592, 0.0
      %v2625 = vmax.f32 %v2593, 0.0
      %v2626 = vmax.f32 %v2594, 0.0
      %v2627 = vmax.f32 %v2595, 0.0
      %v2628 = vmax.f32 %v2596, 0.0
      %v2629 = vmax.f32 %v2597, 0.0
      %v2630 = vmax.f32 %v2598, 0.0
      %v2631 = vmax.f32 %v2599, 0.0
      %v2632 = vmax.f32 %v2600, 0.0
      %v2633 = vmax.f32 %v2601, 0.0
      %v2634 = vmax.f32 %v2602, 0.0
      %v2635 = vmax.f32 %v2603, 0.0
      %v2636 = vmax.f32 %v2604, 0.0
      %v2637 = vmax.f32 %v2605, 0.0
      %v2638 = vmax.f32 %v2606, 0.0
      %v2639 = vmax.f32 %v2607, 0.0
      %v2640 = vmax.f32 %v2608, 0.0
      %v2641 = vmax.f32 %v2609, 0.0
      %v2642 = vmax.f32 %v2610, 0.0
      %v2643 = vpack.c.bf16 %v2612, %v2611
      %v2644 = vpack.c.bf16 %v2614, %v2613
      %v2645 = vpack.c.bf16 %v2616, %v2615
      %v2646 = vpack.c.bf16 %v2618, %v2617
      %v2647 = vpack.c.bf16 %v2620, %v2619
      %v2648 = vpack.c.bf16 %v2622, %v2621
      %v2649 = vpack.c.bf16 %v2624, %v2623
      %v2650 = vpack.c.bf16 %v2626, %v2625
      %v2651 = vpack.c.bf16 %v2628, %v2627
      %v2652 = vpack.c.bf16 %v2630, %v2629
      %v2653 = vpack.c.bf16 %v2632, %v2631
      %v2654 = vpack.c.bf16 %v2634, %v2633
      %v2655 = vpack.c.bf16 %v2636, %v2635
      %v2656 = vpack.c.bf16 %v2638, %v2637
      %v2657 = vpack.c.bf16 %v2640, %v2639
      %v2658 = vpack.c.bf16 %v2642, %v2641
      %v2675 = vunpack.c.l.b16 %v2643
      %v2676 = vunpack.c.h.b16 %v2643
      %v2677 = vunpack.c.l.b16 %v2644
      %v2678 = vunpack.c.h.b16 %v2644
      %v2679 = vunpack.c.l.b16 %v2645
      %v2680 = vunpack.c.h.b16 %v2645
      %v2681 = vunpack.c.l.b16 %v2646
      %v2682 = vunpack.c.h.b16 %v2646
      %v2683 = vunpack.c.l.b16 %v2647
      %v2684 = vunpack.c.h.b16 %v2647
      %v2685 = vunpack.c.l.b16 %v2648
      %v2686 = vunpack.c.h.b16 %v2648
      %v2687 = vunpack.c.l.b16 %v2649
      %v2688 = vunpack.c.h.b16 %v2649
      %v2689 = vunpack.c.l.b16 %v2650
      %v2690 = vunpack.c.h.b16 %v2650
      %v2691 = vunpack.c.l.b16 %v2651
      %v2692 = vunpack.c.h.b16 %v2651
      %v2693 = vunpack.c.l.b16 %v2652
      %v2694 = vunpack.c.h.b16 %v2652
      %v2695 = vunpack.c.l.b16 %v2653
      %v2696 = vunpack.c.h.b16 %v2653
      %v2697 = vunpack.c.l.b16 %v2654
      %v2698 = vunpack.c.h.b16 %v2654
      %v2699 = vunpack.c.l.b16 %v2655
      %v2700 = vunpack.c.h.b16 %v2655
      %v2701 = vunpack.c.l.b16 %v2656
      %v2702 = vunpack.c.h.b16 %v2656
      %v2703 = vunpack.c.l.b16 %v2657
      %v2704 = vunpack.c.h.b16 %v2657
      %v2705 = vunpack.c.l.b16 %v2658
      %v2706 = vunpack.c.h.b16 %v2658
      %v2707 = vpack.c.b16 %v2675, %v2675
      %v2708 = vpack.c.b16 %v2676, %v2676
      %v2709 = vpack.c.b16 %v2677, %v2677
      %v2710 = vpack.c.b16 %v2678, %v2678
      %v2711 = vpack.c.b16 %v2679, %v2679
      %v2712 = vpack.c.b16 %v2680, %v2680
      %v2713 = vpack.c.b16 %v2681, %v2681
      %v2714 = vpack.c.b16 %v2682, %v2682
      %v2715 = vpack.c.b16 %v2683, %v2683
      %v2716 = vpack.c.b16 %v2684, %v2684
      %v2717 = vpack.c.b16 %v2685, %v2685
      %v2718 = vpack.c.b16 %v2686, %v2686
      %v2719 = vpack.c.b16 %v2687, %v2687
      %v2720 = vpack.c.b16 %v2688, %v2688
      %v2721 = vpack.c.b16 %v2689, %v2689
      %v2722 = vpack.c.b16 %v2690, %v2690
      %v2723 = vpack.c.b16 %v2691, %v2691
      %v2724 = vpack.c.b16 %v2692, %v2692
      %v2725 = vpack.c.b16 %v2693, %v2693
      %v2726 = vpack.c.b16 %v2694, %v2694
      %v2727 = vpack.c.b16 %v2695, %v2695
      %v2728 = vpack.c.b16 %v2696, %v2696
      %v2729 = vpack.c.b16 %v2697, %v2697
      %v2730 = vpack.c.b16 %v2698, %v2698
      %v2731 = vpack.c.b16 %v2699, %v2699
      %v2732 = vpack.c.b16 %v2700, %v2700
      %v2733 = vpack.c.b16 %v2701, %v2701
      %v2734 = vpack.c.b16 %v2702, %v2702
      %v2735 = vpack.c.b16 %v2703, %v2703
      %v2736 = vpack.c.b16 %v2704, %v2704
      %v2737 = vpack.c.b16 %v2705, %v2705
      %v2738 = vpack.c.b16 %v2706, %v2706
      %2771 = vst [vmem:[%s262] sm:$0xf] %v2707
      %2772 = vst [vmem:[%s262 + $0x4] sm:$0xf] %v2708
      %2773 = vst [vmem:[%s262 + $0x8] sm:$0xf] %v2709
      %2774 = vst [vmem:[%s262 + $0xc] sm:$0xf] %v2710
      %2775 = vst [vmem:[%s262 + $0x10] sm:$0xf] %v2711
      %2776 = vst [vmem:[%s262 + $0x14] sm:$0xf] %v2712
      %2777 = vst [vmem:[%s262 + $0x18] sm:$0xf] %v2713
      %2778 = vst [vmem:[%s262 + $0x1c] sm:$0xf] %v2714
      %2779 = vst [vmem:[%s262 + $0x20] sm:$0xf] %v2715
      %2780 = vst [vmem:[%s262 + $0x24] sm:$0xf] %v2716
      %2781 = vst [vmem:[%s262 + $0x28] sm:$0xf] %v2717
      %2782 = vst [vmem:[%s262 + $0x2c] sm:$0xf] %v2718
      %2783 = vst [vmem:[%s262 + $0x30] sm:$0xf] %v2719
      %2784 = vst [vmem:[%s262 + $0x34] sm:$0xf] %v2720
      %2785 = vst [vmem:[%s262 + $0x38] sm:$0xf] %v2721
      %2786 = vst [vmem:[%s262 + $0x3c] sm:$0xf] %v2722
      %2787 = vst [vmem:[%s262 + $0x40] sm:$0xf] %v2723
      %2788 = vst [vmem:[%s262 + $0x44] sm:$0xf] %v2724
      %2789 = vst [vmem:[%s262 + $0x48] sm:$0xf] %v2725
      %2790 = vst [vmem:[%s262 + $0x4c] sm:$0xf] %v2726
      %2791 = vst [vmem:[%s262 + $0x50] sm:$0xf] %v2727
      %2792 = vst [vmem:[%s262 + $0x54] sm:$0xf] %v2728
      %2793 = vst [vmem:[%s262 + $0x58] sm:$0xf] %v2729
      %2794 = vst [vmem:[%s262 + $0x5c] sm:$0xf] %v2730
      %2795 = vst [vmem:[%s262 + $0x60] sm:$0xf] %v2731
      %2796 = vst [vmem:[%s262 + $0x64] sm:$0xf] %v2732
      %2797 = vst [vmem:[%s262 + $0x68] sm:$0xf] %v2733
      %2798 = vst [vmem:[%s262 + $0x6c] sm:$0xf] %v2734
      %2799 = vst [vmem:[%s262 + $0x70] sm:$0xf] %v2735
      %2800 = vst [vmem:[%s262 + $0x74] sm:$0xf] %v2736
      %2801 = vst [vmem:[%s262 + $0x78] sm:$0xf] %v2737
      %2802 = vst [vmem:[%s262 + $0x7c] sm:$0xf] %v2738
      %p2803 = scmp.lt.s32.totalorder %s19, 1
      %s2804 = scalar_select %p2803, %s19, 1
      %p2805 = scmp.lt.s32.totalorder %s20, 0
      %s2806 = scalar_select %p2805, %s20, 0
      %s2807 = smul.addr %s2804, 32
      %s2808 = sadd.s32 %s2806, %s2807
      %s2809 = smul.addr %s2808, 4
      %s2810 = scalar_lea.vmem %s4, %s2809
      // Predicated region
      $region37: #{basic_block_forward.2} parent=35 // pred_check
        %p2811 = pneg %p151
      $region38: #{basic_block_forward.2} parent=35 // pred_check_branch
        %2813 = sbr.rel (%p2811) target = $region40
      $region39: #{basic_block_forward.2} parent=35 // pred_region
        _
      $region40: #{basic_block_forward.2} parent=35 // pred_fallthru
        _
    $region36: #{basic_block_forward.2} parent=5 // pred_fallthru
      _
    %p2814 = scmp.le.s32.totalorder 2, %s10
    // Predicated region
    $region41: #{basic_block_forward.2} parent=5 // pred_check
      %p2815 = pneg %p2814
    $region42: #{basic_block_forward.2} parent=5 // pred_check_branch
      %2817 = sbr.rel (%p2815) target = $region44
    $region43: #{basic_block_forward.2} parent=5 // pred_region
      %s2818 = ssub.s32 %s10, 2
      // Predicated region
      $region45: #{basic_block_forward.2} parent=43 // pred_check
        %p2819 = pneg %p157
      $region46: #{basic_block_forward.2} parent=43 // pred_check_branch
        %2821 = sbr.rel (%p2819) target = $region48
      $region47: #{basic_block_forward.2} parent=43 // pred_region
        %p2822 = scmp.lt.s32.totalorder %s21, 1
        %s2823 = scalar_select %p2822, %s21, 1
        %p2824 = scmp.lt.s32.totalorder %s22, 0
        %s2825 = scalar_select %p2824, %s22, 0
        %s2826 = smul.addr %s2823, 32
        %s2827 = sadd.s32 %s2825, %s2826
        %s2828 = smul.addr %s2827, 4
        %s2829 = scalar_lea.vmem %s4, %s2828
      $region48: #{basic_block_forward.2} parent=43 // pred_fallthru
        _
    $region44: #{basic_block_forward.2} parent=5 // pred_fallthru
      _
  $region6: #{basic_block_forward.2} parent=0 // loop_footer
    %s14 = sadd.s32 1, %s10
  $region7: #{basic_block_forward.2} parent=0 // loop_footer_branch
    %9 = sbr.rel target = $region3
  $region8: #{basic_block_forward.2} parent=0 // loop_exit
    _

</llo_original>
